<compile_context>
chip_gen: v6e
topology: v6e:2x2x1
jax: 0.10.0
libtpu: 0.0.40
codegen_flags: <defaults>
</compile_context>

<pallas_src>
import functools

import jax
import jax.numpy as jnp
from jax.experimental import pallas as pl
from jax.experimental.pallas import tpu as pltpu


def _round_up(v, m):
    return ((v + m - 1) // m) * m


def _sigmoid(v):
    # exp on EUP, approximate reciprocal on EUP -> divide off the VALU path.
    return pl.reciprocal(1.0 + jnp.exp(-v), approx=True)


def _bigru_kernel(x_ref, wih_ref, bgx_ref, whh_f_ref, whh_b_ref,
                  bhn_f_ref, bhn_b_ref,
                  out_ref,
                  gx_s, hf_s, hb_s,
                  *, seq_len, batch_block, hidden_pad):
    # x_ref   : (L*TB, D) bf16, time-major, batch folded into sublanes
    #           row (t*TB + i) == x[block_batch_row i, time t]
    # wih_ref : (D, 6Hp) bf16   [fwd r|z|n | bwd r|z|n], each gate Hp lanes
    # bgx_ref : (1, 6Hp) f32    b_i{r,z} + b_h{r,z} folded in; gate n -> b_in
    # whh_*   : (Hp, 3Hp) f32   per-direction recurrent weights (zero padded)
    # bhn_*   : (1, Hp)  f32    b_hn (applied inside r*(gh_n + b_hn))
    # out_ref : (L*TB, 2Hp) f32 fused output: lanes [0,Hp)=fwd, [Hp,2Hp)=bwd
    L = seq_len
    TB = batch_block
    Hp = hidden_pad
    G = 3 * Hp

    # ---- time-parallel fused input projection (both directions, one MXU op)
    gx_s[...] = (jnp.dot(x_ref[...], wih_ref[...],
                         preferred_element_type=jnp.float32)
                 + bgx_ref[...])

    # h_0 = 0 for both directions.
    hf_s[...] = jnp.zeros_like(hf_s)
    hb_s[...] = jnp.zeros_like(hb_s)

    # Hoist the (1, Hp) b_hn loads out of the serial loop.
    bhn_f = bhn_f_ref[...]
    bhn_b = bhn_b_ref[...]

    def cell(gx, h, whh_ref, bhn):
        gh = jnp.dot(h, whh_ref[...], preferred_element_type=jnp.float32)
        r = _sigmoid(gx[:, 0:Hp] + gh[:, 0:Hp])
        z = _sigmoid(gx[:, Hp:2 * Hp] + gh[:, Hp:2 * Hp])
        n = jnp.tanh(gx[:, 2 * Hp:3 * Hp] + r * (gh[:, 2 * Hp:3 * Hp] + bhn))
        return (1.0 - z) * n + z * h

    def step(i, carry):
        # forward processes time t=i, backward processes time t=L-1-i
        rf = pl.multiple_of(i * TB, TB)
        rb = pl.multiple_of((L - 1 - i) * TB, TB)
        hf = cell(gx_s[pl.ds(rf, TB), 0:G], hf_s[...], whh_f_ref, bhn_f)
        hb = cell(gx_s[pl.ds(rb, TB), G:2 * G], hb_s[...], whh_b_ref, bhn_b)
        hf_s[...] = hf
        hb_s[...] = hb
        out_ref[pl.ds(rf, TB), 0:Hp] = hf
        out_ref[pl.ds(rb, TB), Hp:2 * Hp] = hb
        return carry

    unroll = L if L <= 16 else 4
    jax.lax.fori_loop(0, L, step, 0, unroll=unroll)


def _pad_gate_cols(w, H, Hp):
    # (A, 3H) gate-packed [r|z|n] -> (A, 3Hp) with each gate lane-aligned.
    A = w.shape[0]
    out = jnp.zeros((A, 3 * Hp), w.dtype)
    for g in range(3):
        out = out.at[:, g * Hp:g * Hp + H].set(w[:, g * H:(g + 1) * H])
    return out


def _gx_bias(bih, bhh, H, Hp):
    # [b_ir+b_hr | b_iz+b_hz | b_in]; b_hn is applied inside r*(gh_n + b_hn).
    b = jnp.zeros((3 * Hp,), jnp.float32)
    b = b.at[0 * Hp:0 * Hp + H].set(bih[0:H] + bhh[0:H])
    b = b.at[1 * Hp:1 * Hp + H].set(bih[H:2 * H] + bhh[H:2 * H])
    b = b.at[2 * Hp:2 * Hp + H].set(bih[2 * H:3 * H])
    return b


def text_bigru(x, wih_f, whh_f, bih_f, bhh_f, wih_b, whh_b, bih_b, bhh_b,
               xlen=None, batch_block=None):
    """Bidirectional single-layer GRU, batch_first. x: (B, L, feaSize)."""
    # TODO(synk): the xlen != None path (torch.sort + pack_padded_sequence)
    # is data-dependent ragged batching and is not implemented here.
    assert xlen is None, "variable-length (xlen) path not implemented"

    B, L, D = x.shape
    H = whh_f.shape[0]
    Hp = _round_up(H, 128)                     # lane-align every gate slab

    # ---- batch block + VMEM budget --------------------------------------
    try:
        vmem_cap = int(pltpu.get_tpu_info().vmem_capacity_bytes)
    except Exception:
        vmem_cap = 64 << 20                    # conservative (v7x) fallback
    vmem_budget = int(vmem_cap * 0.8)

    B8 = _round_up(B, 8)
    target = 256 if batch_block is None else max(int(batch_block), 8)
    TB = min(_round_up(target, 8), B8)

    def footprint(tb):
        b_x = L * tb * D * 2 * 2                       # bf16 input, 2 bufs
        b_out = L * tb * 2 * Hp * 4 * 2                # f32 output, 2 bufs
        b_gx = L * tb * 6 * Hp * 4                     # gx scratch
        b_w = (D * 6 * Hp * 2 + 2 * Hp * 3 * Hp * 4 + 8 * Hp * 4) * 2
        b_h = 2 * tb * Hp * 4
        return b_x + b_out + b_gx + b_w + b_h + (2 << 20)

    while TB > 8 and footprint(TB) > vmem_budget:
        TB = max(8, _round_up(TB // 2, 8))

    nb = pl.cdiv(B, TB)
    B_pad = nb * TB
    if B_pad != B:
        x = jnp.pad(x, ((0, B_pad - B), (0, 0), (0, 0)))

    # Fold batch into sublanes, time-major: row (t*TB + i) of block j is
    # x[j*TB + i, t, :].  bf16 halves HBM traffic for x.
    # TODO(synk): fold this transpose into the pallas_call (allow_input_fusion)
    # to save one HBM round-trip of x.
    x2d = (x.astype(jnp.bfloat16)
            .reshape(nb, TB, L, D)
            .transpose(0, 2, 1, 3)
            .reshape(nb, L * TB, D))

    # Fused, lane-aligned weights / biases.
    wih_cat = jnp.concatenate(
        [_pad_gate_cols(wih_f.astype(jnp.float32), H, Hp),
         _pad_gate_cols(wih_b.astype(jnp.float32), H, Hp)],
        axis=1).astype(jnp.bfloat16)                               # (D, 6Hp)

    def pad_whh(w):
        w = _pad_gate_cols(w.astype(jnp.float32), H, Hp)           # (H, 3Hp)
        return jnp.pad(w, ((0, Hp - H), (0, 0)))                   # (Hp, 3Hp)

    whh_f_p = pad_whh(whh_f)
    whh_b_p = pad_whh(whh_b)
    bgx = jnp.concatenate([_gx_bias(bih_f, bhh_f, H, Hp),
                           _gx_bias(bih_b, bhh_b, H, Hp)]).reshape(1, 6 * Hp)

    def pad_bhn(bhh):
        return jnp.zeros((1, Hp), jnp.float32).at[0, :H].set(bhh[2 * H:3 * H])

    bhn_f = pad_bhn(bhh_f)
    bhn_b = pad_bhn(bhh_b)

    kernel = functools.partial(_bigru_kernel, seq_len=L, batch_block=TB,
                               hidden_pad=Hp)

    def full(shape):
        return pl.BlockSpec(shape, lambda b: (0,) * len(shape))

    out = pl.pallas_call(
        kernel,
        out_shape=jax.ShapeDtypeStruct((nb, L * TB, 2 * Hp), jnp.float32),
        grid_spec=pltpu.PrefetchScalarGridSpec(
            num_scalar_prefetch=0,
            grid=(nb,),
            in_specs=[
                pl.BlockSpec((None, L * TB, D), lambda b: (b, 0, 0)),  # x block
                full((D, 6 * Hp)),       # fused input weights (bf16)
                full((1, 6 * Hp)),       # folded projection bias
                full((Hp, 3 * Hp)),      # recurrent weights fwd
                full((Hp, 3 * Hp)),      # recurrent weights bwd
                full((1, Hp)),           # b_hn fwd
                full((1, Hp)),           # b_hn bwd
            ],
            out_specs=pl.BlockSpec((None, L * TB, 2 * Hp), lambda b: (b, 0, 0)),
            scratch_shapes=[
                pltpu.VMEM((L * TB, 6 * Hp), jnp.float32),   # fused gx
                pltpu.VMEM((TB, Hp), jnp.float32),           # h forward
                pltpu.VMEM((TB, Hp), jnp.float32),           # h backward
            ],
        ),
        compiler_params=pltpu.CompilerParams(
            dimension_semantics=("parallel",),
            vmem_limit_bytes=vmem_budget,
        ),
    )(x2d, wih_cat, bgx, whh_f_p, whh_b_p, bhn_f, bhn_b)

    # (nb, L*TB, 2Hp) -> (B, L, 2Hp) -> (B, L, 2H)
    out = (out.reshape(nb, L, TB, 2 * Hp)
              .transpose(0, 2, 1, 3)
              .reshape(B_pad, L, 2 * Hp)[:B])
    if Hp == H:
        return out
    return jnp.concatenate([out[..., :H], out[..., Hp:Hp + H]], axis=-1)


# ----------------------------------------------------------------------------
# Pure-JAX reference (same math as torch.nn.GRU, bidirectional, batch_first)
# ----------------------------------------------------------------------------
def _sigmoid_ref(v):
    return 1.0 / (1.0 + jnp.exp(-v))


def _gru_direction_ref(x, wih, whh, bih, bhh, reverse):
    B, L, D = x.shape
    H = whh.shape[0]
    h = jnp.zeros((B, H), jnp.float32)
    hs = [None] * L
    order = range(L - 1, -1, -1) if reverse else range(L)
    for t in order:
        gx = x[:, t, :] @ wih + bih
        gh = h @ whh + bhh
        r = _sigmoid_ref(gx[:, :H] + gh[:, :H])
        z = _sigmoid_ref(gx[:, H:2 * H] + gh[:, H:2 * H])
        n = jnp.tanh(gx[:, 2 * H:] + r * gh[:, 2 * H:])
        h = (1.0 - z) * n + z * h
        hs[t] = h
    return jnp.stack(hs, axis=1)                                  # (B, L, H)


def text_bigru_ref(x, wih_f, whh_f, bih_f, bhh_f, wih_b, whh_b, bih_b, bhh_b):
    of = _gru_direction_ref(x, wih_f, whh_f, bih_f, bhh_f, reverse=False)
    ob = _gru_direction_ref(x, wih_b, whh_b, bih_b, bhh_b, reverse=True)
    return jnp.concatenate([of, ob], axis=-1)


if __name__ == "__main__":
    B, L, feaSize, hiddenSize = 2, 8, 32, 32
    G = 3 * hiddenSize

    key = jax.random.PRNGKey(0)
    kx, *kw = jax.random.split(key, 9)

    x = jax.random.normal(kx, (B, L, feaSize), dtype=jnp.float32)

    def param(k, shape, scale=0.25):
        return jax.random.normal(k, shape, dtype=jnp.float32) * scale

    # Weights stored transposed vs torch (x @ W_ih^T == x @ wih), gates [r|z|n]
    wih_f = param(kw[0], (feaSize, G))
    whh_f = param(kw[1], (hiddenSize, G))
    bih_f = param(kw[2], (G,))
    bhh_f = param(kw[3], (G,))
    wih_b = param(kw[4], (feaSize, G))       # reverse direction
    whh_b = param(kw[5], (hiddenSize, G))
    bih_b = param(kw[6], (G,))
    bhh_b = param(kw[7], (G,))

    out = text_bigru(x, wih_f, whh_f, bih_f, bhh_f,
                     wih_b, whh_b, bih_b, bhh_b)
    out = jax.block_until_ready(out)
    assert out.shape == (B, L, 2 * hiddenSize), out.shape

    # Reference matching the kernel's bf16 input-projection rounding (tight).
    def bf(a):
        return a.astype(jnp.bfloat16).astype(jnp.float32)
    ref_bf = text_bigru_ref(bf(x), bf(wih_f), whh_f, bih_f, bhh_f,
                            bf(wih_b), whh_b, bih_b, bhh_b)
    err_bf = float(jnp.max(jnp.abs(out - ref_bf)))
    assert jnp.allclose(out, ref_bf, atol=1e-2, rtol=1e-2), err_bf

    # Full-f32 torch-math reference (loose tolerance: bf16 MXU inputs).
    ref = text_bigru_ref(x, wih_f, whh_f, bih_f, bhh_f,
                         wih_b, whh_b, bih_b, bhh_b)
    err = float(jnp.max(jnp.abs(out - ref)))
    assert jnp.allclose(out, ref, atol=1.5e-1, rtol=1e-2), err

    print("KERNEL_OK")
</pallas_src>

<mosaic_0001>
module attributes {stable_mosaic.version = 11 : i64} {
  func.func @_bigru_kernel(%arg0: i32, %arg1: memref<1x64x32xbf16, #tpu.memory_space<vmem>>, %arg2: memref<32x768xbf16, #tpu.memory_space<vmem>>, %arg3: memref<1x768xf32, #tpu.memory_space<vmem>>, %arg4: memref<128x384xf32, #tpu.memory_space<vmem>>, %arg5: memref<128x384xf32, #tpu.memory_space<vmem>>, %arg6: memref<1x128xf32, #tpu.memory_space<vmem>>, %arg7: memref<1x128xf32, #tpu.memory_space<vmem>>, %arg8: memref<1x64x256xf32, #tpu.memory_space<vmem>>, %arg9: memref<64x768xf32, #tpu.memory_space<vmem>>, %arg10: memref<8x128xf32, #tpu.memory_space<vmem>>, %arg11: memref<8x128xf32, #tpu.memory_space<vmem>>) attributes {dimension_semantics = [#tpu.dimension_semantics<parallel>], iteration_bounds = array<i64: 1>, scalar_prefetch = 0 : i64, scratch_operands = 3 : i64, tpu.core_type = #tpu.core_type<tc>, window_params = [{transform_indices = @transform_0, window_bounds = array<i64: 1, 64, 32>}, {pipeline_mode = #tpu.pipeline_mode<synchronous>, transform_indices = @transform_1, window_bounds = array<i64: 32, 768>}, {pipeline_mode = #tpu.pipeline_mode<synchronous>, transform_indices = @transform_2, window_bounds = array<i64: 1, 768>}, {pipeline_mode = #tpu.pipeline_mode<synchronous>, transform_indices = @transform_3, window_bounds = array<i64: 128, 384>}, {pipeline_mode = #tpu.pipeline_mode<synchronous>, transform_indices = @transform_4, window_bounds = array<i64: 128, 384>}, {pipeline_mode = #tpu.pipeline_mode<synchronous>, transform_indices = @transform_5, window_bounds = array<i64: 1, 128>}, {pipeline_mode = #tpu.pipeline_mode<synchronous>, transform_indices = @transform_6, window_bounds = array<i64: 1, 128>}, {transform_indices = @transform_7, window_bounds = array<i64: 1, 64, 256>}]} {
    %c0 = arith.constant 0 : index
    %c0_0 = arith.constant 0 : index
    %c0_1 = arith.constant 0 : index
    %0 = vector.load %arg1[%c0, %c0_0, %c0_1] : memref<1x64x32xbf16, #tpu.memory_space<vmem>>, vector<1x64x32xbf16>
    %1 = vector.shape_cast %0 : vector<1x64x32xbf16> to vector<64x32xbf16>
    %c0_2 = arith.constant 0 : index
    %c0_3 = arith.constant 0 : index
    %2 = vector.load %arg2[%c0_2, %c0_3] : memref<32x768xbf16, #tpu.memory_space<vmem>>, vector<32x768xbf16>
    %cst = arith.constant dense<0.000000e+00> : vector<64x768xf32>
    %3 = tpu.matmul %1, %2, %cst {dimension_numbers = #tpu.dot_dimension_numbers<[1], [0], [0], [1], [0, 0, 1, 1], [], []>} : vector<64x32xbf16>, vector<32x768xbf16>, vector<64x768xf32> -> vector<64x768xf32>
    %c0_4 = arith.constant 0 : index
    %c0_5 = arith.constant 0 : index
    %4 = vector.load %arg3[%c0_4, %c0_5] : memref<1x768xf32, #tpu.memory_space<vmem>>, vector<1x768xf32>
    %5 = vector.broadcast %4 : vector<1x768xf32> to vector<64x768xf32>
    %6 = arith.addf %3, %5 : vector<64x768xf32>
    %c0_6 = arith.constant 0 : index
    %c0_7 = arith.constant 0 : index
    %7 = vector.load %arg9[%c0_6, %c0_7] : memref<64x768xf32, #tpu.memory_space<vmem>>, vector<64x768xf32>
    tpu.vector_store %arg9[%c0_6, %c0_7], %6 {strides = array<i32>} : memref<64x768xf32, #tpu.memory_space<vmem>>, vector<64x768xf32>,
    %cst_8 = arith.constant 0.000000e+00 : f32
    %8 = vector.broadcast %cst_8 : f32 to vector<8x128xf32>
    %c0_9 = arith.constant 0 : index
    %c0_10 = arith.constant 0 : index
    %9 = vector.load %arg10[%c0_9, %c0_10] : memref<8x128xf32, #tpu.memory_space<vmem>>, vector<8x128xf32>
    tpu.vector_store %arg10[%c0_9, %c0_10], %8 {strides = array<i32>} : memref<8x128xf32, #tpu.memory_space<vmem>>, vector<8x128xf32>,
    %cst_11 = arith.constant 0.000000e+00 : f32
    %10 = vector.broadcast %cst_11 : f32 to vector<8x128xf32>
    %c0_12 = arith.constant 0 : index
    %c0_13 = arith.constant 0 : index
    %11 = vector.load %arg11[%c0_12, %c0_13] : memref<8x128xf32, #tpu.memory_space<vmem>>, vector<8x128xf32>
    tpu.vector_store %arg11[%c0_12, %c0_13], %10 {strides = array<i32>} : memref<8x128xf32, #tpu.memory_space<vmem>>, vector<8x128xf32>,
    %c0_14 = arith.constant 0 : index
    %c0_15 = arith.constant 0 : index
    %12 = vector.load %arg6[%c0_14, %c0_15] : memref<1x128xf32, #tpu.memory_space<vmem>>, vector<1x128xf32>
    %c0_16 = arith.constant 0 : index
    %c0_17 = arith.constant 0 : index
    %13 = vector.load %arg7[%c0_16, %c0_17] : memref<1x128xf32, #tpu.memory_space<vmem>>, vector<1x128xf32>
    %c0_i32 = arith.constant 0 : i32
    %c8_i32 = arith.constant 8 : i32
    %14 = arith.muli %c0_i32, %c8_i32 : i32
    %15 = tpu.assume_multiple %14, 8 : i32
    %c7_i32 = arith.constant 7 : i32
    %16 = arith.subi %c7_i32, %c0_i32 : i32
    %c8_i32_18 = arith.constant 8 : i32
    %17 = arith.muli %16, %c8_i32_18 : i32
    %18 = tpu.assume_multiple %17, 8 : i32
    %19 = arith.index_cast %15 : i32 to index
    %c0_19 = arith.constant 0 : index
    %20 = vector.load %arg9[%19, %c0_19] : memref<64x768xf32, #tpu.memory_space<vmem>>, vector<8x384xf32>
    %c0_20 = arith.constant 0 : index
    %c0_21 = arith.constant 0 : index
    %21 = vector.load %arg10[%c0_20, %c0_21] : memref<8x128xf32, #tpu.memory_space<vmem>>, vector<8x128xf32>
    %c0_22 = arith.constant 0 : index
    %c0_23 = arith.constant 0 : index
    %22 = vector.load %arg4[%c0_22, %c0_23] : memref<128x384xf32, #tpu.memory_space<vmem>>, vector<128x384xf32>
    %cst_24 = arith.constant dense<0.000000e+00> : vector<8x384xf32>
    %23 = tpu.matmul %21, %22, %cst_24 {dimension_numbers = #tpu.dot_dimension_numbers<[1], [0], [0], [1], [0, 0, 1, 1], [], []>} : vector<8x128xf32>, vector<128x384xf32>, vector<8x384xf32> -> vector<8x384xf32>
    %24 = vector.extract_strided_slice %20 {offsets = [0, 0], sizes = [8, 128], strides = [1, 1]} : vector<8x384xf32> to vector<8x128xf32>
    %25 = vector.extract_strided_slice %23 {offsets = [0, 0], sizes = [8, 128], strides = [1, 1]} : vector<8x384xf32> to vector<8x128xf32>
    %26 = arith.addf %24, %25 : vector<8x128xf32>
    %cst_25 = arith.constant 0.000000e+00 : f32
    %27 = vector.broadcast %cst_25 : f32 to vector<8x128xf32>
    %28 = arith.subf %27, %26 : vector<8x128xf32>
    %29 = math.exp %28 : vector<8x128xf32>
    %cst_26 = arith.constant 1.000000e+00 : f32
    %30 = vector.broadcast %cst_26 : f32 to vector<8x128xf32>
    %31 = arith.addf %30, %29 : vector<8x128xf32>
    %32 = tpu.reciprocal %31 {approx = true} : vector<8x128xf32> -> vector<8x128xf32>
    %33 = vector.extract_strided_slice %20 {offsets = [0, 128], sizes = [8, 128], strides = [1, 1]} : vector<8x384xf32> to vector<8x128xf32>
    %34 = vector.extract_strided_slice %23 {offsets = [0, 128], sizes = [8, 128], strides = [1, 1]} : vector<8x384xf32> to vector<8x128xf32>
    %35 = arith.addf %33, %34 : vector<8x128xf32>
    %cst_27 = arith.constant 0.000000e+00 : f32
    %36 = vector.broadcast %cst_27 : f32 to vector<8x128xf32>
    %37 = arith.subf %36, %35 : vector<8x128xf32>
    %38 = math.exp %37 : vector<8x128xf32>
    %cst_28 = arith.constant 1.000000e+00 : f32
    %39 = vector.broadcast %cst_28 : f32 to vector<8x128xf32>
    %40 = arith.addf %39, %38 : vector<8x128xf32>
    %41 = tpu.reciprocal %40 {approx = true} : vector<8x128xf32> -> vector<8x128xf32>
    %42 = vector.extract_strided_slice %20 {offsets = [0, 256], sizes = [8, 128], strides = [1, 1]} : vector<8x384xf32> to vector<8x128xf32>
    %43 = vector.extract_strided_slice %23 {offsets = [0, 256], sizes = [8, 128], strides = [1, 1]} : vector<8x384xf32> to vector<8x128xf32>
    %44 = vector.broadcast %12 : vector<1x128xf32> to vector<8x128xf32>
    %45 = arith.addf %43, %44 : vector<8x128xf32>
    %46 = arith.mulf %32, %45 : vector<8x128xf32>
    %47 = arith.addf %42, %46 : vector<8x128xf32>
    %48 = math.tanh %47 : vector<8x128xf32>
    %cst_29 = arith.constant 1.000000e+00 : f32
    %49 = vector.broadcast %cst_29 : f32 to vector<8x128xf32>
    %50 = arith.subf %49, %41 : vector<8x128xf32>
    %51 = arith.mulf %50, %48 : vector<8x128xf32>
    %52 = arith.mulf %41, %21 : vector<8x128xf32>
    %53 = arith.addf %51, %52 : vector<8x128xf32>
    %54 = arith.index_cast %18 : i32 to index
    %c384 = arith.constant 384 : index
    %55 = vector.load %arg9[%54, %c384] : memref<64x768xf32, #tpu.memory_space<vmem>>, vector<8x384xf32>
    %c0_30 = arith.constant 0 : index
    %c0_31 = arith.constant 0 : index
    %56 = vector.load %arg11[%c0_30, %c0_31] : memref<8x128xf32, #tpu.memory_space<vmem>>, vector<8x128xf32>
    %c0_32 = arith.constant 0 : index
    %c0_33 = arith.constant 0 : index
    %57 = vector.load %arg5[%c0_32, %c0_33] : memref<128x384xf32, #tpu.memory_space<vmem>>, vector<128x384xf32>
    %cst_34 = arith.constant dense<0.000000e+00> : vector<8x384xf32>
    %58 = tpu.matmul %56, %57, %cst_34 {dimension_numbers = #tpu.dot_dimension_numbers<[1], [0], [0], [1], [0, 0, 1, 1], [], []>} : vector<8x128xf32>, vector<128x384xf32>, vector<8x384xf32> -> vector<8x384xf32>
    %59 = vector.extract_strided_slice %55 {offsets = [0, 0], sizes = [8, 128], strides = [1, 1]} : vector<8x384xf32> to vector<8x128xf32>
    %60 = vector.extract_strided_slice %58 {offsets = [0, 0], sizes = [8, 128], strides = [1, 1]} : vector<8x384xf32> to vector<8x128xf32>
    %61 = arith.addf %59, %60 : vector<8x128xf32>
    %cst_35 = arith.constant 0.000000e+00 : f32
    %62 = vector.broadcast %cst_35 : f32 to vector<8x128xf32>
    %63 = arith.subf %62, %61 : vector<8x128xf32>
    %64 = math.exp %63 : vector<8x128xf32>
    %cst_36 = arith.constant 1.000000e+00 : f32
    %65 = vector.broadcast %cst_36 : f32 to vector<8x128xf32>
    %66 = arith.addf %65, %64 : vector<8x128xf32>
    %67 = tpu.reciprocal %66 {approx = true} : vector<8x128xf32> -> vector<8x128xf32>
    %68 = vector.extract_strided_slice %55 {offsets = [0, 128], sizes = [8, 128], strides = [1, 1]} : vector<8x384xf32> to vector<8x128xf32>
    %69 = vector.extract_strided_slice %58 {offsets = [0, 128], sizes = [8, 128], strides = [1, 1]} : vector<8x384xf32> to vector<8x128xf32>
    %70 = arith.addf %68, %69 : vector<8x128xf32>
    %cst_37 = arith.constant 0.000000e+00 : f32
    %71 = vector.broadcast %cst_37 : f32 to vector<8x128xf32>
    %72 = arith.subf %71, %70 : vector<8x128xf32>
    %73 = math.exp %72 : vector<8x128xf32>
    %cst_38 = arith.constant 1.000000e+00 : f32
    %74 = vector.broadcast %cst_38 : f32 to vector<8x128xf32>
    %75 = arith.addf %74, %73 : vector<8x128xf32>
    %76 = tpu.reciprocal %75 {approx = true} : vector<8x128xf32> -> vector<8x128xf32>
    %77 = vector.extract_strided_slice %55 {offsets = [0, 256], sizes = [8, 128], strides = [1, 1]} : vector<8x384xf32> to vector<8x128xf32>
    %78 = vector.extract_strided_slice %58 {offsets = [0, 256], sizes = [8, 128], strides = [1, 1]} : vector<8x384xf32> to vector<8x128xf32>
    %79 = vector.broadcast %13 : vector<1x128xf32> to vector<8x128xf32>
    %80 = arith.addf %78, %79 : vector<8x128xf32>
    %81 = arith.mulf %67, %80 : vector<8x128xf32>
    %82 = arith.addf %77, %81 : vector<8x128xf32>
    %83 = math.tanh %82 : vector<8x128xf32>
    %cst_39 = arith.constant 1.000000e+00 : f32
    %84 = vector.broadcast %cst_39 : f32 to vector<8x128xf32>
    %85 = arith.subf %84, %76 : vector<8x128xf32>
    %86 = arith.mulf %85, %83 : vector<8x128xf32>
    %87 = arith.mulf %76, %56 : vector<8x128xf32>
    %88 = arith.addf %86, %87 : vector<8x128xf32>
    %c0_40 = arith.constant 0 : index
    %c0_41 = arith.constant 0 : index
    %89 = vector.load %arg10[%c0_40, %c0_41] : memref<8x128xf32, #tpu.memory_space<vmem>>, vector<8x128xf32>
    tpu.vector_store %arg10[%c0_40, %c0_41], %53 {strides = array<i32>} : memref<8x128xf32, #tpu.memory_space<vmem>>, vector<8x128xf32>,
    %c0_42 = arith.constant 0 : index
    %c0_43 = arith.constant 0 : index
    %90 = vector.load %arg11[%c0_42, %c0_43] : memref<8x128xf32, #tpu.memory_space<vmem>>, vector<8x128xf32>
    tpu.vector_store %arg11[%c0_42, %c0_43], %88 {strides = array<i32>} : memref<8x128xf32, #tpu.memory_space<vmem>>, vector<8x128xf32>,
    %c0_44 = arith.constant 0 : index
    %91 = arith.index_cast %15 : i32 to index
    %c0_45 = arith.constant 0 : index
    %92 = vector.load %arg8[%c0_44, %91, %c0_45] : memref<1x64x256xf32, #tpu.memory_space<vmem>>, vector<1x8x128xf32>
    %93 = vector.shape_cast %92 : vector<1x8x128xf32> to vector<8x128xf32>
    %94 = vector.shape_cast %53 : vector<8x128xf32> to vector<1x8x128xf32>
    tpu.vector_store %arg8[%c0_44, %91, %c0_45], %94 {strides = array<i32>} : memref<1x64x256xf32, #tpu.memory_space<vmem>>, vector<1x8x128xf32>,
    %c0_46 = arith.constant 0 : index
    %95 = arith.index_cast %18 : i32 to index
    %c128 = arith.constant 128 : index
    %96 = vector.load %arg8[%c0_46, %95, %c128] : memref<1x64x256xf32, #tpu.memory_space<vmem>>, vector<1x8x128xf32>
    %97 = vector.shape_cast %96 : vector<1x8x128xf32> to vector<8x128xf32>
    %98 = vector.shape_cast %88 : vector<8x128xf32> to vector<1x8x128xf32>
    tpu.vector_store %arg8[%c0_46, %95, %c128], %98 {strides = array<i32>} : memref<1x64x256xf32, #tpu.memory_space<vmem>>, vector<1x8x128xf32>,
    %c1_i32 = arith.constant 1 : i32
    %c8_i32_47 = arith.constant 8 : i32
    %99 = arith.muli %c1_i32, %c8_i32_47 : i32
    %100 = tpu.assume_multiple %99, 8 : i32
    %c7_i32_48 = arith.constant 7 : i32
    %101 = arith.subi %c7_i32_48, %c1_i32 : i32
    %c8_i32_49 = arith.constant 8 : i32
    %102 = arith.muli %101, %c8_i32_49 : i32
    %103 = tpu.assume_multiple %102, 8 : i32
    %104 = arith.index_cast %100 : i32 to index
    %c0_50 = arith.constant 0 : index
    %105 = vector.load %arg9[%104, %c0_50] : memref<64x768xf32, #tpu.memory_space<vmem>>, vector<8x384xf32>
    %c0_51 = arith.constant 0 : index
    %c0_52 = arith.constant 0 : index
    %106 = vector.load %arg10[%c0_51, %c0_52] : memref<8x128xf32, #tpu.memory_space<vmem>>, vector<8x128xf32>
    %c0_53 = arith.constant 0 : index
    %c0_54 = arith.constant 0 : index
    %107 = vector.load %arg4[%c0_53, %c0_54] : memref<128x384xf32, #tpu.memory_space<vmem>>, vector<128x384xf32>
    %cst_55 = arith.constant dense<0.000000e+00> : vector<8x384xf32>
    %108 = tpu.matmul %106, %107, %cst_55 {dimension_numbers = #tpu.dot_dimension_numbers<[1], [0], [0], [1], [0, 0, 1, 1], [], []>} : vector<8x128xf32>, vector<128x384xf32>, vector<8x384xf32> -> vector<8x384xf32>
    %109 = vector.extract_strided_slice %105 {offsets = [0, 0], sizes = [8, 128], strides = [1, 1]} : vector<8x384xf32> to vector<8x128xf32>
    %110 = vector.extract_strided_slice %108 {offsets = [0, 0], sizes = [8, 128], strides = [1, 1]} : vector<8x384xf32> to vector<8x128xf32>
    %111 = arith.addf %109, %110 : vector<8x128xf32>
    %cst_56 = arith.constant 0.000000e+00 : f32
    %112 = vector.broadcast %cst_56 : f32 to vector<8x128xf32>
    %113 = arith.subf %112, %111 : vector<8x128xf32>
    %114 = math.exp %113 : vector<8x128xf32>
    %cst_57 = arith.constant 1.000000e+00 : f32
    %115 = vector.broadcast %cst_57 : f32 to vector<8x128xf32>
    %116 = arith.addf %115, %114 : vector<8x128xf32>
    %117 = tpu.reciprocal %116 {approx = true} : vector<8x128xf32> -> vector<8x128xf32>
    %118 = vector.extract_strided_slice %105 {offsets = [0, 128], sizes = [8, 128], strides = [1, 1]} : vector<8x384xf32> to vector<8x128xf32>
    %119 = vector.extract_strided_slice %108 {offsets = [0, 128], sizes = [8, 128], strides = [1, 1]} : vector<8x384xf32> to vector<8x128xf32>
    %120 = arith.addf %118, %119 : vector<8x128xf32>
    %cst_58 = arith.constant 0.000000e+00 : f32
    %121 = vector.broadcast %cst_58 : f32 to vector<8x128xf32>
    %122 = arith.subf %121, %120 : vector<8x128xf32>
    %123 = math.exp %122 : vector<8x128xf32>
    %cst_59 = arith.constant 1.000000e+00 : f32
    %124 = vector.broadcast %cst_59 : f32 to vector<8x128xf32>
    %125 = arith.addf %124, %123 : vector<8x128xf32>
    %126 = tpu.reciprocal %125 {approx = true} : vector<8x128xf32> -> vector<8x128xf32>
    %127 = vector.extract_strided_slice %105 {offsets = [0, 256], sizes = [8, 128], strides = [1, 1]} : vector<8x384xf32> to vector<8x128xf32>
    %128 = vector.extract_strided_slice %108 {offsets = [0, 256], sizes = [8, 128], strides = [1, 1]} : vector<8x384xf32> to vector<8x128xf32>
    %129 = vector.broadcast %12 : vector<1x128xf32> to vector<8x128xf32>
    %130 = arith.addf %128, %129 : vector<8x128xf32>
    %131 = arith.mulf %117, %130 : vector<8x128xf32>
    %132 = arith.addf %127, %131 : vector<8x128xf32>
    %133 = math.tanh %132 : vector<8x128xf32>
    %cst_60 = arith.constant 1.000000e+00 : f32
    %134 = vector.broadcast %cst_60 : f32 to vector<8x128xf32>
    %135 = arith.subf %134, %126 : vector<8x128xf32>
    %136 = arith.mulf %135, %133 : vector<8x128xf32>
    %137 = arith.mulf %126, %106 : vector<8x128xf32>
    %138 = arith.addf %136, %137 : vector<8x128xf32>
    %139 = arith.index_cast %103 : i32 to index
    %c384_61 = arith.constant 384 : index
    %140 = vector.load %arg9[%139, %c384_61] : memref<64x768xf32, #tpu.memory_space<vmem>>, vector<8x384xf32>
    %c0_62 = arith.constant 0 : index
    %c0_63 = arith.constant 0 : index
    %141 = vector.load %arg11[%c0_62, %c0_63] : memref<8x128xf32, #tpu.memory_space<vmem>>, vector<8x128xf32>
    %c0_64 = arith.constant 0 : index
    %c0_65 = arith.constant 0 : index
    %142 = vector.load %arg5[%c0_64, %c0_65] : memref<128x384xf32, #tpu.memory_space<vmem>>, vector<128x384xf32>
    %cst_66 = arith.constant dense<0.000000e+00> : vector<8x384xf32>
    %143 = tpu.matmul %141, %142, %cst_66 {dimension_numbers = #tpu.dot_dimension_numbers<[1], [0], [0], [1], [0, 0, 1, 1], [], []>} : vector<8x128xf32>, vector<128x384xf32>, vector<8x384xf32> -> vector<8x384xf32>
    %144 = vector.extract_strided_slice %140 {offsets = [0, 0], sizes = [8, 128], strides = [1, 1]} : vector<8x384xf32> to vector<8x128xf32>
    %145 = vector.extract_strided_slice %143 {offsets = [0, 0], sizes = [8, 128], strides = [1, 1]} : vector<8x384xf32> to vector<8x128xf32>
    %146 = arith.addf %144, %145 : vector<8x128xf32>
    %cst_67 = arith.constant 0.000000e+00 : f32
    %147 = vector.broadcast %cst_67 : f32 to vector<8x128xf32>
    %148 = arith.subf %147, %146 : vector<8x128xf32>
    %149 = math.exp %148 : vector<8x128xf32>
    %cst_68 = arith.constant 1.000000e+00 : f32
    %150 = vector.broadcast %cst_68 : f32 to vector<8x128xf32>
    %151 = arith.addf %150, %149 : vector<8x128xf32>
    %152 = tpu.reciprocal %151 {approx = true} : vector<8x128xf32> -> vector<8x128xf32>
    %153 = vector.extract_strided_slice %140 {offsets = [0, 128], sizes = [8, 128], strides = [1, 1]} : vector<8x384xf32> to vector<8x128xf32>
    %154 = vector.extract_strided_slice %143 {offsets = [0, 128], sizes = [8, 128], strides = [1, 1]} : vector<8x384xf32> to vector<8x128xf32>
    %155 = arith.addf %153, %154 : vector<8x128xf32>
    %cst_69 = arith.constant 0.000000e+00 : f32
    %156 = vector.broadcast %cst_69 : f32 to vector<8x128xf32>
    %157 = arith.subf %156, %155 : vector<8x128xf32>
    %158 = math.exp %157 : vector<8x128xf32>
    %cst_70 = arith.constant 1.000000e+00 : f32
    %159 = vector.broadcast %cst_70 : f32 to vector<8x128xf32>
    %160 = arith.addf %159, %158 : vector<8x128xf32>
    %161 = tpu.reciprocal %160 {approx = true} : vector<8x128xf32> -> vector<8x128xf32>
    %162 = vector.extract_strided_slice %140 {offsets = [0, 256], sizes = [8, 128], strides = [1, 1]} : vector<8x384xf32> to vector<8x128xf32>
    %163 = vector.extract_strided_slice %143 {offsets = [0, 256], sizes = [8, 128], strides = [1, 1]} : vector<8x384xf32> to vector<8x128xf32>
    %164 = vector.broadcast %13 : vector<1x128xf32> to vector<8x128xf32>
    %165 = arith.addf %163, %164 : vector<8x128xf32>
    %166 = arith.mulf %152, %165 : vector<8x128xf32>
    %167 = arith.addf %162, %166 : vector<8x128xf32>
    %168 = math.tanh %167 : vector<8x128xf32>
    %cst_71 = arith.constant 1.000000e+00 : f32
    %169 = vector.broadcast %cst_71 : f32 to vector<8x128xf32>
    %170 = arith.subf %169, %161 : vector<8x128xf32>
    %171 = arith.mulf %170, %168 : vector<8x128xf32>
    %172 = arith.mulf %161, %141 : vector<8x128xf32>
    %173 = arith.addf %171, %172 : vector<8x128xf32>
    %c0_72 = arith.constant 0 : index
    %c0_73 = arith.constant 0 : index
    %174 = vector.load %arg10[%c0_72, %c0_73] : memref<8x128xf32, #tpu.memory_space<vmem>>, vector<8x128xf32>
    tpu.vector_store %arg10[%c0_72, %c0_73], %138 {strides = array<i32>} : memref<8x128xf32, #tpu.memory_space<vmem>>, vector<8x128xf32>,
    %c0_74 = arith.constant 0 : index
    %c0_75 = arith.constant 0 : index
    %175 = vector.load %arg11[%c0_74, %c0_75] : memref<8x128xf32, #tpu.memory_space<vmem>>, vector<8x128xf32>
    tpu.vector_store %arg11[%c0_74, %c0_75], %173 {strides = array<i32>} : memref<8x128xf32, #tpu.memory_space<vmem>>, vector<8x128xf32>,
    %c0_76 = arith.constant 0 : index
    %176 = arith.index_cast %100 : i32 to index
    %c0_77 = arith.constant 0 : index
    %177 = vector.load %arg8[%c0_76, %176, %c0_77] : memref<1x64x256xf32, #tpu.memory_space<vmem>>, vector<1x8x128xf32>
    %178 = vector.shape_cast %177 : vector<1x8x128xf32> to vector<8x128xf32>
    %179 = vector.shape_cast %138 : vector<8x128xf32> to vector<1x8x128xf32>
    tpu.vector_store %arg8[%c0_76, %176, %c0_77], %179 {strides = array<i32>} : memref<1x64x256xf32, #tpu.memory_space<vmem>>, vector<1x8x128xf32>,
    %c0_78 = arith.constant 0 : index
    %180 = arith.index_cast %103 : i32 to index
    %c128_79 = arith.constant 128 : index
    %181 = vector.load %arg8[%c0_78, %180, %c128_79] : memref<1x64x256xf32, #tpu.memory_space<vmem>>, vector<1x8x128xf32>
    %182 = vector.shape_cast %181 : vector<1x8x128xf32> to vector<8x128xf32>
    %183 = vector.shape_cast %173 : vector<8x128xf32> to vector<1x8x128xf32>
    tpu.vector_store %arg8[%c0_78, %180, %c128_79], %183 {strides = array<i32>} : memref<1x64x256xf32, #tpu.memory_space<vmem>>, vector<1x8x128xf32>,
    %c2_i32 = arith.constant 2 : i32
    %c8_i32_80 = arith.constant 8 : i32
    %184 = arith.muli %c2_i32, %c8_i32_80 : i32
    %185 = tpu.assume_multiple %184, 8 : i32
    %c7_i32_81 = arith.constant 7 : i32
    %186 = arith.subi %c7_i32_81, %c2_i32 : i32
    %c8_i32_82 = arith.constant 8 : i32
    %187 = arith.muli %186, %c8_i32_82 : i32
    %188 = tpu.assume_multiple %187, 8 : i32
    %189 = arith.index_cast %185 : i32 to index
    %c0_83 = arith.constant 0 : index
    %190 = vector.load %arg9[%189, %c0_83] : memref<64x768xf32, #tpu.memory_space<vmem>>, vector<8x384xf32>
    %c0_84 = arith.constant 0 : index
    %c0_85 = arith.constant 0 : index
    %191 = vector.load %arg10[%c0_84, %c0_85] : memref<8x128xf32, #tpu.memory_space<vmem>>, vector<8x128xf32>
    %c0_86 = arith.constant 0 : index
    %c0_87 = arith.constant 0 : index
    %192 = vector.load %arg4[%c0_86, %c0_87] : memref<128x384xf32, #tpu.memory_space<vmem>>, vector<128x384xf32>
    %cst_88 = arith.constant dense<0.000000e+00> : vector<8x384xf32>
    %193 = tpu.matmul %191, %192, %cst_88 {dimension_numbers = #tpu.dot_dimension_numbers<[1], [0], [0], [1], [0, 0, 1, 1], [], []>} : vector<8x128xf32>, vector<128x384xf32>, vector<8x384xf32> -> vector<8x384xf32>
    %194 = vector.extract_strided_slice %190 {offsets = [0, 0], sizes = [8, 128], strides = [1, 1]} : vector<8x384xf32> to vector<8x128xf32>
    %195 = vector.extract_strided_slice %193 {offsets = [0, 0], sizes = [8, 128], strides = [1, 1]} : vector<8x384xf32> to vector<8x128xf32>
    %196 = arith.addf %194, %195 : vector<8x128xf32>
    %cst_89 = arith.constant 0.000000e+00 : f32
    %197 = vector.broadcast %cst_89 : f32 to vector<8x128xf32>
    %198 = arith.subf %197, %196 : vector<8x128xf32>
    %199 = math.exp %198 : vector<8x128xf32>
    %cst_90 = arith.constant 1.000000e+00 : f32
    %200 = vector.broadcast %cst_90 : f32 to vector<8x128xf32>
    %201 = arith.addf %200, %199 : vector<8x128xf32>
    %202 = tpu.reciprocal %201 {approx = true} : vector<8x128xf32> -> vector<8x128xf32>
    %203 = vector.extract_strided_slice %190 {offsets = [0, 128], sizes = [8, 128], strides = [1, 1]} : vector<8x384xf32> to vector<8x128xf32>
    %204 = vector.extract_strided_slice %193 {offsets = [0, 128], sizes = [8, 128], strides = [1, 1]} : vector<8x384xf32> to vector<8x128xf32>
    %205 = arith.addf %203, %204 : vector<8x128xf32>
    %cst_91 = arith.constant 0.000000e+00 : f32
    %206 = vector.broadcast %cst_91 : f32 to vector<8x128xf32>
    %207 = arith.subf %206, %205 : vector<8x128xf32>
    %208 = math.exp %207 : vector<8x128xf32>
    %cst_92 = arith.constant 1.000000e+00 : f32
    %209 = vector.broadcast %cst_92 : f32 to vector<8x128xf32>
    %210 = arith.addf %209, %208 : vector<8x128xf32>
    %211 = tpu.reciprocal %210 {approx = true} : vector<8x128xf32> -> vector<8x128xf32>
    %212 = vector.extract_strided_slice %190 {offsets = [0, 256], sizes = [8, 128], strides = [1, 1]} : vector<8x384xf32> to vector<8x128xf32>
    %213 = vector.extract_strided_slice %193 {offsets = [0, 256], sizes = [8, 128], strides = [1, 1]} : vector<8x384xf32> to vector<8x128xf32>
    %214 = vector.broadcast %12 : vector<1x128xf32> to vector<8x128xf32>
    %215 = arith.addf %213, %214 : vector<8x128xf32>
    %216 = arith.mulf %202, %215 : vector<8x128xf32>
    %217 = arith.addf %212, %216 : vector<8x128xf32>
    %218 = math.tanh %217 : vector<8x128xf32>
    %cst_93 = arith.constant 1.000000e+00 : f32
    %219 = vector.broadcast %cst_93 : f32 to vector<8x128xf32>
    %220 = arith.subf %219, %211 : vector<8x128xf32>
    %221 = arith.mulf %220, %218 : vector<8x128xf32>
    %222 = arith.mulf %211, %191 : vector<8x128xf32>
    %223 = arith.addf %221, %222 : vector<8x128xf32>
    %224 = arith.index_cast %188 : i32 to index
    %c384_94 = arith.constant 384 : index
    %225 = vector.load %arg9[%224, %c384_94] : memref<64x768xf32, #tpu.memory_space<vmem>>, vector<8x384xf32>
    %c0_95 = arith.constant 0 : index
    %c0_96 = arith.constant 0 : index
    %226 = vector.load %arg11[%c0_95, %c0_96] : memref<8x128xf32, #tpu.memory_space<vmem>>, vector<8x128xf32>
    %c0_97 = arith.constant 0 : index
    %c0_98 = arith.constant 0 : index
    %227 = vector.load %arg5[%c0_97, %c0_98] : memref<128x384xf32, #tpu.memory_space<vmem>>, vector<128x384xf32>
    %cst_99 = arith.constant dense<0.000000e+00> : vector<8x384xf32>
    %228 = tpu.matmul %226, %227, %cst_99 {dimension_numbers = #tpu.dot_dimension_numbers<[1], [0], [0], [1], [0, 0, 1, 1], [], []>} : vector<8x128xf32>, vector<128x384xf32>, vector<8x384xf32> -> vector<8x384xf32>
    %229 = vector.extract_strided_slice %225 {offsets = [0, 0], sizes = [8, 128], strides = [1, 1]} : vector<8x384xf32> to vector<8x128xf32>
    %230 = vector.extract_strided_slice %228 {offsets = [0, 0], sizes = [8, 128], strides = [1, 1]} : vector<8x384xf32> to vector<8x128xf32>
    %231 = arith.addf %229, %230 : vector<8x128xf32>
    %cst_100 = arith.constant 0.000000e+00 : f32
    %232 = vector.broadcast %cst_100 : f32 to vector<8x128xf32>
    %233 = arith.subf %232, %231 : vector<8x128xf32>
    %234 = math.exp %233 : vector<8x128xf32>
    %cst_101 = arith.constant 1.000000e+00 : f32
    %235 = vector.broadcast %cst_101 : f32 to vector<8x128xf32>
    %236 = arith.addf %235, %234 : vector<8x128xf32>
    %237 = tpu.reciprocal %236 {approx = true} : vector<8x128xf32> -> vector<8x128xf32>
    %238 = vector.extract_strided_slice %225 {offsets = [0, 128], sizes = [8, 128], strides = [1, 1]} : vector<8x384xf32> to vector<8x128xf32>
    %239 = vector.extract_strided_slice %228 {offsets = [0, 128], sizes = [8, 128], strides = [1, 1]} : vector<8x384xf32> to vector<8x128xf32>
    %240 = arith.addf %238, %239 : vector<8x128xf32>
    %cst_102 = arith.constant 0.000000e+00 : f32
    %241 = vector.broadcast %cst_102 : f32 to vector<8x128xf32>
    %242 = arith.subf %241, %240 : vector<8x128xf32>
    %243 = math.exp %242 : vector<8x128xf32>
    %cst_103 = arith.constant 1.000000e+00 : f32
    %244 = vector.broadcast %cst_103 : f32 to vector<8x128xf32>
    %245 = arith.addf %244, %243 : vector<8x128xf32>
    %246 = tpu.reciprocal %245 {approx = true} : vector<8x128xf32> -> vector<8x128xf32>
    %247 = vector.extract_strided_slice %225 {offsets = [0, 256], sizes = [8, 128], strides = [1, 1]} : vector<8x384xf32> to vector<8x128xf32>
    %248 = vector.extract_strided_slice %228 {offsets = [0, 256], sizes = [8, 128], strides = [1, 1]} : vector<8x384xf32> to vector<8x128xf32>
    %249 = vector.broadcast %13 : vector<1x128xf32> to vector<8x128xf32>
    %250 = arith.addf %248, %249 : vector<8x128xf32>
    %251 = arith.mulf %237, %250 : vector<8x128xf32>
    %252 = arith.addf %247, %251 : vector<8x128xf32>
    %253 = math.tanh %252 : vector<8x128xf32>
    %cst_104 = arith.constant 1.000000e+00 : f32
    %254 = vector.broadcast %cst_104 : f32 to vector<8x128xf32>
    %255 = arith.subf %254, %246 : vector<8x128xf32>
    %256 = arith.mulf %255, %253 : vector<8x128xf32>
    %257 = arith.mulf %246, %226 : vector<8x128xf32>
    %258 = arith.addf %256, %257 : vector<8x128xf32>
    %c0_105 = arith.constant 0 : index
    %c0_106 = arith.constant 0 : index
    %259 = vector.load %arg10[%c0_105, %c0_106] : memref<8x128xf32, #tpu.memory_space<vmem>>, vector<8x128xf32>
    tpu.vector_store %arg10[%c0_105, %c0_106], %223 {strides = array<i32>} : memref<8x128xf32, #tpu.memory_space<vmem>>, vector<8x128xf32>,
    %c0_107 = arith.constant 0 : index
    %c0_108 = arith.constant 0 : index
    %260 = vector.load %arg11[%c0_107, %c0_108] : memref<8x128xf32, #tpu.memory_space<vmem>>, vector<8x128xf32>
    tpu.vector_store %arg11[%c0_107, %c0_108], %258 {strides = array<i32>} : memref<8x128xf32, #tpu.memory_space<vmem>>, vector<8x128xf32>,
    %c0_109 = arith.constant 0 : index
    %261 = arith.index_cast %185 : i32 to index
    %c0_110 = arith.constant 0 : index
    %262 = vector.load %arg8[%c0_109, %261, %c0_110] : memref<1x64x256xf32, #tpu.memory_space<vmem>>, vector<1x8x128xf32>
    %263 = vector.shape_cast %262 : vector<1x8x128xf32> to vector<8x128xf32>
    %264 = vector.shape_cast %223 : vector<8x128xf32> to vector<1x8x128xf32>
    tpu.vector_store %arg8[%c0_109, %261, %c0_110], %264 {strides = array<i32>} : memref<1x64x256xf32, #tpu.memory_space<vmem>>, vector<1x8x128xf32>,
    %c0_111 = arith.constant 0 : index
    %265 = arith.index_cast %188 : i32 to index
    %c128_112 = arith.constant 128 : index
    %266 = vector.load %arg8[%c0_111, %265, %c128_112] : memref<1x64x256xf32, #tpu.memory_space<vmem>>, vector<1x8x128xf32>
    %267 = vector.shape_cast %266 : vector<1x8x128xf32> to vector<8x128xf32>
    %268 = vector.shape_cast %258 : vector<8x128xf32> to vector<1x8x128xf32>
    tpu.vector_store %arg8[%c0_111, %265, %c128_112], %268 {strides = array<i32>} : memref<1x64x256xf32, #tpu.memory_space<vmem>>, vector<1x8x128xf32>,
    %c3_i32 = arith.constant 3 : i32
    %c8_i32_113 = arith.constant 8 : i32
    %269 = arith.muli %c3_i32, %c8_i32_113 : i32
    %270 = tpu.assume_multiple %269, 8 : i32
    %c7_i32_114 = arith.constant 7 : i32
    %271 = arith.subi %c7_i32_114, %c3_i32 : i32
    %c8_i32_115 = arith.constant 8 : i32
    %272 = arith.muli %271, %c8_i32_115 : i32
    %273 = tpu.assume_multiple %272, 8 : i32
    %274 = arith.index_cast %270 : i32 to index
    %c0_116 = arith.constant 0 : index
    %275 = vector.load %arg9[%274, %c0_116] : memref<64x768xf32, #tpu.memory_space<vmem>>, vector<8x384xf32>
    %c0_117 = arith.constant 0 : index
    %c0_118 = arith.constant 0 : index
    %276 = vector.load %arg10[%c0_117, %c0_118] : memref<8x128xf32, #tpu.memory_space<vmem>>, vector<8x128xf32>
    %c0_119 = arith.constant 0 : index
    %c0_120 = arith.constant 0 : index
    %277 = vector.load %arg4[%c0_119, %c0_120] : memref<128x384xf32, #tpu.memory_space<vmem>>, vector<128x384xf32>
    %cst_121 = arith.constant dense<0.000000e+00> : vector<8x384xf32>
    %278 = tpu.matmul %276, %277, %cst_121 {dimension_numbers = #tpu.dot_dimension_numbers<[1], [0], [0], [1], [0, 0, 1, 1], [], []>} : vector<8x128xf32>, vector<128x384xf32>, vector<8x384xf32> -> vector<8x384xf32>
    %279 = vector.extract_strided_slice %275 {offsets = [0, 0], sizes = [8, 128], strides = [1, 1]} : vector<8x384xf32> to vector<8x128xf32>
    %280 = vector.extract_strided_slice %278 {offsets = [0, 0], sizes = [8, 128], strides = [1, 1]} : vector<8x384xf32> to vector<8x128xf32>
    %281 = arith.addf %279, %280 : vector<8x128xf32>
    %cst_122 = arith.constant 0.000000e+00 : f32
    %282 = vector.broadcast %cst_122 : f32 to vector<8x128xf32>
    %283 = arith.subf %282, %281 : vector<8x128xf32>
    %284 = math.exp %283 : vector<8x128xf32>
    %cst_123 = arith.constant 1.000000e+00 : f32
    %285 = vector.broadcast %cst_123 : f32 to vector<8x128xf32>
    %286 = arith.addf %285, %284 : vector<8x128xf32>
    %287 = tpu.reciprocal %286 {approx = true} : vector<8x128xf32> -> vector<8x128xf32>
    %288 = vector.extract_strided_slice %275 {offsets = [0, 128], sizes = [8, 128], strides = [1, 1]} : vector<8x384xf32> to vector<8x128xf32>
    %289 = vector.extract_strided_slice %278 {offsets = [0, 128], sizes = [8, 128], strides = [1, 1]} : vector<8x384xf32> to vector<8x128xf32>
    %290 = arith.addf %288, %289 : vector<8x128xf32>
    %cst_124 = arith.constant 0.000000e+00 : f32
    %291 = vector.broadcast %cst_124 : f32 to vector<8x128xf32>
    %292 = arith.subf %291, %290 : vector<8x128xf32>
    %293 = math.exp %292 : vector<8x128xf32>
    %cst_125 = arith.constant 1.000000e+00 : f32
    %294 = vector.broadcast %cst_125 : f32 to vector<8x128xf32>
    %295 = arith.addf %294, %293 : vector<8x128xf32>
    %296 = tpu.reciprocal %295 {approx = true} : vector<8x128xf32> -> vector<8x128xf32>
    %297 = vector.extract_strided_slice %275 {offsets = [0, 256], sizes = [8, 128], strides = [1, 1]} : vector<8x384xf32> to vector<8x128xf32>
    %298 = vector.extract_strided_slice %278 {offsets = [0, 256], sizes = [8, 128], strides = [1, 1]} : vector<8x384xf32> to vector<8x128xf32>
    %299 = vector.broadcast %12 : vector<1x128xf32> to vector<8x128xf32>
    %300 = arith.addf %298, %299 : vector<8x128xf32>
    %301 = arith.mulf %287, %300 : vector<8x128xf32>
    %302 = arith.addf %297, %301 : vector<8x128xf32>
    %303 = math.tanh %302 : vector<8x128xf32>
    %cst_126 = arith.constant 1.000000e+00 : f32
    %304 = vector.broadcast %cst_126 : f32 to vector<8x128xf32>
    %305 = arith.subf %304, %296 : vector<8x128xf32>
    %306 = arith.mulf %305, %303 : vector<8x128xf32>
    %307 = arith.mulf %296, %276 : vector<8x128xf32>
    %308 = arith.addf %306, %307 : vector<8x128xf32>
    %309 = arith.index_cast %273 : i32 to index
    %c384_127 = arith.constant 384 : index
    %310 = vector.load %arg9[%309, %c384_127] : memref<64x768xf32, #tpu.memory_space<vmem>>, vector<8x384xf32>
    %c0_128 = arith.constant 0 : index
    %c0_129 = arith.constant 0 : index
    %311 = vector.load %arg11[%c0_128, %c0_129] : memref<8x128xf32, #tpu.memory_space<vmem>>, vector<8x128xf32>
    %c0_130 = arith.constant 0 : index
    %c0_131 = arith.constant 0 : index
    %312 = vector.load %arg5[%c0_130, %c0_131] : memref<128x384xf32, #tpu.memory_space<vmem>>, vector<128x384xf32>
    %cst_132 = arith.constant dense<0.000000e+00> : vector<8x384xf32>
    %313 = tpu.matmul %311, %312, %cst_132 {dimension_numbers = #tpu.dot_dimension_numbers<[1], [0], [0], [1], [0, 0, 1, 1], [], []>} : vector<8x128xf32>, vector<128x384xf32>, vector<8x384xf32> -> vector<8x384xf32>
    %314 = vector.extract_strided_slice %310 {offsets = [0, 0], sizes = [8, 128], strides = [1, 1]} : vector<8x384xf32> to vector<8x128xf32>
    %315 = vector.extract_strided_slice %313 {offsets = [0, 0], sizes = [8, 128], strides = [1, 1]} : vector<8x384xf32> to vector<8x128xf32>
    %316 = arith.addf %314, %315 : vector<8x128xf32>
    %cst_133 = arith.constant 0.000000e+00 : f32
    %317 = vector.broadcast %cst_133 : f32 to vector<8x128xf32>
    %318 = arith.subf %317, %316 : vector<8x128xf32>
    %319 = math.exp %318 : vector<8x128xf32>
    %cst_134 = arith.constant 1.000000e+00 : f32
    %320 = vector.broadcast %cst_134 : f32 to vector<8x128xf32>
    %321 = arith.addf %320, %319 : vector<8x128xf32>
    %322 = tpu.reciprocal %321 {approx = true} : vector<8x128xf32> -> vector<8x128xf32>
    %323 = vector.extract_strided_slice %310 {offsets = [0, 128], sizes = [8, 128], strides = [1, 1]} : vector<8x384xf32> to vector<8x128xf32>
    %324 = vector.extract_strided_slice %313 {offsets = [0, 128], sizes = [8, 128], strides = [1, 1]} : vector<8x384xf32> to vector<8x128xf32>
    %325 = arith.addf %323, %324 : vector<8x128xf32>
    %cst_135 = arith.constant 0.000000e+00 : f32
    %326 = vector.broadcast %cst_135 : f32 to vector<8x128xf32>
    %327 = arith.subf %326, %325 : vector<8x128xf32>
    %328 = math.exp %327 : vector<8x128xf32>
    %cst_136 = arith.constant 1.000000e+00 : f32
    %329 = vector.broadcast %cst_136 : f32 to vector<8x128xf32>
    %330 = arith.addf %329, %328 : vector<8x128xf32>
    %331 = tpu.reciprocal %330 {approx = true} : vector<8x128xf32> -> vector<8x128xf32>
    %332 = vector.extract_strided_slice %310 {offsets = [0, 256], sizes = [8, 128], strides = [1, 1]} : vector<8x384xf32> to vector<8x128xf32>
    %333 = vector.extract_strided_slice %313 {offsets = [0, 256], sizes = [8, 128], strides = [1, 1]} : vector<8x384xf32> to vector<8x128xf32>
    %334 = vector.broadcast %13 : vector<1x128xf32> to vector<8x128xf32>
    %335 = arith.addf %333, %334 : vector<8x128xf32>
    %336 = arith.mulf %322, %335 : vector<8x128xf32>
    %337 = arith.addf %332, %336 : vector<8x128xf32>
    %338 = math.tanh %337 : vector<8x128xf32>
    %cst_137 = arith.constant 1.000000e+00 : f32
    %339 = vector.broadcast %cst_137 : f32 to vector<8x128xf32>
    %340 = arith.subf %339, %331 : vector<8x128xf32>
    %341 = arith.mulf %340, %338 : vector<8x128xf32>
    %342 = arith.mulf %331, %311 : vector<8x128xf32>
    %343 = arith.addf %341, %342 : vector<8x128xf32>
    %c0_138 = arith.constant 0 : index
    %c0_139 = arith.constant 0 : index
    %344 = vector.load %arg10[%c0_138, %c0_139] : memref<8x128xf32, #tpu.memory_space<vmem>>, vector<8x128xf32>
    tpu.vector_store %arg10[%c0_138, %c0_139], %308 {strides = array<i32>} : memref<8x128xf32, #tpu.memory_space<vmem>>, vector<8x128xf32>,
    %c0_140 = arith.constant 0 : index
    %c0_141 = arith.constant 0 : index
    %345 = vector.load %arg11[%c0_140, %c0_141] : memref<8x128xf32, #tpu.memory_space<vmem>>, vector<8x128xf32>
    tpu.vector_store %arg11[%c0_140, %c0_141], %343 {strides = array<i32>} : memref<8x128xf32, #tpu.memory_space<vmem>>, vector<8x128xf32>,
    %c0_142 = arith.constant 0 : index
    %346 = arith.index_cast %270 : i32 to index
    %c0_143 = arith.constant 0 : index
    %347 = vector.load %arg8[%c0_142, %346, %c0_143] : memref<1x64x256xf32, #tpu.memory_space<vmem>>, vector<1x8x128xf32>
    %348 = vector.shape_cast %347 : vector<1x8x128xf32> to vector<8x128xf32>
    %349 = vector.shape_cast %308 : vector<8x128xf32> to vector<1x8x128xf32>
    tpu.vector_store %arg8[%c0_142, %346, %c0_143], %349 {strides = array<i32>} : memref<1x64x256xf32, #tpu.memory_space<vmem>>, vector<1x8x128xf32>,
    %c0_144 = arith.constant 0 : index
    %350 = arith.index_cast %273 : i32 to index
    %c128_145 = arith.constant 128 : index
    %351 = vector.load %arg8[%c0_144, %350, %c128_145] : memref<1x64x256xf32, #tpu.memory_space<vmem>>, vector<1x8x128xf32>
    %352 = vector.shape_cast %351 : vector<1x8x128xf32> to vector<8x128xf32>
    %353 = vector.shape_cast %343 : vector<8x128xf32> to vector<1x8x128xf32>
    tpu.vector_store %arg8[%c0_144, %350, %c128_145], %353 {strides = array<i32>} : memref<1x64x256xf32, #tpu.memory_space<vmem>>, vector<1x8x128xf32>,
    %c4_i32 = arith.constant 4 : i32
    %c8_i32_146 = arith.constant 8 : i32
    %354 = arith.muli %c4_i32, %c8_i32_146 : i32
    %355 = tpu.assume_multiple %354, 8 : i32
    %c7_i32_147 = arith.constant 7 : i32
    %356 = arith.subi %c7_i32_147, %c4_i32 : i32
    %c8_i32_148 = arith.constant 8 : i32
    %357 = arith.muli %356, %c8_i32_148 : i32
    %358 = tpu.assume_multiple %357, 8 : i32
    %359 = arith.index_cast %355 : i32 to index
    %c0_149 = arith.constant 0 : index
    %360 = vector.load %arg9[%359, %c0_149] : memref<64x768xf32, #tpu.memory_space<vmem>>, vector<8x384xf32>
    %c0_150 = arith.constant 0 : index
    %c0_151 = arith.constant 0 : index
    %361 = vector.load %arg10[%c0_150, %c0_151] : memref<8x128xf32, #tpu.memory_space<vmem>>, vector<8x128xf32>
    %c0_152 = arith.constant 0 : index
    %c0_153 = arith.constant 0 : index
    %362 = vector.load %arg4[%c0_152, %c0_153] : memref<128x384xf32, #tpu.memory_space<vmem>>, vector<128x384xf32>
    %cst_154 = arith.constant dense<0.000000e+00> : vector<8x384xf32>
    %363 = tpu.matmul %361, %362, %cst_154 {dimension_numbers = #tpu.dot_dimension_numbers<[1], [0], [0], [1], [0, 0, 1, 1], [], []>} : vector<8x128xf32>, vector<128x384xf32>, vector<8x384xf32> -> vector<8x384xf32>
    %364 = vector.extract_strided_slice %360 {offsets = [0, 0], sizes = [8, 128], strides = [1, 1]} : vector<8x384xf32> to vector<8x128xf32>
    %365 = vector.extract_strided_slice %363 {offsets = [0, 0], sizes = [8, 128], strides = [1, 1]} : vector<8x384xf32> to vector<8x128xf32>
    %366 = arith.addf %364, %365 : vector<8x128xf32>
    %cst_155 = arith.constant 0.000000e+00 : f32
    %367 = vector.broadcast %cst_155 : f32 to vector<8x128xf32>
    %368 = arith.subf %367, %366 : vector<8x128xf32>
    %369 = math.exp %368 : vector<8x128xf32>
    %cst_156 = arith.constant 1.000000e+00 : f32
    %370 = vector.broadcast %cst_156 : f32 to vector<8x128xf32>
    %371 = arith.addf %370, %369 : vector<8x128xf32>
    %372 = tpu.reciprocal %371 {approx = true} : vector<8x128xf32> -> vector<8x128xf32>
    %373 = vector.extract_strided_slice %360 {offsets = [0, 128], sizes = [8, 128], strides = [1, 1]} : vector<8x384xf32> to vector<8x128xf32>
    %374 = vector.extract_strided_slice %363 {offsets = [0, 128], sizes = [8, 128], strides = [1, 1]} : vector<8x384xf32> to vector<8x128xf32>
    %375 = arith.addf %373, %374 : vector<8x128xf32>
    %cst_157 = arith.constant 0.000000e+00 : f32
    %376 = vector.broadcast %cst_157 : f32 to vector<8x128xf32>
    %377 = arith.subf %376, %375 : vector<8x128xf32>
    %378 = math.exp %377 : vector<8x128xf32>
    %cst_158 = arith.constant 1.000000e+00 : f32
    %379 = vector.broadcast %cst_158 : f32 to vector<8x128xf32>
    %380 = arith.addf %379, %378 : vector<8x128xf32>
    %381 = tpu.reciprocal %380 {approx = true} : vector<8x128xf32> -> vector<8x128xf32>
    %382 = vector.extract_strided_slice %360 {offsets = [0, 256], sizes = [8, 128], strides = [1, 1]} : vector<8x384xf32> to vector<8x128xf32>
    %383 = vector.extract_strided_slice %363 {offsets = [0, 256], sizes = [8, 128], strides = [1, 1]} : vector<8x384xf32> to vector<8x128xf32>
    %384 = vector.broadcast %12 : vector<1x128xf32> to vector<8x128xf32>
    %385 = arith.addf %383, %384 : vector<8x128xf32>
    %386 = arith.mulf %372, %385 : vector<8x128xf32>
    %387 = arith.addf %382, %386 : vector<8x128xf32>
    %388 = math.tanh %387 : vector<8x128xf32>
    %cst_159 = arith.constant 1.000000e+00 : f32
    %389 = vector.broadcast %cst_159 : f32 to vector<8x128xf32>
    %390 = arith.subf %389, %381 : vector<8x128xf32>
    %391 = arith.mulf %390, %388 : vector<8x128xf32>
    %392 = arith.mulf %381, %361 : vector<8x128xf32>
    %393 = arith.addf %391, %392 : vector<8x128xf32>
    %394 = arith.index_cast %358 : i32 to index
    %c384_160 = arith.constant 384 : index
    %395 = vector.load %arg9[%394, %c384_160] : memref<64x768xf32, #tpu.memory_space<vmem>>, vector<8x384xf32>
    %c0_161 = arith.constant 0 : index
    %c0_162 = arith.constant 0 : index
    %396 = vector.load %arg11[%c0_161, %c0_162] : memref<8x128xf32, #tpu.memory_space<vmem>>, vector<8x128xf32>
    %c0_163 = arith.constant 0 : index
    %c0_164 = arith.constant 0 : index
    %397 = vector.load %arg5[%c0_163, %c0_164] : memref<128x384xf32, #tpu.memory_space<vmem>>, vector<128x384xf32>
    %cst_165 = arith.constant dense<0.000000e+00> : vector<8x384xf32>
    %398 = tpu.matmul %396, %397, %cst_165 {dimension_numbers = #tpu.dot_dimension_numbers<[1], [0], [0], [1], [0, 0, 1, 1], [], []>} : vector<8x128xf32>, vector<128x384xf32>, vector<8x384xf32> -> vector<8x384xf32>
    %399 = vector.extract_strided_slice %395 {offsets = [0, 0], sizes = [8, 128], strides = [1, 1]} : vector<8x384xf32> to vector<8x128xf32>
    %400 = vector.extract_strided_slice %398 {offsets = [0, 0], sizes = [8, 128], strides = [1, 1]} : vector<8x384xf32> to vector<8x128xf32>
    %401 = arith.addf %399, %400 : vector<8x128xf32>
    %cst_166 = arith.constant 0.000000e+00 : f32
    %402 = vector.broadcast %cst_166 : f32 to vector<8x128xf32>
    %403 = arith.subf %402, %401 : vector<8x128xf32>
    %404 = math.exp %403 : vector<8x128xf32>
    %cst_167 = arith.constant 1.000000e+00 : f32
    %405 = vector.broadcast %cst_167 : f32 to vector<8x128xf32>
    %406 = arith.addf %405, %404 : vector<8x128xf32>
    %407 = tpu.reciprocal %406 {approx = true} : vector<8x128xf32> -> vector<8x128xf32>
    %408 = vector.extract_strided_slice %395 {offsets = [0, 128], sizes = [8, 128], strides = [1, 1]} : vector<8x384xf32> to vector<8x128xf32>
    %409 = vector.extract_strided_slice %398 {offsets = [0, 128], sizes = [8, 128], strides = [1, 1]} : vector<8x384xf32> to vector<8x128xf32>
    %410 = arith.addf %408, %409 : vector<8x128xf32>
    %cst_168 = arith.constant 0.000000e+00 : f32
    %411 = vector.broadcast %cst_168 : f32 to vector<8x128xf32>
    %412 = arith.subf %411, %410 : vector<8x128xf32>
    %413 = math.exp %412 : vector<8x128xf32>
    %cst_169 = arith.constant 1.000000e+00 : f32
    %414 = vector.broadcast %cst_169 : f32 to vector<8x128xf32>
    %415 = arith.addf %414, %413 : vector<8x128xf32>
    %416 = tpu.reciprocal %415 {approx = true} : vector<8x128xf32> -> vector<8x128xf32>
    %417 = vector.extract_strided_slice %395 {offsets = [0, 256], sizes = [8, 128], strides = [1, 1]} : vector<8x384xf32> to vector<8x128xf32>
    %418 = vector.extract_strided_slice %398 {offsets = [0, 256], sizes = [8, 128], strides = [1, 1]} : vector<8x384xf32> to vector<8x128xf32>
    %419 = vector.broadcast %13 : vector<1x128xf32> to vector<8x128xf32>
    %420 = arith.addf %418, %419 : vector<8x128xf32>
    %421 = arith.mulf %407, %420 : vector<8x128xf32>
    %422 = arith.addf %417, %421 : vector<8x128xf32>
    %423 = math.tanh %422 : vector<8x128xf32>
    %cst_170 = arith.constant 1.000000e+00 : f32
    %424 = vector.broadcast %cst_170 : f32 to vector<8x128xf32>
    %425 = arith.subf %424, %416 : vector<8x128xf32>
    %426 = arith.mulf %425, %423 : vector<8x128xf32>
    %427 = arith.mulf %416, %396 : vector<8x128xf32>
    %428 = arith.addf %426, %427 : vector<8x128xf32>
    %c0_171 = arith.constant 0 : index
    %c0_172 = arith.constant 0 : index
    %429 = vector.load %arg10[%c0_171, %c0_172] : memref<8x128xf32, #tpu.memory_space<vmem>>, vector<8x128xf32>
    tpu.vector_store %arg10[%c0_171, %c0_172], %393 {strides = array<i32>} : memref<8x128xf32, #tpu.memory_space<vmem>>, vector<8x128xf32>,
    %c0_173 = arith.constant 0 : index
    %c0_174 = arith.constant 0 : index
    %430 = vector.load %arg11[%c0_173, %c0_174] : memref<8x128xf32, #tpu.memory_space<vmem>>, vector<8x128xf32>
    tpu.vector_store %arg11[%c0_173, %c0_174], %428 {strides = array<i32>} : memref<8x128xf32, #tpu.memory_space<vmem>>, vector<8x128xf32>,
    %c0_175 = arith.constant 0 : index
    %431 = arith.index_cast %355 : i32 to index
    %c0_176 = arith.constant 0 : index
    %432 = vector.load %arg8[%c0_175, %431, %c0_176] : memref<1x64x256xf32, #tpu.memory_space<vmem>>, vector<1x8x128xf32>
    %433 = vector.shape_cast %432 : vector<1x8x128xf32> to vector<8x128xf32>
    %434 = vector.shape_cast %393 : vector<8x128xf32> to vector<1x8x128xf32>
    tpu.vector_store %arg8[%c0_175, %431, %c0_176], %434 {strides = array<i32>} : memref<1x64x256xf32, #tpu.memory_space<vmem>>, vector<1x8x128xf32>,
    %c0_177 = arith.constant 0 : index
    %435 = arith.index_cast %358 : i32 to index
    %c128_178 = arith.constant 128 : index
    %436 = vector.load %arg8[%c0_177, %435, %c128_178] : memref<1x64x256xf32, #tpu.memory_space<vmem>>, vector<1x8x128xf32>
    %437 = vector.shape_cast %436 : vector<1x8x128xf32> to vector<8x128xf32>
    %438 = vector.shape_cast %428 : vector<8x128xf32> to vector<1x8x128xf32>
    tpu.vector_store %arg8[%c0_177, %435, %c128_178], %438 {strides = array<i32>} : memref<1x64x256xf32, #tpu.memory_space<vmem>>, vector<1x8x128xf32>,
    %c5_i32 = arith.constant 5 : i32
    %c8_i32_179 = arith.constant 8 : i32
    %439 = arith.muli %c5_i32, %c8_i32_179 : i32
    %440 = tpu.assume_multiple %439, 8 : i32
    %c7_i32_180 = arith.constant 7 : i32
    %441 = arith.subi %c7_i32_180, %c5_i32 : i32
    %c8_i32_181 = arith.constant 8 : i32
    %442 = arith.muli %441, %c8_i32_181 : i32
    %443 = tpu.assume_multiple %442, 8 : i32
    %444 = arith.index_cast %440 : i32 to index
    %c0_182 = arith.constant 0 : index
    %445 = vector.load %arg9[%444, %c0_182] : memref<64x768xf32, #tpu.memory_space<vmem>>, vector<8x384xf32>
    %c0_183 = arith.constant 0 : index
    %c0_184 = arith.constant 0 : index
    %446 = vector.load %arg10[%c0_183, %c0_184] : memref<8x128xf32, #tpu.memory_space<vmem>>, vector<8x128xf32>
    %c0_185 = arith.constant 0 : index
    %c0_186 = arith.constant 0 : index
    %447 = vector.load %arg4[%c0_185, %c0_186] : memref<128x384xf32, #tpu.memory_space<vmem>>, vector<128x384xf32>
    %cst_187 = arith.constant dense<0.000000e+00> : vector<8x384xf32>
    %448 = tpu.matmul %446, %447, %cst_187 {dimension_numbers = #tpu.dot_dimension_numbers<[1], [0], [0], [1], [0, 0, 1, 1], [], []>} : vector<8x128xf32>, vector<128x384xf32>, vector<8x384xf32> -> vector<8x384xf32>
    %449 = vector.extract_strided_slice %445 {offsets = [0, 0], sizes = [8, 128], strides = [1, 1]} : vector<8x384xf32> to vector<8x128xf32>
    %450 = vector.extract_strided_slice %448 {offsets = [0, 0], sizes = [8, 128], strides = [1, 1]} : vector<8x384xf32> to vector<8x128xf32>
    %451 = arith.addf %449, %450 : vector<8x128xf32>
    %cst_188 = arith.constant 0.000000e+00 : f32
    %452 = vector.broadcast %cst_188 : f32 to vector<8x128xf32>
    %453 = arith.subf %452, %451 : vector<8x128xf32>
    %454 = math.exp %453 : vector<8x128xf32>
    %cst_189 = arith.constant 1.000000e+00 : f32
    %455 = vector.broadcast %cst_189 : f32 to vector<8x128xf32>
    %456 = arith.addf %455, %454 : vector<8x128xf32>
    %457 = tpu.reciprocal %456 {approx = true} : vector<8x128xf32> -> vector<8x128xf32>
    %458 = vector.extract_strided_slice %445 {offsets = [0, 128], sizes = [8, 128], strides = [1, 1]} : vector<8x384xf32> to vector<8x128xf32>
    %459 = vector.extract_strided_slice %448 {offsets = [0, 128], sizes = [8, 128], strides = [1, 1]} : vector<8x384xf32> to vector<8x128xf32>
    %460 = arith.addf %458, %459 : vector<8x128xf32>
    %cst_190 = arith.constant 0.000000e+00 : f32
    %461 = vector.broadcast %cst_190 : f32 to vector<8x128xf32>
    %462 = arith.subf %461, %460 : vector<8x128xf32>
    %463 = math.exp %462 : vector<8x128xf32>
    %cst_191 = arith.constant 1.000000e+00 : f32
    %464 = vector.broadcast %cst_191 : f32 to vector<8x128xf32>
    %465 = arith.addf %464, %463 : vector<8x128xf32>
    %466 = tpu.reciprocal %465 {approx = true} : vector<8x128xf32> -> vector<8x128xf32>
    %467 = vector.extract_strided_slice %445 {offsets = [0, 256], sizes = [8, 128], strides = [1, 1]} : vector<8x384xf32> to vector<8x128xf32>
    %468 = vector.extract_strided_slice %448 {offsets = [0, 256], sizes = [8, 128], strides = [1, 1]} : vector<8x384xf32> to vector<8x128xf32>
    %469 = vector.broadcast %12 : vector<1x128xf32> to vector<8x128xf32>
    %470 = arith.addf %468, %469 : vector<8x128xf32>
    %471 = arith.mulf %457, %470 : vector<8x128xf32>
    %472 = arith.addf %467, %471 : vector<8x128xf32>
    %473 = math.tanh %472 : vector<8x128xf32>
    %cst_192 = arith.constant 1.000000e+00 : f32
    %474 = vector.broadcast %cst_192 : f32 to vector<8x128xf32>
    %475 = arith.subf %474, %466 : vector<8x128xf32>
    %476 = arith.mulf %475, %473 : vector<8x128xf32>
    %477 = arith.mulf %466, %446 : vector<8x128xf32>
    %478 = arith.addf %476, %477 : vector<8x128xf32>
    %479 = arith.index_cast %443 : i32 to index
    %c384_193 = arith.constant 384 : index
    %480 = vector.load %arg9[%479, %c384_193] : memref<64x768xf32, #tpu.memory_space<vmem>>, vector<8x384xf32>
    %c0_194 = arith.constant 0 : index
    %c0_195 = arith.constant 0 : index
    %481 = vector.load %arg11[%c0_194, %c0_195] : memref<8x128xf32, #tpu.memory_space<vmem>>, vector<8x128xf32>
    %c0_196 = arith.constant 0 : index
    %c0_197 = arith.constant 0 : index
    %482 = vector.load %arg5[%c0_196, %c0_197] : memref<128x384xf32, #tpu.memory_space<vmem>>, vector<128x384xf32>
    %cst_198 = arith.constant dense<0.000000e+00> : vector<8x384xf32>
    %483 = tpu.matmul %481, %482, %cst_198 {dimension_numbers = #tpu.dot_dimension_numbers<[1], [0], [0], [1], [0, 0, 1, 1], [], []>} : vector<8x128xf32>, vector<128x384xf32>, vector<8x384xf32> -> vector<8x384xf32>
    %484 = vector.extract_strided_slice %480 {offsets = [0, 0], sizes = [8, 128], strides = [1, 1]} : vector<8x384xf32> to vector<8x128xf32>
    %485 = vector.extract_strided_slice %483 {offsets = [0, 0], sizes = [8, 128], strides = [1, 1]} : vector<8x384xf32> to vector<8x128xf32>
    %486 = arith.addf %484, %485 : vector<8x128xf32>
    %cst_199 = arith.constant 0.000000e+00 : f32
    %487 = vector.broadcast %cst_199 : f32 to vector<8x128xf32>
    %488 = arith.subf %487, %486 : vector<8x128xf32>
    %489 = math.exp %488 : vector<8x128xf32>
    %cst_200 = arith.constant 1.000000e+00 : f32
    %490 = vector.broadcast %cst_200 : f32 to vector<8x128xf32>
    %491 = arith.addf %490, %489 : vector<8x128xf32>
    %492 = tpu.reciprocal %491 {approx = true} : vector<8x128xf32> -> vector<8x128xf32>
    %493 = vector.extract_strided_slice %480 {offsets = [0, 128], sizes = [8, 128], strides = [1, 1]} : vector<8x384xf32> to vector<8x128xf32>
    %494 = vector.extract_strided_slice %483 {offsets = [0, 128], sizes = [8, 128], strides = [1, 1]} : vector<8x384xf32> to vector<8x128xf32>
    %495 = arith.addf %493, %494 : vector<8x128xf32>
    %cst_201 = arith.constant 0.000000e+00 : f32
    %496 = vector.broadcast %cst_201 : f32 to vector<8x128xf32>
    %497 = arith.subf %496, %495 : vector<8x128xf32>
    %498 = math.exp %497 : vector<8x128xf32>
    %cst_202 = arith.constant 1.000000e+00 : f32
    %499 = vector.broadcast %cst_202 : f32 to vector<8x128xf32>
    %500 = arith.addf %499, %498 : vector<8x128xf32>
    %501 = tpu.reciprocal %500 {approx = true} : vector<8x128xf32> -> vector<8x128xf32>
    %502 = vector.extract_strided_slice %480 {offsets = [0, 256], sizes = [8, 128], strides = [1, 1]} : vector<8x384xf32> to vector<8x128xf32>
    %503 = vector.extract_strided_slice %483 {offsets = [0, 256], sizes = [8, 128], strides = [1, 1]} : vector<8x384xf32> to vector<8x128xf32>
    %504 = vector.broadcast %13 : vector<1x128xf32> to vector<8x128xf32>
    %505 = arith.addf %503, %504 : vector<8x128xf32>
    %506 = arith.mulf %492, %505 : vector<8x128xf32>
    %507 = arith.addf %502, %506 : vector<8x128xf32>
    %508 = math.tanh %507 : vector<8x128xf32>
    %cst_203 = arith.constant 1.000000e+00 : f32
    %509 = vector.broadcast %cst_203 : f32 to vector<8x128xf32>
    %510 = arith.subf %509, %501 : vector<8x128xf32>
    %511 = arith.mulf %510, %508 : vector<8x128xf32>
    %512 = arith.mulf %501, %481 : vector<8x128xf32>
    %513 = arith.addf %511, %512 : vector<8x128xf32>
    %c0_204 = arith.constant 0 : index
    %c0_205 = arith.constant 0 : index
    %514 = vector.load %arg10[%c0_204, %c0_205] : memref<8x128xf32, #tpu.memory_space<vmem>>, vector<8x128xf32>
    tpu.vector_store %arg10[%c0_204, %c0_205], %478 {strides = array<i32>} : memref<8x128xf32, #tpu.memory_space<vmem>>, vector<8x128xf32>,
    %c0_206 = arith.constant 0 : index
    %c0_207 = arith.constant 0 : index
    %515 = vector.load %arg11[%c0_206, %c0_207] : memref<8x128xf32, #tpu.memory_space<vmem>>, vector<8x128xf32>
    tpu.vector_store %arg11[%c0_206, %c0_207], %513 {strides = array<i32>} : memref<8x128xf32, #tpu.memory_space<vmem>>, vector<8x128xf32>,
    %c0_208 = arith.constant 0 : index
    %516 = arith.index_cast %440 : i32 to index
    %c0_209 = arith.constant 0 : index
    %517 = vector.load %arg8[%c0_208, %516, %c0_209] : memref<1x64x256xf32, #tpu.memory_space<vmem>>, vector<1x8x128xf32>
    %518 = vector.shape_cast %517 : vector<1x8x128xf32> to vector<8x128xf32>
    %519 = vector.shape_cast %478 : vector<8x128xf32> to vector<1x8x128xf32>
    tpu.vector_store %arg8[%c0_208, %516, %c0_209], %519 {strides = array<i32>} : memref<1x64x256xf32, #tpu.memory_space<vmem>>, vector<1x8x128xf32>,
    %c0_210 = arith.constant 0 : index
    %520 = arith.index_cast %443 : i32 to index
    %c128_211 = arith.constant 128 : index
    %521 = vector.load %arg8[%c0_210, %520, %c128_211] : memref<1x64x256xf32, #tpu.memory_space<vmem>>, vector<1x8x128xf32>
    %522 = vector.shape_cast %521 : vector<1x8x128xf32> to vector<8x128xf32>
    %523 = vector.shape_cast %513 : vector<8x128xf32> to vector<1x8x128xf32>
    tpu.vector_store %arg8[%c0_210, %520, %c128_211], %523 {strides = array<i32>} : memref<1x64x256xf32, #tpu.memory_space<vmem>>, vector<1x8x128xf32>,
    %c6_i32 = arith.constant 6 : i32
    %c8_i32_212 = arith.constant 8 : i32
    %524 = arith.muli %c6_i32, %c8_i32_212 : i32
    %525 = tpu.assume_multiple %524, 8 : i32
    %c7_i32_213 = arith.constant 7 : i32
    %526 = arith.subi %c7_i32_213, %c6_i32 : i32
    %c8_i32_214 = arith.constant 8 : i32
    %527 = arith.muli %526, %c8_i32_214 : i32
    %528 = tpu.assume_multiple %527, 8 : i32
    %529 = arith.index_cast %525 : i32 to index
    %c0_215 = arith.constant 0 : index
    %530 = vector.load %arg9[%529, %c0_215] : memref<64x768xf32, #tpu.memory_space<vmem>>, vector<8x384xf32>
    %c0_216 = arith.constant 0 : index
    %c0_217 = arith.constant 0 : index
    %531 = vector.load %arg10[%c0_216, %c0_217] : memref<8x128xf32, #tpu.memory_space<vmem>>, vector<8x128xf32>
    %c0_218 = arith.constant 0 : index
    %c0_219 = arith.constant 0 : index
    %532 = vector.load %arg4[%c0_218, %c0_219] : memref<128x384xf32, #tpu.memory_space<vmem>>, vector<128x384xf32>
    %cst_220 = arith.constant dense<0.000000e+00> : vector<8x384xf32>
    %533 = tpu.matmul %531, %532, %cst_220 {dimension_numbers = #tpu.dot_dimension_numbers<[1], [0], [0], [1], [0, 0, 1, 1], [], []>} : vector<8x128xf32>, vector<128x384xf32>, vector<8x384xf32> -> vector<8x384xf32>
    %534 = vector.extract_strided_slice %530 {offsets = [0, 0], sizes = [8, 128], strides = [1, 1]} : vector<8x384xf32> to vector<8x128xf32>
    %535 = vector.extract_strided_slice %533 {offsets = [0, 0], sizes = [8, 128], strides = [1, 1]} : vector<8x384xf32> to vector<8x128xf32>
    %536 = arith.addf %534, %535 : vector<8x128xf32>
    %cst_221 = arith.constant 0.000000e+00 : f32
    %537 = vector.broadcast %cst_221 : f32 to vector<8x128xf32>
    %538 = arith.subf %537, %536 : vector<8x128xf32>
    %539 = math.exp %538 : vector<8x128xf32>
    %cst_222 = arith.constant 1.000000e+00 : f32
    %540 = vector.broadcast %cst_222 : f32 to vector<8x128xf32>
    %541 = arith.addf %540, %539 : vector<8x128xf32>
    %542 = tpu.reciprocal %541 {approx = true} : vector<8x128xf32> -> vector<8x128xf32>
    %543 = vector.extract_strided_slice %530 {offsets = [0, 128], sizes = [8, 128], strides = [1, 1]} : vector<8x384xf32> to vector<8x128xf32>
    %544 = vector.extract_strided_slice %533 {offsets = [0, 128], sizes = [8, 128], strides = [1, 1]} : vector<8x384xf32> to vector<8x128xf32>
    %545 = arith.addf %543, %544 : vector<8x128xf32>
    %cst_223 = arith.constant 0.000000e+00 : f32
    %546 = vector.broadcast %cst_223 : f32 to vector<8x128xf32>
    %547 = arith.subf %546, %545 : vector<8x128xf32>
    %548 = math.exp %547 : vector<8x128xf32>
    %cst_224 = arith.constant 1.000000e+00 : f32
    %549 = vector.broadcast %cst_224 : f32 to vector<8x128xf32>
    %550 = arith.addf %549, %548 : vector<8x128xf32>
    %551 = tpu.reciprocal %550 {approx = true} : vector<8x128xf32> -> vector<8x128xf32>
    %552 = vector.extract_strided_slice %530 {offsets = [0, 256], sizes = [8, 128], strides = [1, 1]} : vector<8x384xf32> to vector<8x128xf32>
    %553 = vector.extract_strided_slice %533 {offsets = [0, 256], sizes = [8, 128], strides = [1, 1]} : vector<8x384xf32> to vector<8x128xf32>
    %554 = vector.broadcast %12 : vector<1x128xf32> to vector<8x128xf32>
    %555 = arith.addf %553, %554 : vector<8x128xf32>
    %556 = arith.mulf %542, %555 : vector<8x128xf32>
    %557 = arith.addf %552, %556 : vector<8x128xf32>
    %558 = math.tanh %557 : vector<8x128xf32>
    %cst_225 = arith.constant 1.000000e+00 : f32
    %559 = vector.broadcast %cst_225 : f32 to vector<8x128xf32>
    %560 = arith.subf %559, %551 : vector<8x128xf32>
    %561 = arith.mulf %560, %558 : vector<8x128xf32>
    %562 = arith.mulf %551, %531 : vector<8x128xf32>
    %563 = arith.addf %561, %562 : vector<8x128xf32>
    %564 = arith.index_cast %528 : i32 to index
    %c384_226 = arith.constant 384 : index
    %565 = vector.load %arg9[%564, %c384_226] : memref<64x768xf32, #tpu.memory_space<vmem>>, vector<8x384xf32>
    %c0_227 = arith.constant 0 : index
    %c0_228 = arith.constant 0 : index
    %566 = vector.load %arg11[%c0_227, %c0_228] : memref<8x128xf32, #tpu.memory_space<vmem>>, vector<8x128xf32>
    %c0_229 = arith.constant 0 : index
    %c0_230 = arith.constant 0 : index
    %567 = vector.load %arg5[%c0_229, %c0_230] : memref<128x384xf32, #tpu.memory_space<vmem>>, vector<128x384xf32>
    %cst_231 = arith.constant dense<0.000000e+00> : vector<8x384xf32>
    %568 = tpu.matmul %566, %567, %cst_231 {dimension_numbers = #tpu.dot_dimension_numbers<[1], [0], [0], [1], [0, 0, 1, 1], [], []>} : vector<8x128xf32>, vector<128x384xf32>, vector<8x384xf32> -> vector<8x384xf32>
    %569 = vector.extract_strided_slice %565 {offsets = [0, 0], sizes = [8, 128], strides = [1, 1]} : vector<8x384xf32> to vector<8x128xf32>
    %570 = vector.extract_strided_slice %568 {offsets = [0, 0], sizes = [8, 128], strides = [1, 1]} : vector<8x384xf32> to vector<8x128xf32>
    %571 = arith.addf %569, %570 : vector<8x128xf32>
    %cst_232 = arith.constant 0.000000e+00 : f32
    %572 = vector.broadcast %cst_232 : f32 to vector<8x128xf32>
    %573 = arith.subf %572, %571 : vector<8x128xf32>
    %574 = math.exp %573 : vector<8x128xf32>
    %cst_233 = arith.constant 1.000000e+00 : f32
    %575 = vector.broadcast %cst_233 : f32 to vector<8x128xf32>
    %576 = arith.addf %575, %574 : vector<8x128xf32>
    %577 = tpu.reciprocal %576 {approx = true} : vector<8x128xf32> -> vector<8x128xf32>
    %578 = vector.extract_strided_slice %565 {offsets = [0, 128], sizes = [8, 128], strides = [1, 1]} : vector<8x384xf32> to vector<8x128xf32>
    %579 = vector.extract_strided_slice %568 {offsets = [0, 128], sizes = [8, 128], strides = [1, 1]} : vector<8x384xf32> to vector<8x128xf32>
    %580 = arith.addf %578, %579 : vector<8x128xf32>
    %cst_234 = arith.constant 0.000000e+00 : f32
    %581 = vector.broadcast %cst_234 : f32 to vector<8x128xf32>
    %582 = arith.subf %581, %580 : vector<8x128xf32>
    %583 = math.exp %582 : vector<8x128xf32>
    %cst_235 = arith.constant 1.000000e+00 : f32
    %584 = vector.broadcast %cst_235 : f32 to vector<8x128xf32>
    %585 = arith.addf %584, %583 : vector<8x128xf32>
    %586 = tpu.reciprocal %585 {approx = true} : vector<8x128xf32> -> vector<8x128xf32>
    %587 = vector.extract_strided_slice %565 {offsets = [0, 256], sizes = [8, 128], strides = [1, 1]} : vector<8x384xf32> to vector<8x128xf32>
    %588 = vector.extract_strided_slice %568 {offsets = [0, 256], sizes = [8, 128], strides = [1, 1]} : vector<8x384xf32> to vector<8x128xf32>
    %589 = vector.broadcast %13 : vector<1x128xf32> to vector<8x128xf32>
    %590 = arith.addf %588, %589 : vector<8x128xf32>
    %591 = arith.mulf %577, %590 : vector<8x128xf32>
    %592 = arith.addf %587, %591 : vector<8x128xf32>
    %593 = math.tanh %592 : vector<8x128xf32>
    %cst_236 = arith.constant 1.000000e+00 : f32
    %594 = vector.broadcast %cst_236 : f32 to vector<8x128xf32>
    %595 = arith.subf %594, %586 : vector<8x128xf32>
    %596 = arith.mulf %595, %593 : vector<8x128xf32>
    %597 = arith.mulf %586, %566 : vector<8x128xf32>
    %598 = arith.addf %596, %597 : vector<8x128xf32>
    %c0_237 = arith.constant 0 : index
    %c0_238 = arith.constant 0 : index
    %599 = vector.load %arg10[%c0_237, %c0_238] : memref<8x128xf32, #tpu.memory_space<vmem>>, vector<8x128xf32>
    tpu.vector_store %arg10[%c0_237, %c0_238], %563 {strides = array<i32>} : memref<8x128xf32, #tpu.memory_space<vmem>>, vector<8x128xf32>,
    %c0_239 = arith.constant 0 : index
    %c0_240 = arith.constant 0 : index
    %600 = vector.load %arg11[%c0_239, %c0_240] : memref<8x128xf32, #tpu.memory_space<vmem>>, vector<8x128xf32>
    tpu.vector_store %arg11[%c0_239, %c0_240], %598 {strides = array<i32>} : memref<8x128xf32, #tpu.memory_space<vmem>>, vector<8x128xf32>,
    %c0_241 = arith.constant 0 : index
    %601 = arith.index_cast %525 : i32 to index
    %c0_242 = arith.constant 0 : index
    %602 = vector.load %arg8[%c0_241, %601, %c0_242] : memref<1x64x256xf32, #tpu.memory_space<vmem>>, vector<1x8x128xf32>
    %603 = vector.shape_cast %602 : vector<1x8x128xf32> to vector<8x128xf32>
    %604 = vector.shape_cast %563 : vector<8x128xf32> to vector<1x8x128xf32>
    tpu.vector_store %arg8[%c0_241, %601, %c0_242], %604 {strides = array<i32>} : memref<1x64x256xf32, #tpu.memory_space<vmem>>, vector<1x8x128xf32>,
    %c0_243 = arith.constant 0 : index
    %605 = arith.index_cast %528 : i32 to index
    %c128_244 = arith.constant 128 : index
    %606 = vector.load %arg8[%c0_243, %605, %c128_244] : memref<1x64x256xf32, #tpu.memory_space<vmem>>, vector<1x8x128xf32>
    %607 = vector.shape_cast %606 : vector<1x8x128xf32> to vector<8x128xf32>
    %608 = vector.shape_cast %598 : vector<8x128xf32> to vector<1x8x128xf32>
    tpu.vector_store %arg8[%c0_243, %605, %c128_244], %608 {strides = array<i32>} : memref<1x64x256xf32, #tpu.memory_space<vmem>>, vector<1x8x128xf32>,
    %c7_i32_245 = arith.constant 7 : i32
    %c8_i32_246 = arith.constant 8 : i32
    %609 = arith.muli %c7_i32_245, %c8_i32_246 : i32
    %610 = tpu.assume_multiple %609, 8 : i32
    %c7_i32_247 = arith.constant 7 : i32
    %611 = arith.subi %c7_i32_247, %c7_i32_245 : i32
    %c8_i32_248 = arith.constant 8 : i32
    %612 = arith.muli %611, %c8_i32_248 : i32
    %613 = tpu.assume_multiple %612, 8 : i32
    %614 = arith.index_cast %610 : i32 to index
    %c0_249 = arith.constant 0 : index
    %615 = vector.load %arg9[%614, %c0_249] : memref<64x768xf32, #tpu.memory_space<vmem>>, vector<8x384xf32>
    %c0_250 = arith.constant 0 : index
    %c0_251 = arith.constant 0 : index
    %616 = vector.load %arg10[%c0_250, %c0_251] : memref<8x128xf32, #tpu.memory_space<vmem>>, vector<8x128xf32>
    %c0_252 = arith.constant 0 : index
    %c0_253 = arith.constant 0 : index
    %617 = vector.load %arg4[%c0_252, %c0_253] : memref<128x384xf32, #tpu.memory_space<vmem>>, vector<128x384xf32>
    %cst_254 = arith.constant dense<0.000000e+00> : vector<8x384xf32>
    %618 = tpu.matmul %616, %617, %cst_254 {dimension_numbers = #tpu.dot_dimension_numbers<[1], [0], [0], [1], [0, 0, 1, 1], [], []>} : vector<8x128xf32>, vector<128x384xf32>, vector<8x384xf32> -> vector<8x384xf32>
    %619 = vector.extract_strided_slice %615 {offsets = [0, 0], sizes = [8, 128], strides = [1, 1]} : vector<8x384xf32> to vector<8x128xf32>
    %620 = vector.extract_strided_slice %618 {offsets = [0, 0], sizes = [8, 128], strides = [1, 1]} : vector<8x384xf32> to vector<8x128xf32>
    %621 = arith.addf %619, %620 : vector<8x128xf32>
    %cst_255 = arith.constant 0.000000e+00 : f32
    %622 = vector.broadcast %cst_255 : f32 to vector<8x128xf32>
    %623 = arith.subf %622, %621 : vector<8x128xf32>
    %624 = math.exp %623 : vector<8x128xf32>
    %cst_256 = arith.constant 1.000000e+00 : f32
    %625 = vector.broadcast %cst_256 : f32 to vector<8x128xf32>
    %626 = arith.addf %625, %624 : vector<8x128xf32>
    %627 = tpu.reciprocal %626 {approx = true} : vector<8x128xf32> -> vector<8x128xf32>
    %628 = vector.extract_strided_slice %615 {offsets = [0, 128], sizes = [8, 128], strides = [1, 1]} : vector<8x384xf32> to vector<8x128xf32>
    %629 = vector.extract_strided_slice %618 {offsets = [0, 128], sizes = [8, 128], strides = [1, 1]} : vector<8x384xf32> to vector<8x128xf32>
    %630 = arith.addf %628, %629 : vector<8x128xf32>
    %cst_257 = arith.constant 0.000000e+00 : f32
    %631 = vector.broadcast %cst_257 : f32 to vector<8x128xf32>
    %632 = arith.subf %631, %630 : vector<8x128xf32>
    %633 = math.exp %632 : vector<8x128xf32>
    %cst_258 = arith.constant 1.000000e+00 : f32
    %634 = vector.broadcast %cst_258 : f32 to vector<8x128xf32>
    %635 = arith.addf %634, %633 : vector<8x128xf32>
    %636 = tpu.reciprocal %635 {approx = true} : vector<8x128xf32> -> vector<8x128xf32>
    %637 = vector.extract_strided_slice %615 {offsets = [0, 256], sizes = [8, 128], strides = [1, 1]} : vector<8x384xf32> to vector<8x128xf32>
    %638 = vector.extract_strided_slice %618 {offsets = [0, 256], sizes = [8, 128], strides = [1, 1]} : vector<8x384xf32> to vector<8x128xf32>
    %639 = vector.broadcast %12 : vector<1x128xf32> to vector<8x128xf32>
    %640 = arith.addf %638, %639 : vector<8x128xf32>
    %641 = arith.mulf %627, %640 : vector<8x128xf32>
    %642 = arith.addf %637, %641 : vector<8x128xf32>
    %643 = math.tanh %642 : vector<8x128xf32>
    %cst_259 = arith.constant 1.000000e+00 : f32
    %644 = vector.broadcast %cst_259 : f32 to vector<8x128xf32>
    %645 = arith.subf %644, %636 : vector<8x128xf32>
    %646 = arith.mulf %645, %643 : vector<8x128xf32>
    %647 = arith.mulf %636, %616 : vector<8x128xf32>
    %648 = arith.addf %646, %647 : vector<8x128xf32>
    %649 = arith.index_cast %613 : i32 to index
    %c384_260 = arith.constant 384 : index
    %650 = vector.load %arg9[%649, %c384_260] : memref<64x768xf32, #tpu.memory_space<vmem>>, vector<8x384xf32>
    %c0_261 = arith.constant 0 : index
    %c0_262 = arith.constant 0 : index
    %651 = vector.load %arg11[%c0_261, %c0_262] : memref<8x128xf32, #tpu.memory_space<vmem>>, vector<8x128xf32>
    %c0_263 = arith.constant 0 : index
    %c0_264 = arith.constant 0 : index
    %652 = vector.load %arg5[%c0_263, %c0_264] : memref<128x384xf32, #tpu.memory_space<vmem>>, vector<128x384xf32>
    %cst_265 = arith.constant dense<0.000000e+00> : vector<8x384xf32>
    %653 = tpu.matmul %651, %652, %cst_265 {dimension_numbers = #tpu.dot_dimension_numbers<[1], [0], [0], [1], [0, 0, 1, 1], [], []>} : vector<8x128xf32>, vector<128x384xf32>, vector<8x384xf32> -> vector<8x384xf32>
    %654 = vector.extract_strided_slice %650 {offsets = [0, 0], sizes = [8, 128], strides = [1, 1]} : vector<8x384xf32> to vector<8x128xf32>
    %655 = vector.extract_strided_slice %653 {offsets = [0, 0], sizes = [8, 128], strides = [1, 1]} : vector<8x384xf32> to vector<8x128xf32>
    %656 = arith.addf %654, %655 : vector<8x128xf32>
    %cst_266 = arith.constant 0.000000e+00 : f32
    %657 = vector.broadcast %cst_266 : f32 to vector<8x128xf32>
    %658 = arith.subf %657, %656 : vector<8x128xf32>
    %659 = math.exp %658 : vector<8x128xf32>
    %cst_267 = arith.constant 1.000000e+00 : f32
    %660 = vector.broadcast %cst_267 : f32 to vector<8x128xf32>
    %661 = arith.addf %660, %659 : vector<8x128xf32>
    %662 = tpu.reciprocal %661 {approx = true} : vector<8x128xf32> -> vector<8x128xf32>
    %663 = vector.extract_strided_slice %650 {offsets = [0, 128], sizes = [8, 128], strides = [1, 1]} : vector<8x384xf32> to vector<8x128xf32>
    %664 = vector.extract_strided_slice %653 {offsets = [0, 128], sizes = [8, 128], strides = [1, 1]} : vector<8x384xf32> to vector<8x128xf32>
    %665 = arith.addf %663, %664 : vector<8x128xf32>
    %cst_268 = arith.constant 0.000000e+00 : f32
    %666 = vector.broadcast %cst_268 : f32 to vector<8x128xf32>
    %667 = arith.subf %666, %665 : vector<8x128xf32>
    %668 = math.exp %667 : vector<8x128xf32>
    %cst_269 = arith.constant 1.000000e+00 : f32
    %669 = vector.broadcast %cst_269 : f32 to vector<8x128xf32>
    %670 = arith.addf %669, %668 : vector<8x128xf32>
    %671 = tpu.reciprocal %670 {approx = true} : vector<8x128xf32> -> vector<8x128xf32>
    %672 = vector.extract_strided_slice %650 {offsets = [0, 256], sizes = [8, 128], strides = [1, 1]} : vector<8x384xf32> to vector<8x128xf32>
    %673 = vector.extract_strided_slice %653 {offsets = [0, 256], sizes = [8, 128], strides = [1, 1]} : vector<8x384xf32> to vector<8x128xf32>
    %674 = vector.broadcast %13 : vector<1x128xf32> to vector<8x128xf32>
    %675 = arith.addf %673, %674 : vector<8x128xf32>
    %676 = arith.mulf %662, %675 : vector<8x128xf32>
    %677 = arith.addf %672, %676 : vector<8x128xf32>
    %678 = math.tanh %677 : vector<8x128xf32>
    %cst_270 = arith.constant 1.000000e+00 : f32
    %679 = vector.broadcast %cst_270 : f32 to vector<8x128xf32>
    %680 = arith.subf %679, %671 : vector<8x128xf32>
    %681 = arith.mulf %680, %678 : vector<8x128xf32>
    %682 = arith.mulf %671, %651 : vector<8x128xf32>
    %683 = arith.addf %681, %682 : vector<8x128xf32>
    %c0_271 = arith.constant 0 : index
    %c0_272 = arith.constant 0 : index
    %684 = vector.load %arg10[%c0_271, %c0_272] : memref<8x128xf32, #tpu.memory_space<vmem>>, vector<8x128xf32>
    tpu.vector_store %arg10[%c0_271, %c0_272], %648 {strides = array<i32>} : memref<8x128xf32, #tpu.memory_space<vmem>>, vector<8x128xf32>,
    %c0_273 = arith.constant 0 : index
    %c0_274 = arith.constant 0 : index
    %685 = vector.load %arg11[%c0_273, %c0_274] : memref<8x128xf32, #tpu.memory_space<vmem>>, vector<8x128xf32>
    tpu.vector_store %arg11[%c0_273, %c0_274], %683 {strides = array<i32>} : memref<8x128xf32, #tpu.memory_space<vmem>>, vector<8x128xf32>,
    %c0_275 = arith.constant 0 : index
    %686 = arith.index_cast %610 : i32 to index
    %c0_276 = arith.constant 0 : index
    %687 = vector.load %arg8[%c0_275, %686, %c0_276] : memref<1x64x256xf32, #tpu.memory_space<vmem>>, vector<1x8x128xf32>
    %688 = vector.shape_cast %687 : vector<1x8x128xf32> to vector<8x128xf32>
    %689 = vector.shape_cast %648 : vector<8x128xf32> to vector<1x8x128xf32>
    tpu.vector_store %arg8[%c0_275, %686, %c0_276], %689 {strides = array<i32>} : memref<1x64x256xf32, #tpu.memory_space<vmem>>, vector<1x8x128xf32>,
    %c0_277 = arith.constant 0 : index
    %690 = arith.index_cast %613 : i32 to index
    %c128_278 = arith.constant 128 : index
    %691 = vector.load %arg8[%c0_277, %690, %c128_278] : memref<1x64x256xf32, #tpu.memory_space<vmem>>, vector<1x8x128xf32>
    %692 = vector.shape_cast %691 : vector<1x8x128xf32> to vector<8x128xf32>
    %693 = vector.shape_cast %683 : vector<8x128xf32> to vector<1x8x128xf32>
    tpu.vector_store %arg8[%c0_277, %690, %c128_278], %693 {strides = array<i32>} : memref<1x64x256xf32, #tpu.memory_space<vmem>>, vector<1x8x128xf32>,
    %c8_i32_279 = arith.constant 8 : i32
    return
  }
  func.func @transform_0(%arg0: i32) -> (i32, i32, i32) {
    %c0_i32 = arith.constant 0 : i32
    %c0_i32_0 = arith.constant 0 : i32
    %c0_i32_1 = arith.constant 0 : i32
    return %arg0, %c0_i32, %c0_i32_0 : i32, i32, i32
  }
  func.func @transform_1(%arg0: i32) -> (i32, i32) {
    %c0_i32 = arith.constant 0 : i32
    %c0_i32_0 = arith.constant 0 : i32
    %c0_i32_1 = arith.constant 0 : i32
    return %c0_i32, %c0_i32_0 : i32, i32
  }
  func.func @transform_2(%arg0: i32) -> (i32, i32) {
    %c0_i32 = arith.constant 0 : i32
    %c0_i32_0 = arith.constant 0 : i32
    %c0_i32_1 = arith.constant 0 : i32
    return %c0_i32, %c0_i32_0 : i32, i32
  }
  func.func @transform_3(%arg0: i32) -> (i32, i32) {
    %c0_i32 = arith.constant 0 : i32
    %c0_i32_0 = arith.constant 0 : i32
    %c0_i32_1 = arith.constant 0 : i32
    return %c0_i32, %c0_i32_0 : i32, i32
  }
  func.func @transform_4(%arg0: i32) -> (i32, i32) {
    %c0_i32 = arith.constant 0 : i32
    %c0_i32_0 = arith.constant 0 : i32
    %c0_i32_1 = arith.constant 0 : i32
    return %c0_i32, %c0_i32_0 : i32, i32
  }
  func.func @transform_5(%arg0: i32) -> (i32, i32) {
    %c0_i32 = arith.constant 0 : i32
    %c0_i32_0 = arith.constant 0 : i32
    %c0_i32_1 = arith.constant 0 : i32
    return %c0_i32, %c0_i32_0 : i32, i32
  }
  func.func @transform_6(%arg0: i32) -> (i32, i32) {
    %c0_i32 = arith.constant 0 : i32
    %c0_i32_0 = arith.constant 0 : i32
    %c0_i32_1 = arith.constant 0 : i32
    return %c0_i32, %c0_i32_0 : i32, i32
  }
  func.func @transform_7(%arg0: i32) -> (i32, i32, i32) {
    %c0_i32 = arith.constant 0 : i32
    %c0_i32_0 = arith.constant 0 : i32
    %c0_i32_1 = arith.constant 0 : i32
    return %arg0, %c0_i32, %c0_i32_0 : i32, i32, i32
  }
}

</mosaic_0001>

<llo_original>
// kernel: tpu_custom_call.1
$region0: #{tpu_custom_call.1}
  #allocation0 [shape = 'u32[]', space=smem, size = 0x4, offset = 0x4, fixed_abs, tag = 'smem constant byte address 0x4 - core index']
  #allocation1 [shape = 'u32[144,128]{1,0:T(1,128)}', space=vmem, size = 0x12000, scoped, tag = 'internal scratch']
  #allocation2 [shape = 'f32[64,768]{1,0:T(8,128)}', space=vmem, size = 0x30000, scoped, tag = 'scratch operand']
  #allocation3 [shape = 'f32[8,128]{1,0:T(8,128)}', space=vmem, size = 0x1000, scoped, tag = 'scratch operand']
  #allocation4 [shape = 'f32[8,128]{1,0:T(8,128)}', space=vmem, size = 0x1000, scoped, tag = 'scratch operand']
  %s0 = inlined_call_operand.vmem [shape: bf16[1,64,32], index: 0, kind: input, shape index: {}]
  %s1 = inlined_call_operand.hbm [shape: bf16[32,768], index: 1, kind: input, shape index: {}]
  %s2 = inlined_call_operand.vmem [shape: f32[1,768], index: 2, kind: input, shape index: {}]
  %s3 = inlined_call_operand.hbm [shape: f32[128,384], index: 3, kind: input, shape index: {}]
  %s4 = inlined_call_operand.hbm [shape: f32[128,384], index: 4, kind: input, shape index: {}]
  %s5 = inlined_call_operand.vmem [shape: f32[1,128], index: 5, kind: input, shape index: {}]
  %s6 = inlined_call_operand.vmem [shape: f32[1,128], index: 6, kind: input, shape index: {}]
  %s7 = inlined_call_operand.hbm [shape: f32[1,64,256], index: 7, kind: output, shape index: {}]
  %s8 = sld [smem:[#allocation0]]
  $region50: #{tpu_custom_call.1} parent=0
    _
  %s10 = ssub.s32 1, %s8
  %s11 = scalar_select 0, %s10, %s8
  $region1: #{tpu_custom_call.1} parent=0
    #allocation5 [shape = 'u8[49152]{0}', space=vmem, size = 0xc000, scoped, tag = 'input window, operand 1, single buffered']
    #allocation6 [shape = 's32[1]{0}', space=sflag, size = 0x4, scoped, tag = 'scoped memory for tpu_custom_call.1']
    #allocation7 [shape = 's32[1]{0}', space=sflag, size = 0x4, scoped, tag = 'scoped memory for tpu_custom_call.1']
    #allocation8 [shape = 'u8[196608]{0}', space=vmem, size = 0x30000, scoped, tag = 'input window, operand 3, single buffered']
    #allocation9 [shape = 's32[1]{0}', space=sflag, size = 0x4, scoped, tag = 'scoped memory for tpu_custom_call.1']
    #allocation10 [shape = 'u8[196608]{0}', space=vmem, size = 0x30000, scoped, tag = 'input window, operand 4, single buffered']
    #allocation11 [shape = 'u8[65536]{0}', space=vmem, size = 0x10000, scoped, tag = 'output window, operand 0, single buffered']
    %12 = vsyncpa [#allocation6], 0
    %13 = vsyncpa [#allocation9], 0
    %14 = vsyncpa [#allocation7], 0
    // Predicated region
    $region2: #{tpu_custom_call.1} parent=1 // pred_check
      _
    $region3: #{tpu_custom_call.1} parent=1 // pred_check_branch
      %16 = sbr.rel (0) target = $region5
    $region4: #{tpu_custom_call.1} parent=1 // pred_region
      _
    $region5: #{tpu_custom_call.1} parent=1 // pred_fallthru
      _
    // Predicated region
    $region6: #{tpu_custom_call.1} parent=1 // pred_check
      _
    $region7: #{tpu_custom_call.1} parent=1 // pred_check_branch
      %18 = sbr.rel (0) target = $region9
    $region8: #{tpu_custom_call.1} parent=1 // pred_region
      %s20 = ssub.s32 1536, 1536
      %21 = vsyncadd [#allocation6], %s20
      %s22 = sshll.u32 [#allocation5], 4
      %s23 = int_to_ptr.vmem [resolvable:$true] %s22
      %28 = dma.hbm_to_vmem [thread:$0]  %s1, 1536, %s23, [#allocation6], 384, 384, 24
    $region9: #{tpu_custom_call.1} parent=1 // pred_fallthru
      _
    // Predicated region
    $region10: #{tpu_custom_call.1} parent=1 // pred_check
      _
    $region11: #{tpu_custom_call.1} parent=1 // pred_check_branch
      %30 = sbr.rel (0) target = $region13
    $region12: #{tpu_custom_call.1} parent=1 // pred_region
      _
    $region13: #{tpu_custom_call.1} parent=1 // pred_fallthru
      _
    // Predicated region
    $region14: #{tpu_custom_call.1} parent=1 // pred_check
      _
    $region15: #{tpu_custom_call.1} parent=1 // pred_check_branch
      %32 = sbr.rel (0) target = $region17
    $region16: #{tpu_custom_call.1} parent=1 // pred_region
      %s34 = ssub.s32 6144, 6144
      %35 = vsyncadd [#allocation9], %s34
      %s36 = sshll.u32 [#allocation8], 4
      %s37 = int_to_ptr.vmem [resolvable:$true] %s36
      %42 = dma.hbm_to_vmem [thread:$0]  %s3, 6144, %s37, [#allocation9], 384, 384, 24
    $region17: #{tpu_custom_call.1} parent=1 // pred_fallthru
      _
    // Predicated region
    $region18: #{tpu_custom_call.1} parent=1 // pred_check
      _
    $region19: #{tpu_custom_call.1} parent=1 // pred_check_branch
      %44 = sbr.rel (0) target = $region21
    $region20: #{tpu_custom_call.1} parent=1 // pred_region
      %s46 = ssub.s32 6144, 6144
      %47 = vsyncadd [#allocation9], %s46
      %s48 = sshll.u32 [#allocation10], 4
      %s49 = int_to_ptr.vmem [resolvable:$true] %s48
      %54 = dma.hbm_to_vmem [thread:$0]  %s4, 6144, %s49, [#allocation9], 384, 384, 24
    $region21: #{tpu_custom_call.1} parent=1 // pred_fallthru
      _
    // Predicated region
    $region22: #{tpu_custom_call.1} parent=1 // pred_check
      _
    $region23: #{tpu_custom_call.1} parent=1 // pred_check_branch
      %56 = sbr.rel (0) target = $region25
    $region24: #{tpu_custom_call.1} parent=1 // pred_region
      _
    $region25: #{tpu_custom_call.1} parent=1 // pred_fallthru
      _
    // Predicated region
    $region26: #{tpu_custom_call.1} parent=1 // pred_check
      _
    $region27: #{tpu_custom_call.1} parent=1 // pred_check_branch
      %58 = sbr.rel (0) target = $region29
    $region28: #{tpu_custom_call.1} parent=1 // pred_region
      _
    $region29: #{tpu_custom_call.1} parent=1 // pred_fallthru
      _
    // Predicated region
    $region30: #{tpu_custom_call.1} parent=1 // pred_check
      _
    $region31: #{tpu_custom_call.1} parent=1 // pred_check_branch
      %60 = sbr.rel (0) target = $region33
    $region32: #{tpu_custom_call.1} parent=1 // pred_region
      %61 = dma.done [#allocation6], 1536
    $region33: #{tpu_custom_call.1} parent=1 // pred_fallthru
      _
    // Predicated region
    $region34: #{tpu_custom_call.1} parent=1 // pred_check
      _
    $region35: #{tpu_custom_call.1} parent=1 // pred_check_branch
      %63 = sbr.rel (0) target = $region37
    $region36: #{tpu_custom_call.1} parent=1 // pred_region
      %64 = dma.done [#allocation9], 6144
    $region37: #{tpu_custom_call.1} parent=1 // pred_fallthru
      _
    // Predicated region
    $region38: #{tpu_custom_call.1} parent=1 // pred_check
      _
    $region39: #{tpu_custom_call.1} parent=1 // pred_check_branch
      %66 = sbr.rel (0) target = $region41
    $region40: #{tpu_custom_call.1} parent=1 // pred_region
      %67 = dma.done [#allocation9], 6144
    $region41: #{tpu_custom_call.1} parent=1 // pred_fallthru
      _
    %v69 = vld [vmem:[%s0] sm:$0xf]
    %v70 = vld [vmem:[%s0 + $0x4] sm:$0xf]
    %v71 = vld [vmem:[%s0 + $0x8] sm:$0xf]
    %v72 = vld [vmem:[%s0 + $0xc] sm:$0xf]
    %v73 = vld [vmem:[%s0 + $0x10] sm:$0xf]
    %v74 = vld [vmem:[%s0 + $0x14] sm:$0xf]
    %v75 = vld [vmem:[%s0 + $0x18] sm:$0xf]
    %v76 = vld [vmem:[%s0 + $0x1c] sm:$0xf]
    %v77 = vld [vmem:[#allocation5] sm:$0xff]
    %v78 = vld [vmem:[#allocation5 + $0x8] sm:$0xff]
    %v79 = vld [vmem:[#allocation5 + $0x10] sm:$0xff]
    %v80 = vld [vmem:[#allocation5 + $0x18] sm:$0xff]
    %v81 = vld [vmem:[#allocation5 + $0x20] sm:$0xff]
    %v82 = vld [vmem:[#allocation5 + $0x28] sm:$0xff]
    %v83 = vld [vmem:[#allocation5 + $0x30] sm:$0xff]
    %v84 = vld [vmem:[#allocation5 + $0x38] sm:$0xff]
    %v85 = vld [vmem:[#allocation5 + $0x40] sm:$0xff]
    %v86 = vld [vmem:[#allocation5 + $0x48] sm:$0xff]
    %v87 = vld [vmem:[#allocation5 + $0x50] sm:$0xff]
    %v88 = vld [vmem:[#allocation5 + $0x58] sm:$0xff]
    %v89 = vld [vmem:[%s2] sm:$0x3f]
    %v91 = vlaneseq
    %v92 = vshrl.u32 %v91, 7
    %v93 = vsub.s32 0, %v92
    %v94 = vrot.slane %v89, %v93
    %v95 = vlaneseq
    %v96 = vshrl.u32 %v95, 7
    %v97 = vsub.s32 1, %v96
    %v98 = vrot.slane %v89, %v97
    %v99 = vlaneseq
    %v100 = vshrl.u32 %v99, 7
    %v101 = vsub.s32 2, %v100
    %v102 = vrot.slane %v89, %v101
    %v103 = vlaneseq
    %v104 = vshrl.u32 %v103, 7
    %v105 = vsub.s32 3, %v104
    %v106 = vrot.slane %v89, %v105
    %v107 = vlaneseq
    %v108 = vshrl.u32 %v107, 7
    %v109 = vsub.s32 4, %v108
    %v110 = vrot.slane %v89, %v109
    %v111 = vlaneseq
    %v112 = vshrl.u32 %v111, 7
    %v113 = vsub.s32 5, %v112
    %v114 = vrot.slane %v89, %v113
    %v129 = vunpack.c.l.b16 %v69
    %v130 = vunpack.c.l.b16 %v70
    %v131 = vunpack.c.l.b16 %v71
    %v132 = vunpack.c.l.b16 %v72
    %v133 = vunpack.c.l.b16 %v73
    %v134 = vunpack.c.l.b16 %v74
    %v135 = vunpack.c.l.b16 %v75
    %v136 = vunpack.c.l.b16 %v76
    %v137 = vpack.c.b16 %v130, %v129
    %v138 = vpack.c.b16 %v132, %v131
    %v139 = vpack.c.b16 %v134, %v133
    %v140 = vpack.c.b16 %v136, %v135
    %v153 = vunpack.c.l.b16 %v77
    %v154 = vunpack.c.h.b16 %v77
    %v155 = vunpack.c.l.b16 %v78
    %v156 = vunpack.c.h.b16 %v78
    %v157 = vunpack.c.l.b16 %v79
    %v158 = vunpack.c.h.b16 %v79
    %v159 = vunpack.c.l.b16 %v80
    %v160 = vunpack.c.h.b16 %v80
    %v161 = vunpack.c.l.b16 %v81
    %v162 = vunpack.c.h.b16 %v81
    %v163 = vunpack.c.l.b16 %v82
    %v164 = vunpack.c.h.b16 %v82
    %v165 = vunpack.c.l.b16 %v83
    %v166 = vunpack.c.h.b16 %v83
    %v167 = vunpack.c.l.b16 %v84
    %v168 = vunpack.c.h.b16 %v84
    %v169 = vunpack.c.l.b16 %v85
    %v170 = vunpack.c.h.b16 %v85
    %v171 = vunpack.c.l.b16 %v86
    %v172 = vunpack.c.h.b16 %v86
    %v173 = vunpack.c.l.b16 %v87
    %v174 = vunpack.c.h.b16 %v87
    %v175 = vunpack.c.l.b16 %v88
    %v176 = vunpack.c.h.b16 %v88
    %v177 = vpack.c.b16 %v159, %v153
    %v178 = vpack.c.b16 %v160, %v154
    %v179 = vpack.c.b16 %v161, %v155
    %v180 = vpack.c.b16 %v162, %v156
    %v181 = vpack.c.b16 %v163, %v157
    %v182 = vpack.c.b16 %v164, %v158
    %v183 = vpack.c.b16 %v171, %v165
    %v184 = vpack.c.b16 %v172, %v166
    %v185 = vpack.c.b16 %v173, %v167
    %v186 = vpack.c.b16 %v174, %v168
    %v187 = vpack.c.b16 %v175, %v169
    %v188 = vpack.c.b16 %v176, %v170
    %vm201 = vcmask 261120
    %v203 = vsel %vm201, %v137, 0
    %v206 = vsel %vm201, %v138, 0
    %v209 = vsel %vm201, %v139, 0
    %v212 = vsel %vm201, %v140, 0
    %214 = vmatprep.subr.bf16.mxu0 0
    %215 = vmatpush1.bf16.msra.mxu0 0
    %216 = vmatprep.subr.bf16.mxu0 0
    %217 = vmatpush1.bf16.msra.mxu0 0
    %218 = vmatprep.subr.bf16.mxu0 0
    %219 = vmatpush1.bf16.msra.mxu0 0
    %220 = vmatprep.subr.bf16.mxu0 0
    %221 = vmatpush1.bf16.msra.mxu0 0
    %222 = vmatprep.subr.bf16.mxu0 0
    %223 = vmatpush1.bf16.msra.mxu0 0
    %224 = vmatprep.subr.bf16.mxu0 0
    %225 = vmatpush1.bf16.msra.mxu0 0
    %226 = vmatprep.subr.bf16.mxu0 %v184
    %227 = vmatpush1.bf16.msra.mxu0 %v183
    %228 = vmatprep.subr.bf16.mxu0 %v178
    %229 = vmatpush1.bf16.msra.mxu0 %v177
    %230 = vmatprep.subr.bf16.mxu0 0
    %231 = vmatpush2.bf16.msra.mxu0 0
    %232 = vmatprep.subr.bf16.mxu0 0
    %233 = vmatpush2.bf16.msra.mxu0 0
    %234 = vmatprep.subr.bf16.mxu0 0
    %235 = vmatpush2.bf16.msra.mxu0 0
    %236 = vmatprep.subr.bf16.mxu0 0
    %237 = vmatpush2.bf16.msra.mxu0 0
    %238 = vmatprep.subr.bf16.mxu0 0
    %239 = vmatpush2.bf16.msra.mxu0 0
    %240 = vmatprep.subr.bf16.mxu0 0
    %241 = vmatpush2.bf16.msra.mxu0 0
    %242 = vmatprep.subr.bf16.mxu0 0
    %243 = vmatpush2.bf16.msra.mxu0 0
    %244 = vmatprep.subr.bf16.mxu0 0
    %245 = vmatpush2.bf16.msra.mxu0 0
    %246 = vmatprep.mubr.bf16.mxu0 0
    %247 = vmatmul.mubr.bf16.gmra.mxu0 %v203
    %v248 = vpop.f32.mrf.mxu0
    %v249 = vadd.f32 %v94, %v248
    %v250 = vpop.f32.mrf.mxu0
    %v251 = vadd.f32 %v98, %v250
    %v252 = vpop.f32.mrf.mxu0
    %v253 = vadd.f32 %v94, %v252
    %v254 = vpop.f32.mrf.mxu0
    %v255 = vadd.f32 %v98, %v254
    %256 = vmatprep.mubr.bf16.mxu0 0
    %257 = vmatmul.mubr.bf16.gmra.mxu0 %v206
    %v258 = vpop.f32.mrf.mxu0
    %v259 = vadd.f32 %v94, %v258
    %v260 = vpop.f32.mrf.mxu0
    %v261 = vadd.f32 %v98, %v260
    %v262 = vpop.f32.mrf.mxu0
    %v263 = vadd.f32 %v94, %v262
    %v264 = vpop.f32.mrf.mxu0
    %v265 = vadd.f32 %v98, %v264
    %266 = vmatprep.mubr.bf16.mxu0 0
    %267 = vmatmul.mubr.bf16.gmra.mxu0 %v209
    %v268 = vpop.f32.mrf.mxu0
    %v269 = vadd.f32 %v94, %v268
    %v270 = vpop.f32.mrf.mxu0
    %v271 = vadd.f32 %v98, %v270
    %v272 = vpop.f32.mrf.mxu0
    %v273 = vadd.f32 %v94, %v272
    %v274 = vpop.f32.mrf.mxu0
    %v275 = vadd.f32 %v98, %v274
    %276 = vmatprep.mubr.bf16.mxu0 0
    %277 = vmatmul.mubr.bf16.gmra.mxu0 %v212
    %v278 = vpop.f32.mrf.mxu0
    %v279 = vadd.f32 %v94, %v278
    %v280 = vpop.f32.mrf.mxu0
    %v281 = vadd.f32 %v98, %v280
    %v282 = vpop.f32.mrf.mxu0
    %v283 = vadd.f32 %v94, %v282
    %v284 = vpop.f32.mrf.mxu0
    %v285 = vadd.f32 %v98, %v284
    %286 = vdwg.mxu0
    %287 = vmatprep.subr.bf16.mxu0 0
    %288 = vmatpush1.bf16.msra.mxu0 0
    %289 = vmatprep.subr.bf16.mxu0 0
    %290 = vmatpush1.bf16.msra.mxu0 0
    %291 = vmatprep.subr.bf16.mxu0 0
    %292 = vmatpush1.bf16.msra.mxu0 0
    %293 = vmatprep.subr.bf16.mxu0 0
    %294 = vmatpush1.bf16.msra.mxu0 0
    %295 = vmatprep.subr.bf16.mxu0 0
    %296 = vmatpush1.bf16.msra.mxu0 0
    %297 = vmatprep.subr.bf16.mxu0 0
    %298 = vmatpush1.bf16.msra.mxu0 0
    %299 = vmatprep.subr.bf16.mxu0 %v186
    %300 = vmatpush1.bf16.msra.mxu0 %v185
    %301 = vmatprep.subr.bf16.mxu0 %v180
    %302 = vmatpush1.bf16.msra.mxu0 %v179
    %303 = vmatprep.subr.bf16.mxu0 0
    %304 = vmatpush2.bf16.msra.mxu0 0
    %305 = vmatprep.subr.bf16.mxu0 0
    %306 = vmatpush2.bf16.msra.mxu0 0
    %307 = vmatprep.subr.bf16.mxu0 0
    %308 = vmatpush2.bf16.msra.mxu0 0
    %309 = vmatprep.subr.bf16.mxu0 0
    %310 = vmatpush2.bf16.msra.mxu0 0
    %311 = vmatprep.subr.bf16.mxu0 0
    %312 = vmatpush2.bf16.msra.mxu0 0
    %313 = vmatprep.subr.bf16.mxu0 0
    %314 = vmatpush2.bf16.msra.mxu0 0
    %315 = vmatprep.subr.bf16.mxu0 0
    %316 = vmatpush2.bf16.msra.mxu0 0
    %317 = vmatprep.subr.bf16.mxu0 0
    %318 = vmatpush2.bf16.msra.mxu0 0
    %319 = vmatprep.mubr.bf16.mxu0 0
    %320 = vmatmul.mubr.bf16.gmra.mxu0 %v203
    %v321 = vpop.f32.mrf.mxu0
    %v322 = vadd.f32 %v102, %v321
    %v323 = vpop.f32.mrf.mxu0
    %v324 = vadd.f32 %v106, %v323
    %v325 = vpop.f32.mrf.mxu0
    %v326 = vadd.f32 %v102, %v325
    %v327 = vpop.f32.mrf.mxu0
    %v328 = vadd.f32 %v106, %v327
    %329 = vmatprep.mubr.bf16.mxu0 0
    %330 = vmatmul.mubr.bf16.gmra.mxu0 %v206
    %v331 = vpop.f32.mrf.mxu0
    %v332 = vadd.f32 %v102, %v331
    %v333 = vpop.f32.mrf.mxu0
    %v334 = vadd.f32 %v106, %v333
    %v335 = vpop.f32.mrf.mxu0
    %v336 = vadd.f32 %v102, %v335
    %v337 = vpop.f32.mrf.mxu0
    %v338 = vadd.f32 %v106, %v337
    %339 = vmatprep.mubr.bf16.mxu0 0
    %340 = vmatmul.mubr.bf16.gmra.mxu0 %v209
    %v341 = vpop.f32.mrf.mxu0
    %v342 = vadd.f32 %v102, %v341
    %v343 = vpop.f32.mrf.mxu0
    %v344 = vadd.f32 %v106, %v343
    %v345 = vpop.f32.mrf.mxu0
    %v346 = vadd.f32 %v102, %v345
    %v347 = vpop.f32.mrf.mxu0
    %v348 = vadd.f32 %v106, %v347
    %349 = vmatprep.mubr.bf16.mxu0 0
    %350 = vmatmul.mubr.bf16.gmra.mxu0 %v212
    %v351 = vpop.f32.mrf.mxu0
    %v352 = vadd.f32 %v102, %v351
    %v353 = vpop.f32.mrf.mxu0
    %v354 = vadd.f32 %v106, %v353
    %v355 = vpop.f32.mrf.mxu0
    %v356 = vadd.f32 %v102, %v355
    %v357 = vpop.f32.mrf.mxu0
    %v358 = vadd.f32 %v106, %v357
    %359 = vdwg.mxu0
    %360 = vmatprep.subr.bf16.mxu0 0
    %361 = vmatpush1.bf16.msra.mxu0 0
    %362 = vmatprep.subr.bf16.mxu0 0
    %363 = vmatpush1.bf16.msra.mxu0 0
    %364 = vmatprep.subr.bf16.mxu0 0
    %365 = vmatpush1.bf16.msra.mxu0 0
    %366 = vmatprep.subr.bf16.mxu0 0
    %367 = vmatpush1.bf16.msra.mxu0 0
    %368 = vmatprep.subr.bf16.mxu0 0
    %369 = vmatpush1.bf16.msra.mxu0 0
    %370 = vmatprep.subr.bf16.mxu0 0
    %371 = vmatpush1.bf16.msra.mxu0 0
    %372 = vmatprep.subr.bf16.mxu0 %v188
    %373 = vmatpush1.bf16.msra.mxu0 %v187
    %374 = vmatprep.subr.bf16.mxu0 %v182
    %375 = vmatpush1.bf16.msra.mxu0 %v181
    %376 = vmatprep.subr.bf16.mxu0 0
    %377 = vmatpush2.bf16.msra.mxu0 0
    %378 = vmatprep.subr.bf16.mxu0 0
    %379 = vmatpush2.bf16.msra.mxu0 0
    %380 = vmatprep.subr.bf16.mxu0 0
    %381 = vmatpush2.bf16.msra.mxu0 0
    %382 = vmatprep.subr.bf16.mxu0 0
    %383 = vmatpush2.bf16.msra.mxu0 0
    %384 = vmatprep.subr.bf16.mxu0 0
    %385 = vmatpush2.bf16.msra.mxu0 0
    %386 = vmatprep.subr.bf16.mxu0 0
    %387 = vmatpush2.bf16.msra.mxu0 0
    %388 = vmatprep.subr.bf16.mxu0 0
    %389 = vmatpush2.bf16.msra.mxu0 0
    %390 = vmatprep.subr.bf16.mxu0 0
    %391 = vmatpush2.bf16.msra.mxu0 0
    %392 = vmatprep.mubr.bf16.mxu0 0
    %393 = vmatmul.mubr.bf16.gmra.mxu0 %v203
    %v394 = vpop.f32.mrf.mxu0
    %v395 = vadd.f32 %v110, %v394
    %v396 = vpop.f32.mrf.mxu0
    %v397 = vadd.f32 %v114, %v396
    %v398 = vpop.f32.mrf.mxu0
    %v399 = vadd.f32 %v110, %v398
    %v400 = vpop.f32.mrf.mxu0
    %v401 = vadd.f32 %v114, %v400
    %402 = vmatprep.mubr.bf16.mxu0 0
    %403 = vmatmul.mubr.bf16.gmra.mxu0 %v206
    %v404 = vpop.f32.mrf.mxu0
    %v405 = vadd.f32 %v110, %v404
    %v406 = vpop.f32.mrf.mxu0
    %v407 = vadd.f32 %v114, %v406
    %v408 = vpop.f32.mrf.mxu0
    %v409 = vadd.f32 %v110, %v408
    %v410 = vpop.f32.mrf.mxu0
    %v411 = vadd.f32 %v114, %v410
    %412 = vmatprep.mubr.bf16.mxu0 0
    %413 = vmatmul.mubr.bf16.gmra.mxu0 %v209
    %v414 = vpop.f32.mrf.mxu0
    %v415 = vadd.f32 %v110, %v414
    %v416 = vpop.f32.mrf.mxu0
    %v417 = vadd.f32 %v114, %v416
    %v418 = vpop.f32.mrf.mxu0
    %v419 = vadd.f32 %v110, %v418
    %v420 = vpop.f32.mrf.mxu0
    %v421 = vadd.f32 %v114, %v420
    %422 = vmatprep.mubr.bf16.mxu0 0
    %423 = vmatmul.mubr.bf16.gmra.mxu0 %v212
    %v424 = vpop.f32.mrf.mxu0
    %v425 = vadd.f32 %v110, %v424
    %v426 = vpop.f32.mrf.mxu0
    %v427 = vadd.f32 %v114, %v426
    %v428 = vpop.f32.mrf.mxu0
    %v429 = vadd.f32 %v110, %v428
    %v430 = vpop.f32.mrf.mxu0
    %v431 = vadd.f32 %v114, %v430
    %432 = vdwg.mxu0
    %433 = vst [vmem:[#allocation2] sm:$0xff] %v249
    %434 = vst [vmem:[#allocation2 + $0x8] sm:$0xff] %v251
    %435 = vst [vmem:[#allocation2 + $0x10] sm:$0xff] %v322
    %436 = vst [vmem:[#allocation2 + $0x18] sm:$0xff] %v324
    %437 = vst [vmem:[#allocation2 + $0x20] sm:$0xff] %v395
    %438 = vst [vmem:[#allocation2 + $0x28] sm:$0xff] %v397
    %439 = vst [vmem:[#allocation2 + $0x30] sm:$0xff] %v253
    %440 = vst [vmem:[#allocation2 + $0x38] sm:$0xff] %v255
    %441 = vst [vmem:[#allocation2 + $0x40] sm:$0xff] %v326
    %442 = vst [vmem:[#allocation2 + $0x48] sm:$0xff] %v328
    %443 = vst [vmem:[#allocation2 + $0x50] sm:$0xff] %v399
    %444 = vst [vmem:[#allocation2 + $0x58] sm:$0xff] %v401
    %445 = vst [vmem:[#allocation2 + $0x60] sm:$0xff] %v259
    %446 = vst [vmem:[#allocation2 + $0x68] sm:$0xff] %v261
    %447 = vst [vmem:[#allocation2 + $0x70] sm:$0xff] %v332
    %448 = vst [vmem:[#allocation2 + $0x78] sm:$0xff] %v334
    %449 = vst [vmem:[#allocation2 + $0x80] sm:$0xff] %v405
    %450 = vst [vmem:[#allocation2 + $0x88] sm:$0xff] %v407
    %451 = vst [vmem:[#allocation2 + $0x90] sm:$0xff] %v263
    %452 = vst [vmem:[#allocation2 + $0x98] sm:$0xff] %v265
    %453 = vst [vmem:[#allocation2 + $0xa0] sm:$0xff] %v336
    %454 = vst [vmem:[#allocation2 + $0xa8] sm:$0xff] %v338
    %455 = vst [vmem:[#allocation2 + $0xb0] sm:$0xff] %v409
    %456 = vst [vmem:[#allocation2 + $0xb8] sm:$0xff] %v411
    %457 = vst [vmem:[#allocation2 + $0xc0] sm:$0xff] %v269
    %458 = vst [vmem:[#allocation2 + $0xc8] sm:$0xff] %v271
    %459 = vst [vmem:[#allocation2 + $0xd0] sm:$0xff] %v342
    %460 = vst [vmem:[#allocation2 + $0xd8] sm:$0xff] %v344
    %461 = vst [vmem:[#allocation2 + $0xe0] sm:$0xff] %v415
    %462 = vst [vmem:[#allocation2 + $0xe8] sm:$0xff] %v417
    %463 = vst [vmem:[#allocation2 + $0xf0] sm:$0xff] %v273
    %464 = vst [vmem:[#allocation2 + $0xf8] sm:$0xff] %v275
    %465 = vst [vmem:[#allocation2 + $0x100] sm:$0xff] %v346
    %466 = vst [vmem:[#allocation2 + $0x108] sm:$0xff] %v348
    %467 = vst [vmem:[#allocation2 + $0x110] sm:$0xff] %v419
    %468 = vst [vmem:[#allocation2 + $0x118] sm:$0xff] %v421
    %469 = vst [vmem:[#allocation2 + $0x120] sm:$0xff] %v279
    %470 = vst [vmem:[#allocation2 + $0x128] sm:$0xff] %v281
    %471 = vst [vmem:[#allocation2 + $0x130] sm:$0xff] %v352
    %472 = vst [vmem:[#allocation2 + $0x138] sm:$0xff] %v354
    %473 = vst [vmem:[#allocation2 + $0x140] sm:$0xff] %v425
    %474 = vst [vmem:[#allocation2 + $0x148] sm:$0xff] %v427
    %475 = vst [vmem:[#allocation2 + $0x150] sm:$0xff] %v283
    %476 = vst [vmem:[#allocation2 + $0x158] sm:$0xff] %v285
    %477 = vst [vmem:[#allocation2 + $0x160] sm:$0xff] %v356
    %478 = vst [vmem:[#allocation2 + $0x168] sm:$0xff] %v358
    %479 = vst [vmem:[#allocation2 + $0x170] sm:$0xff] %v429
    %480 = vst [vmem:[#allocation2 + $0x178] sm:$0xff] %v431
    %481 = vst [vmem:[#allocation3] sm:$0xff] 0.0
    %482 = vst [vmem:[#allocation4] sm:$0xff] 0.0
    %v483 = vld [vmem:[%s5] sm:$0x1]
    %v484 = vld [vmem:[%s6] sm:$0x1]
    %s485 = smul.u32 0, 6
    %s486 = smul.addr %s485, 8
    %s487 = scalar_lea.vmem [#allocation2], %s486
    %v488 = vld [vmem:[%s487] sm:$0xff]
    %v489 = vld [vmem:[%s487 + $0x8] sm:$0xff]
    %v490 = vld [vmem:[%s487 + $0x10] sm:$0xff]
    %v491 = vld [vmem:[#allocation3] sm:$0xff]
    %v492 = vld [vmem:[#allocation8] sm:$0xff]
    %v493 = vld [vmem:[#allocation8 + $0x8] sm:$0xff]
    %v494 = vld [vmem:[#allocation8 + $0x10] sm:$0xff]
    %v495 = vld [vmem:[#allocation8 + $0x18] sm:$0xff]
    %v496 = vld [vmem:[#allocation8 + $0x20] sm:$0xff]
    %v497 = vld [vmem:[#allocation8 + $0x28] sm:$0xff]
    %v498 = vld [vmem:[#allocation8 + $0x30] sm:$0xff]
    %v499 = vld [vmem:[#allocation8 + $0x38] sm:$0xff]
    %v500 = vld [vmem:[#allocation8 + $0x40] sm:$0xff]
    %v501 = vld [vmem:[#allocation8 + $0x48] sm:$0xff]
    %v502 = vld [vmem:[#allocation8 + $0x50] sm:$0xff]
    %v503 = vld [vmem:[#allocation8 + $0x58] sm:$0xff]
    %v504 = vld [vmem:[#allocation8 + $0x60] sm:$0xff]
    %v505 = vld [vmem:[#allocation8 + $0x68] sm:$0xff]
    %v506 = vld [vmem:[#allocation8 + $0x70] sm:$0xff]
    %v507 = vld [vmem:[#allocation8 + $0x78] sm:$0xff]
    %v508 = vld [vmem:[#allocation8 + $0x80] sm:$0xff]
    %v509 = vld [vmem:[#allocation8 + $0x88] sm:$0xff]
    %v510 = vld [vmem:[#allocation8 + $0x90] sm:$0xff]
    %v511 = vld [vmem:[#allocation8 + $0x98] sm:$0xff]
    %v512 = vld [vmem:[#allocation8 + $0xa0] sm:$0xff]
    %v513 = vld [vmem:[#allocation8 + $0xa8] sm:$0xff]
    %v514 = vld [vmem:[#allocation8 + $0xb0] sm:$0xff]
    %v515 = vld [vmem:[#allocation8 + $0xb8] sm:$0xff]
    %v516 = vld [vmem:[#allocation8 + $0xc0] sm:$0xff]
    %v517 = vld [vmem:[#allocation8 + $0xc8] sm:$0xff]
    %v518 = vld [vmem:[#allocation8 + $0xd0] sm:$0xff]
    %v519 = vld [vmem:[#allocation8 + $0xd8] sm:$0xff]
    %v520 = vld [vmem:[#allocation8 + $0xe0] sm:$0xff]
    %v521 = vld [vmem:[#allocation8 + $0xe8] sm:$0xff]
    %v522 = vld [vmem:[#allocation8 + $0xf0] sm:$0xff]
    %v523 = vld [vmem:[#allocation8 + $0xf8] sm:$0xff]
    %v524 = vld [vmem:[#allocation8 + $0x100] sm:$0xff]
    %v525 = vld [vmem:[#allocation8 + $0x108] sm:$0xff]
    %v526 = vld [vmem:[#allocation8 + $0x110] sm:$0xff]
    %v527 = vld [vmem:[#allocation8 + $0x118] sm:$0xff]
    %v528 = vld [vmem:[#allocation8 + $0x120] sm:$0xff]
    %v529 = vld [vmem:[#allocation8 + $0x128] sm:$0xff]
    %v530 = vld [vmem:[#allocation8 + $0x130] sm:$0xff]
    %v531 = vld [vmem:[#allocation8 + $0x138] sm:$0xff]
    %v532 = vld [vmem:[#allocation8 + $0x140] sm:$0xff]
    %v533 = vld [vmem:[#allocation8 + $0x148] sm:$0xff]
    %v534 = vld [vmem:[#allocation8 + $0x150] sm:$0xff]
    %v535 = vld [vmem:[#allocation8 + $0x158] sm:$0xff]
    %v536 = vld [vmem:[#allocation8 + $0x160] sm:$0xff]
    %v537 = vld [vmem:[#allocation8 + $0x168] sm:$0xff]
    %v538 = vld [vmem:[#allocation8 + $0x170] sm:$0xff]
    %v539 = vld [vmem:[#allocation8 + $0x178] sm:$0xff]
    %540 = vmatprep.subr.mxu0 %v538
    %541 = vmatpush1.msra.mxu0 %v537
    %542 = vmatprep.subr.mxu0 %v535
    %543 = vmatpush1.msra.mxu0 %v534
    %544 = vmatprep.subr.mxu0 %v532
    %545 = vmatpush1.msra.mxu0 %v531
    %546 = vmatprep.subr.mxu0 %v529
    %547 = vmatpush1.msra.mxu0 %v528
    %548 = vmatprep.subr.mxu0 %v526
    %549 = vmatpush1.msra.mxu0 %v525
    %550 = vmatprep.subr.mxu0 %v523
    %551 = vmatpush1.msra.mxu0 %v522
    %552 = vmatprep.subr.mxu0 %v520
    %553 = vmatpush1.msra.mxu0 %v519
    %554 = vmatprep.subr.mxu0 %v517
    %555 = vmatpush1.msra.mxu0 %v516
    %556 = vmatprep.subr.mxu0 %v514
    %557 = vmatpush1.msra.mxu0 %v513
    %558 = vmatprep.subr.mxu0 %v511
    %559 = vmatpush1.msra.mxu0 %v510
    %560 = vmatprep.subr.mxu0 %v508
    %561 = vmatpush1.msra.mxu0 %v507
    %562 = vmatprep.subr.mxu0 %v505
    %563 = vmatpush1.msra.mxu0 %v504
    %564 = vmatprep.subr.mxu0 %v502
    %565 = vmatpush1.msra.mxu0 %v501
    %566 = vmatprep.subr.mxu0 %v499
    %567 = vmatpush1.msra.mxu0 %v498
    %568 = vmatprep.subr.mxu0 %v496
    %569 = vmatpush1.msra.mxu0 %v495
    %570 = vmatprep.subr.mxu0 %v493
    %571 = vmatpush1.msra.mxu0 %v492
    %572 = vmatprep.subr.mxu0 0.0
    %573 = vmatpush2.msra.mxu0 0.0
    %574 = vmatprep.subr.mxu0 0.0
    %575 = vmatpush2.msra.mxu0 0.0
    %576 = vmatprep.subr.mxu0 0.0
    %577 = vmatpush2.msra.mxu0 0.0
    %578 = vmatprep.subr.mxu0 0.0
    %579 = vmatpush2.msra.mxu0 0.0
    %580 = vmatprep.subr.mxu0 0.0
    %581 = vmatpush2.msra.mxu0 0.0
    %582 = vmatprep.subr.mxu0 0.0
    %583 = vmatpush2.msra.mxu0 0.0
    %584 = vmatprep.subr.mxu0 0.0
    %585 = vmatpush2.msra.mxu0 0.0
    %586 = vmatprep.subr.mxu0 0.0
    %587 = vmatpush2.msra.mxu0 0.0
    %588 = vmatprep.subr.mxu0 0.0
    %589 = vmatpush2.msra.mxu0 0.0
    %590 = vmatprep.subr.mxu0 0.0
    %591 = vmatpush2.msra.mxu0 0.0
    %592 = vmatprep.subr.mxu0 0.0
    %593 = vmatpush2.msra.mxu0 0.0
    %594 = vmatprep.subr.mxu0 0.0
    %595 = vmatpush2.msra.mxu0 0.0
    %596 = vmatprep.subr.mxu0 0.0
    %597 = vmatpush2.msra.mxu0 0.0
    %598 = vmatprep.subr.mxu0 0.0
    %599 = vmatpush2.msra.mxu0 0.0
    %600 = vmatprep.subr.mxu0 0.0
    %601 = vmatpush2.msra.mxu0 0.0
    %602 = vmatprep.subr.mxu0 0.0
    %603 = vmatpush2.msra.mxu0 0.0
    %604 = vmatprep.mubr.f32.mxu0 0.0
    %605 = vmatmul.mubr.f32.gmra.mxu0 %v491
    %v606 = vpop.f32.mrf.mxu0
    %v607 = vadd.f32 0.0, %v606
    %v608 = vpop.f32.mrf.mxu0
    %v609 = vadd.f32 0.0, %v608
    %610 = vdwg.mxu0
    %611 = vmatprep.subr.mxu0 0.0
    %612 = vmatpush1.msra.mxu0 %v539
    %613 = vmatprep.subr.mxu0 0.0
    %614 = vmatpush1.msra.mxu0 %v536
    %615 = vmatprep.subr.mxu0 0.0
    %616 = vmatpush1.msra.mxu0 %v533
    %617 = vmatprep.subr.mxu0 0.0
    %618 = vmatpush1.msra.mxu0 %v530
    %619 = vmatprep.subr.mxu0 0.0
    %620 = vmatpush1.msra.mxu0 %v527
    %621 = vmatprep.subr.mxu0 0.0
    %622 = vmatpush1.msra.mxu0 %v524
    %623 = vmatprep.subr.mxu0 0.0
    %624 = vmatpush1.msra.mxu0 %v521
    %625 = vmatprep.subr.mxu0 0.0
    %626 = vmatpush1.msra.mxu0 %v518
    %627 = vmatprep.subr.mxu0 0.0
    %628 = vmatpush1.msra.mxu0 %v515
    %629 = vmatprep.subr.mxu0 0.0
    %630 = vmatpush1.msra.mxu0 %v512
    %631 = vmatprep.subr.mxu0 0.0
    %632 = vmatpush1.msra.mxu0 %v509
    %633 = vmatprep.subr.mxu0 0.0
    %634 = vmatpush1.msra.mxu0 %v506
    %635 = vmatprep.subr.mxu0 0.0
    %636 = vmatpush1.msra.mxu0 %v503
    %637 = vmatprep.subr.mxu0 0.0
    %638 = vmatpush1.msra.mxu0 %v500
    %639 = vmatprep.subr.mxu0 0.0
    %640 = vmatpush1.msra.mxu0 %v497
    %641 = vmatprep.subr.mxu0 0.0
    %642 = vmatpush1.msra.mxu0 %v494
    %643 = vmatprep.subr.mxu0 0.0
    %644 = vmatpush2.msra.mxu0 0.0
    %645 = vmatprep.subr.mxu0 0.0
    %646 = vmatpush2.msra.mxu0 0.0
    %647 = vmatprep.subr.mxu0 0.0
    %648 = vmatpush2.msra.mxu0 0.0
    %649 = vmatprep.subr.mxu0 0.0
    %650 = vmatpush2.msra.mxu0 0.0
    %651 = vmatprep.subr.mxu0 0.0
    %652 = vmatpush2.msra.mxu0 0.0
    %653 = vmatprep.subr.mxu0 0.0
    %654 = vmatpush2.msra.mxu0 0.0
    %655 = vmatprep.subr.mxu0 0.0
    %656 = vmatpush2.msra.mxu0 0.0
    %657 = vmatprep.subr.mxu0 0.0
    %658 = vmatpush2.msra.mxu0 0.0
    %659 = vmatprep.subr.mxu0 0.0
    %660 = vmatpush2.msra.mxu0 0.0
    %661 = vmatprep.subr.mxu0 0.0
    %662 = vmatpush2.msra.mxu0 0.0
    %663 = vmatprep.subr.mxu0 0.0
    %664 = vmatpush2.msra.mxu0 0.0
    %665 = vmatprep.subr.mxu0 0.0
    %666 = vmatpush2.msra.mxu0 0.0
    %667 = vmatprep.subr.mxu0 0.0
    %668 = vmatpush2.msra.mxu0 0.0
    %669 = vmatprep.subr.mxu0 0.0
    %670 = vmatpush2.msra.mxu0 0.0
    %671 = vmatprep.subr.mxu0 0.0
    %672 = vmatpush2.msra.mxu0 0.0
    %673 = vmatprep.subr.mxu0 0.0
    %674 = vmatpush2.msra.mxu0 0.0
    %675 = vmatprep.mubr.f32.mxu0 0.0
    %676 = vmatmul.mubr.f32.gmra.mxu0 %v491
    %v677 = vpop.f32.mrf.mxu0
    %v678 = vadd.f32 0.0, %v677
    %v679 = vpop.f32.mrf.mxu0
    %680 = vdwg.mxu0
    %v681 = vadd.f32 %v488, %v607
    %v682 = vsub.f32 0.0, %v681
    %v683 = vmul.f32 %v682, 1.442695
    %v684 = vpow.pop %v683
    %v685 = vadd.f32 %v684, 1.0
    %v686 = vrcp.pop %v685
    %v687 = vadd.f32 %v489, %v609
    %v688 = vsub.f32 0.0, %v687
    %v689 = vmul.f32 %v688, 1.442695
    %v690 = vpow.pop %v689
    %v691 = vadd.f32 %v690, 1.0
    %v692 = vrcp.pop %v691
    %v694 = vlaneseq
    %v695 = vshrl.u32 %v694, 7
    %v696 = vsub.s32 0, %v695
    %v697 = vrot.slane %v483, %v696
    %v699 = vadd.f32 %v678, %v697
    %v700 = vmul.f32 %v686, %v699
    %v701 = vadd.f32 %v490, %v700
    %v702 = vtanh.pop %v701
    %v703 = vsub.f32 1.0, %v692
    %v704 = vmul.f32 %v703, %v702
    %v705 = vmul.f32 %v692, %v491
    %v706 = vadd.f32 %v704, %v705
    %s707 = smul.u32 7, 6
    %s708 = smul.addr %s707, 8
    %s709 = scalar_lea.vmem [#allocation2], %s708
    %v710 = vld [vmem:[%s709 + $0x18] sm:$0xff]
    %v711 = vld [vmem:[%s709 + $0x20] sm:$0xff]
    %v712 = vld [vmem:[%s709 + $0x28] sm:$0xff]
    %v713 = vld [vmem:[#allocation4] sm:$0xff]
    %v714 = vld [vmem:[#allocation10] sm:$0xff]
    %v715 = vld [vmem:[#allocation10 + $0x8] sm:$0xff]
    %v716 = vld [vmem:[#allocation10 + $0x10] sm:$0xff]
    %v717 = vld [vmem:[#allocation10 + $0x18] sm:$0xff]
    %v718 = vld [vmem:[#allocation10 + $0x20] sm:$0xff]
    %v719 = vld [vmem:[#allocation10 + $0x28] sm:$0xff]
    %v720 = vld [vmem:[#allocation10 + $0x30] sm:$0xff]
    %v721 = vld [vmem:[#allocation10 + $0x38] sm:$0xff]
    %v722 = vld [vmem:[#allocation10 + $0x40] sm:$0xff]
    %v723 = vld [vmem:[#allocation10 + $0x48] sm:$0xff]
    %v724 = vld [vmem:[#allocation10 + $0x50] sm:$0xff]
    %v725 = vld [vmem:[#allocation10 + $0x58] sm:$0xff]
    %v726 = vld [vmem:[#allocation10 + $0x60] sm:$0xff]
    %v727 = vld [vmem:[#allocation10 + $0x68] sm:$0xff]
    %v728 = vld [vmem:[#allocation10 + $0x70] sm:$0xff]
    %v729 = vld [vmem:[#allocation10 + $0x78] sm:$0xff]
    %v730 = vld [vmem:[#allocation10 + $0x80] sm:$0xff]
    %v731 = vld [vmem:[#allocation10 + $0x88] sm:$0xff]
    %v732 = vld [vmem:[#allocation10 + $0x90] sm:$0xff]
    %v733 = vld [vmem:[#allocation10 + $0x98] sm:$0xff]
    %v734 = vld [vmem:[#allocation10 + $0xa0] sm:$0xff]
    %v735 = vld [vmem:[#allocation10 + $0xa8] sm:$0xff]
    %v736 = vld [vmem:[#allocation10 + $0xb0] sm:$0xff]
    %v737 = vld [vmem:[#allocation10 + $0xb8] sm:$0xff]
    %v738 = vld [vmem:[#allocation10 + $0xc0] sm:$0xff]
    %v739 = vld [vmem:[#allocation10 + $0xc8] sm:$0xff]
    %v740 = vld [vmem:[#allocation10 + $0xd0] sm:$0xff]
    %v741 = vld [vmem:[#allocation10 + $0xd8] sm:$0xff]
    %v742 = vld [vmem:[#allocation10 + $0xe0] sm:$0xff]
    %v743 = vld [vmem:[#allocation10 + $0xe8] sm:$0xff]
    %v744 = vld [vmem:[#allocation10 + $0xf0] sm:$0xff]
    %v745 = vld [vmem:[#allocation10 + $0xf8] sm:$0xff]
    %v746 = vld [vmem:[#allocation10 + $0x100] sm:$0xff]
    %v747 = vld [vmem:[#allocation10 + $0x108] sm:$0xff]
    %v748 = vld [vmem:[#allocation10 + $0x110] sm:$0xff]
    %v749 = vld [vmem:[#allocation10 + $0x118] sm:$0xff]
    %v750 = vld [vmem:[#allocation10 + $0x120] sm:$0xff]
    %v751 = vld [vmem:[#allocation10 + $0x128] sm:$0xff]
    %v752 = vld [vmem:[#allocation10 + $0x130] sm:$0xff]
    %v753 = vld [vmem:[#allocation10 + $0x138] sm:$0xff]
    %v754 = vld [vmem:[#allocation10 + $0x140] sm:$0xff]
    %v755 = vld [vmem:[#allocation10 + $0x148] sm:$0xff]
    %v756 = vld [vmem:[#allocation10 + $0x150] sm:$0xff]
    %v757 = vld [vmem:[#allocation10 + $0x158] sm:$0xff]
    %v758 = vld [vmem:[#allocation10 + $0x160] sm:$0xff]
    %v759 = vld [vmem:[#allocation10 + $0x168] sm:$0xff]
    %v760 = vld [vmem:[#allocation10 + $0x170] sm:$0xff]
    %v761 = vld [vmem:[#allocation10 + $0x178] sm:$0xff]
    %762 = vmatprep.subr.mxu0 %v760
    %763 = vmatpush1.msra.mxu0 %v759
    %764 = vmatprep.subr.mxu0 %v757
    %765 = vmatpush1.msra.mxu0 %v756
    %766 = vmatprep.subr.mxu0 %v754
    %767 = vmatpush1.msra.mxu0 %v753
    %768 = vmatprep.subr.mxu0 %v751
    %769 = vmatpush1.msra.mxu0 %v750
    %770 = vmatprep.subr.mxu0 %v748
    %771 = vmatpush1.msra.mxu0 %v747
    %772 = vmatprep.subr.mxu0 %v745
    %773 = vmatpush1.msra.mxu0 %v744
    %774 = vmatprep.subr.mxu0 %v742
    %775 = vmatpush1.msra.mxu0 %v741
    %776 = vmatprep.subr.mxu0 %v739
    %777 = vmatpush1.msra.mxu0 %v738
    %778 = vmatprep.subr.mxu0 %v736
    %779 = vmatpush1.msra.mxu0 %v735
    %780 = vmatprep.subr.mxu0 %v733
    %781 = vmatpush1.msra.mxu0 %v732
    %782 = vmatprep.subr.mxu0 %v730
    %783 = vmatpush1.msra.mxu0 %v729
    %784 = vmatprep.subr.mxu0 %v727
    %785 = vmatpush1.msra.mxu0 %v726
    %786 = vmatprep.subr.mxu0 %v724
    %787 = vmatpush1.msra.mxu0 %v723
    %788 = vmatprep.subr.mxu0 %v721
    %789 = vmatpush1.msra.mxu0 %v720
    %790 = vmatprep.subr.mxu0 %v718
    %791 = vmatpush1.msra.mxu0 %v717
    %792 = vmatprep.subr.mxu0 %v715
    %793 = vmatpush1.msra.mxu0 %v714
    %794 = vmatprep.subr.mxu0 0.0
    %795 = vmatpush2.msra.mxu0 0.0
    %796 = vmatprep.subr.mxu0 0.0
    %797 = vmatpush2.msra.mxu0 0.0
    %798 = vmatprep.subr.mxu0 0.0
    %799 = vmatpush2.msra.mxu0 0.0
    %800 = vmatprep.subr.mxu0 0.0
    %801 = vmatpush2.msra.mxu0 0.0
    %802 = vmatprep.subr.mxu0 0.0
    %803 = vmatpush2.msra.mxu0 0.0
    %804 = vmatprep.subr.mxu0 0.0
    %805 = vmatpush2.msra.mxu0 0.0
    %806 = vmatprep.subr.mxu0 0.0
    %807 = vmatpush2.msra.mxu0 0.0
    %808 = vmatprep.subr.mxu0 0.0
    %809 = vmatpush2.msra.mxu0 0.0
    %810 = vmatprep.subr.mxu0 0.0
    %811 = vmatpush2.msra.mxu0 0.0
    %812 = vmatprep.subr.mxu0 0.0
    %813 = vmatpush2.msra.mxu0 0.0
    %814 = vmatprep.subr.mxu0 0.0
    %815 = vmatpush2.msra.mxu0 0.0
    %816 = vmatprep.subr.mxu0 0.0
    %817 = vmatpush2.msra.mxu0 0.0
    %818 = vmatprep.subr.mxu0 0.0
    %819 = vmatpush2.msra.mxu0 0.0
    %820 = vmatprep.subr.mxu0 0.0
    %821 = vmatpush2.msra.mxu0 0.0
    %822 = vmatprep.subr.mxu0 0.0
    %823 = vmatpush2.msra.mxu0 0.0
    %824 = vmatprep.subr.mxu0 0.0
    %825 = vmatpush2.msra.mxu0 0.0
    %826 = vmatprep.mubr.f32.mxu0 0.0
    %827 = vmatmul.mubr.f32.gmra.mxu0 %v713
    %v828 = vpop.f32.mrf.mxu0
    %v829 = vadd.f32 0.0, %v828
    %v830 = vpop.f32.mrf.mxu0
    %v831 = vadd.f32 0.0, %v830
    %832 = vdwg.mxu0
    %833 = vmatprep.subr.mxu0 0.0
    %834 = vmatpush1.msra.mxu0 %v761
    %835 = vmatprep.subr.mxu0 0.0
    %836 = vmatpush1.msra.mxu0 %v758
    %837 = vmatprep.subr.mxu0 0.0
    %838 = vmatpush1.msra.mxu0 %v755
    %839 = vmatprep.subr.mxu0 0.0
    %840 = vmatpush1.msra.mxu0 %v752
    %841 = vmatprep.subr.mxu0 0.0
    %842 = vmatpush1.msra.mxu0 %v749
    %843 = vmatprep.subr.mxu0 0.0
    %844 = vmatpush1.msra.mxu0 %v746
    %845 = vmatprep.subr.mxu0 0.0
    %846 = vmatpush1.msra.mxu0 %v743
    %847 = vmatprep.subr.mxu0 0.0
    %848 = vmatpush1.msra.mxu0 %v740
    %849 = vmatprep.subr.mxu0 0.0
    %850 = vmatpush1.msra.mxu0 %v737
    %851 = vmatprep.subr.mxu0 0.0
    %852 = vmatpush1.msra.mxu0 %v734
    %853 = vmatprep.subr.mxu0 0.0
    %854 = vmatpush1.msra.mxu0 %v731
    %855 = vmatprep.subr.mxu0 0.0
    %856 = vmatpush1.msra.mxu0 %v728
    %857 = vmatprep.subr.mxu0 0.0
    %858 = vmatpush1.msra.mxu0 %v725
    %859 = vmatprep.subr.mxu0 0.0
    %860 = vmatpush1.msra.mxu0 %v722
    %861 = vmatprep.subr.mxu0 0.0
    %862 = vmatpush1.msra.mxu0 %v719
    %863 = vmatprep.subr.mxu0 0.0
    %864 = vmatpush1.msra.mxu0 %v716
    %865 = vmatprep.subr.mxu0 0.0
    %866 = vmatpush2.msra.mxu0 0.0
    %867 = vmatprep.subr.mxu0 0.0
    %868 = vmatpush2.msra.mxu0 0.0
    %869 = vmatprep.subr.mxu0 0.0
    %870 = vmatpush2.msra.mxu0 0.0
    %871 = vmatprep.subr.mxu0 0.0
    %872 = vmatpush2.msra.mxu0 0.0
    %873 = vmatprep.subr.mxu0 0.0
    %874 = vmatpush2.msra.mxu0 0.0
    %875 = vmatprep.subr.mxu0 0.0
    %876 = vmatpush2.msra.mxu0 0.0
    %877 = vmatprep.subr.mxu0 0.0
    %878 = vmatpush2.msra.mxu0 0.0
    %879 = vmatprep.subr.mxu0 0.0
    %880 = vmatpush2.msra.mxu0 0.0
    %881 = vmatprep.subr.mxu0 0.0
    %882 = vmatpush2.msra.mxu0 0.0
    %883 = vmatprep.subr.mxu0 0.0
    %884 = vmatpush2.msra.mxu0 0.0
    %885 = vmatprep.subr.mxu0 0.0
    %886 = vmatpush2.msra.mxu0 0.0
    %887 = vmatprep.subr.mxu0 0.0
    %888 = vmatpush2.msra.mxu0 0.0
    %889 = vmatprep.subr.mxu0 0.0
    %890 = vmatpush2.msra.mxu0 0.0
    %891 = vmatprep.subr.mxu0 0.0
    %892 = vmatpush2.msra.mxu0 0.0
    %893 = vmatprep.subr.mxu0 0.0
    %894 = vmatpush2.msra.mxu0 0.0
    %895 = vmatprep.subr.mxu0 0.0
    %896 = vmatpush2.msra.mxu0 0.0
    %897 = vmatprep.mubr.f32.mxu0 0.0
    %898 = vmatmul.mubr.f32.gmra.mxu0 %v713
    %v899 = vpop.f32.mrf.mxu0
    %v900 = vadd.f32 0.0, %v899
    %v901 = vpop.f32.mrf.mxu0
    %902 = vdwg.mxu0
    %v903 = vadd.f32 %v710, %v829
    %v904 = vsub.f32 0.0, %v903
    %v905 = vmul.f32 %v904, 1.442695
    %v906 = vpow.pop %v905
    %v907 = vadd.f32 %v906, 1.0
    %v908 = vrcp.pop %v907
    %v909 = vadd.f32 %v711, %v831
    %v910 = vsub.f32 0.0, %v909
    %v911 = vmul.f32 %v910, 1.442695
    %v912 = vpow.pop %v911
    %v913 = vadd.f32 %v912, 1.0
    %v914 = vrcp.pop %v913
    %v916 = vlaneseq
    %v917 = vshrl.u32 %v916, 7
    %v918 = vsub.s32 0, %v917
    %v919 = vrot.slane %v484, %v918
    %v921 = vadd.f32 %v900, %v919
    %v922 = vmul.f32 %v908, %v921
    %v923 = vadd.f32 %v712, %v922
    %v924 = vtanh.pop %v923
    %v925 = vsub.f32 1.0, %v914
    %v926 = vmul.f32 %v925, %v924
    %v927 = vmul.f32 %v914, %v713
    %v928 = vadd.f32 %v926, %v927
    %929 = vst [vmem:[#allocation3] sm:$0xff] %v706
    %930 = vst [vmem:[#allocation4] sm:$0xff] %v928
    %s931 = smul.u32 0, 2
    %s932 = smul.addr %s931, 8
    %s933 = scalar_lea.vmem [#allocation11], %s932
    %934 = vst [vmem:[%s933] sm:$0xff] %v706
    %s935 = smul.u32 7, 2
    %s936 = smul.addr %s935, 8
    %s937 = scalar_lea.vmem [#allocation11], %s936
    %938 = vst [vmem:[%s937 + $0x8] sm:$0xff] %v928
    %s939 = smul.u32 1, 6
    %s940 = smul.addr %s939, 8
    %s941 = scalar_lea.vmem [#allocation2], %s940
    %v942 = vld [vmem:[%s941] sm:$0xff]
    %v943 = vld [vmem:[%s941 + $0x8] sm:$0xff]
    %v944 = vld [vmem:[%s941 + $0x10] sm:$0xff]
    %v945 = vld [vmem:[#allocation3] sm:$0xff]
    %v946 = vld [vmem:[#allocation8] sm:$0xff]
    %v947 = vld [vmem:[#allocation8 + $0x8] sm:$0xff]
    %v948 = vld [vmem:[#allocation8 + $0x10] sm:$0xff]
    %v949 = vld [vmem:[#allocation8 + $0x18] sm:$0xff]
    %v950 = vld [vmem:[#allocation8 + $0x20] sm:$0xff]
    %v951 = vld [vmem:[#allocation8 + $0x28] sm:$0xff]
    %v952 = vld [vmem:[#allocation8 + $0x30] sm:$0xff]
    %v953 = vld [vmem:[#allocation8 + $0x38] sm:$0xff]
    %v954 = vld [vmem:[#allocation8 + $0x40] sm:$0xff]
    %v955 = vld [vmem:[#allocation8 + $0x48] sm:$0xff]
    %v956 = vld [vmem:[#allocation8 + $0x50] sm:$0xff]
    %v957 = vld [vmem:[#allocation8 + $0x58] sm:$0xff]
    %v958 = vld [vmem:[#allocation8 + $0x60] sm:$0xff]
    %v959 = vld [vmem:[#allocation8 + $0x68] sm:$0xff]
    %v960 = vld [vmem:[#allocation8 + $0x70] sm:$0xff]
    %v961 = vld [vmem:[#allocation8 + $0x78] sm:$0xff]
    %v962 = vld [vmem:[#allocation8 + $0x80] sm:$0xff]
    %v963 = vld [vmem:[#allocation8 + $0x88] sm:$0xff]
    %v964 = vld [vmem:[#allocation8 + $0x90] sm:$0xff]
    %v965 = vld [vmem:[#allocation8 + $0x98] sm:$0xff]
    %v966 = vld [vmem:[#allocation8 + $0xa0] sm:$0xff]
    %v967 = vld [vmem:[#allocation8 + $0xa8] sm:$0xff]
    %v968 = vld [vmem:[#allocation8 + $0xb0] sm:$0xff]
    %v969 = vld [vmem:[#allocation8 + $0xb8] sm:$0xff]
    %v970 = vld [vmem:[#allocation8 + $0xc0] sm:$0xff]
    %v971 = vld [vmem:[#allocation8 + $0xc8] sm:$0xff]
    %v972 = vld [vmem:[#allocation8 + $0xd0] sm:$0xff]
    %v973 = vld [vmem:[#allocation8 + $0xd8] sm:$0xff]
    %v974 = vld [vmem:[#allocation8 + $0xe0] sm:$0xff]
    %v975 = vld [vmem:[#allocation8 + $0xe8] sm:$0xff]
    %v976 = vld [vmem:[#allocation8 + $0xf0] sm:$0xff]
    %v977 = vld [vmem:[#allocation8 + $0xf8] sm:$0xff]
    %v978 = vld [vmem:[#allocation8 + $0x100] sm:$0xff]
    %v979 = vld [vmem:[#allocation8 + $0x108] sm:$0xff]
    %v980 = vld [vmem:[#allocation8 + $0x110] sm:$0xff]
    %v981 = vld [vmem:[#allocation8 + $0x118] sm:$0xff]
    %v982 = vld [vmem:[#allocation8 + $0x120] sm:$0xff]
    %v983 = vld [vmem:[#allocation8 + $0x128] sm:$0xff]
    %v984 = vld [vmem:[#allocation8 + $0x130] sm:$0xff]
    %v985 = vld [vmem:[#allocation8 + $0x138] sm:$0xff]
    %v986 = vld [vmem:[#allocation8 + $0x140] sm:$0xff]
    %v987 = vld [vmem:[#allocation8 + $0x148] sm:$0xff]
    %v988 = vld [vmem:[#allocation8 + $0x150] sm:$0xff]
    %v989 = vld [vmem:[#allocation8 + $0x158] sm:$0xff]
    %v990 = vld [vmem:[#allocation8 + $0x160] sm:$0xff]
    %v991 = vld [vmem:[#allocation8 + $0x168] sm:$0xff]
    %v992 = vld [vmem:[#allocation8 + $0x170] sm:$0xff]
    %v993 = vld [vmem:[#allocation8 + $0x178] sm:$0xff]
    %994 = vmatprep.subr.mxu0 %v992
    %995 = vmatpush1.msra.mxu0 %v991
    %996 = vmatprep.subr.mxu0 %v989
    %997 = vmatpush1.msra.mxu0 %v988
    %998 = vmatprep.subr.mxu0 %v986
    %999 = vmatpush1.msra.mxu0 %v985
    %1000 = vmatprep.subr.mxu0 %v983
    %1001 = vmatpush1.msra.mxu0 %v982
    %1002 = vmatprep.subr.mxu0 %v980
    %1003 = vmatpush1.msra.mxu0 %v979
    %1004 = vmatprep.subr.mxu0 %v977
    %1005 = vmatpush1.msra.mxu0 %v976
    %1006 = vmatprep.subr.mxu0 %v974
    %1007 = vmatpush1.msra.mxu0 %v973
    %1008 = vmatprep.subr.mxu0 %v971
    %1009 = vmatpush1.msra.mxu0 %v970
    %1010 = vmatprep.subr.mxu0 %v968
    %1011 = vmatpush1.msra.mxu0 %v967
    %1012 = vmatprep.subr.mxu0 %v965
    %1013 = vmatpush1.msra.mxu0 %v964
    %1014 = vmatprep.subr.mxu0 %v962
    %1015 = vmatpush1.msra.mxu0 %v961
    %1016 = vmatprep.subr.mxu0 %v959
    %1017 = vmatpush1.msra.mxu0 %v958
    %1018 = vmatprep.subr.mxu0 %v956
    %1019 = vmatpush1.msra.mxu0 %v955
    %1020 = vmatprep.subr.mxu0 %v953
    %1021 = vmatpush1.msra.mxu0 %v952
    %1022 = vmatprep.subr.mxu0 %v950
    %1023 = vmatpush1.msra.mxu0 %v949
    %1024 = vmatprep.subr.mxu0 %v947
    %1025 = vmatpush1.msra.mxu0 %v946
    %1026 = vmatprep.subr.mxu0 0.0
    %1027 = vmatpush2.msra.mxu0 0.0
    %1028 = vmatprep.subr.mxu0 0.0
    %1029 = vmatpush2.msra.mxu0 0.0
    %1030 = vmatprep.subr.mxu0 0.0
    %1031 = vmatpush2.msra.mxu0 0.0
    %1032 = vmatprep.subr.mxu0 0.0
    %1033 = vmatpush2.msra.mxu0 0.0
    %1034 = vmatprep.subr.mxu0 0.0
    %1035 = vmatpush2.msra.mxu0 0.0
    %1036 = vmatprep.subr.mxu0 0.0
    %1037 = vmatpush2.msra.mxu0 0.0
    %1038 = vmatprep.subr.mxu0 0.0
    %1039 = vmatpush2.msra.mxu0 0.0
    %1040 = vmatprep.subr.mxu0 0.0
    %1041 = vmatpush2.msra.mxu0 0.0
    %1042 = vmatprep.subr.mxu0 0.0
    %1043 = vmatpush2.msra.mxu0 0.0
    %1044 = vmatprep.subr.mxu0 0.0
    %1045 = vmatpush2.msra.mxu0 0.0
    %1046 = vmatprep.subr.mxu0 0.0
    %1047 = vmatpush2.msra.mxu0 0.0
    %1048 = vmatprep.subr.mxu0 0.0
    %1049 = vmatpush2.msra.mxu0 0.0
    %1050 = vmatprep.subr.mxu0 0.0
    %1051 = vmatpush2.msra.mxu0 0.0
    %1052 = vmatprep.subr.mxu0 0.0
    %1053 = vmatpush2.msra.mxu0 0.0
    %1054 = vmatprep.subr.mxu0 0.0
    %1055 = vmatpush2.msra.mxu0 0.0
    %1056 = vmatprep.subr.mxu0 0.0
    %1057 = vmatpush2.msra.mxu0 0.0
    %1058 = vmatprep.mubr.f32.mxu0 0.0
    %1059 = vmatmul.mubr.f32.gmra.mxu0 %v945
    %v1060 = vpop.f32.mrf.mxu0
    %v1061 = vadd.f32 0.0, %v1060
    %v1062 = vpop.f32.mrf.mxu0
    %v1063 = vadd.f32 0.0, %v1062
    %1064 = vdwg.mxu0
    %1065 = vmatprep.subr.mxu0 0.0
    %1066 = vmatpush1.msra.mxu0 %v993
    %1067 = vmatprep.subr.mxu0 0.0
    %1068 = vmatpush1.msra.mxu0 %v990
    %1069 = vmatprep.subr.mxu0 0.0
    %1070 = vmatpush1.msra.mxu0 %v987
    %1071 = vmatprep.subr.mxu0 0.0
    %1072 = vmatpush1.msra.mxu0 %v984
    %1073 = vmatprep.subr.mxu0 0.0
    %1074 = vmatpush1.msra.mxu0 %v981
    %1075 = vmatprep.subr.mxu0 0.0
    %1076 = vmatpush1.msra.mxu0 %v978
    %1077 = vmatprep.subr.mxu0 0.0
    %1078 = vmatpush1.msra.mxu0 %v975
    %1079 = vmatprep.subr.mxu0 0.0
    %1080 = vmatpush1.msra.mxu0 %v972
    %1081 = vmatprep.subr.mxu0 0.0
    %1082 = vmatpush1.msra.mxu0 %v969
    %1083 = vmatprep.subr.mxu0 0.0
    %1084 = vmatpush1.msra.mxu0 %v966
    %1085 = vmatprep.subr.mxu0 0.0
    %1086 = vmatpush1.msra.mxu0 %v963
    %1087 = vmatprep.subr.mxu0 0.0
    %1088 = vmatpush1.msra.mxu0 %v960
    %1089 = vmatprep.subr.mxu0 0.0
    %1090 = vmatpush1.msra.mxu0 %v957
    %1091 = vmatprep.subr.mxu0 0.0
    %1092 = vmatpush1.msra.mxu0 %v954
    %1093 = vmatprep.subr.mxu0 0.0
    %1094 = vmatpush1.msra.mxu0 %v951
    %1095 = vmatprep.subr.mxu0 0.0
    %1096 = vmatpush1.msra.mxu0 %v948
    %1097 = vmatprep.subr.mxu0 0.0
    %1098 = vmatpush2.msra.mxu0 0.0
    %1099 = vmatprep.subr.mxu0 0.0
    %1100 = vmatpush2.msra.mxu0 0.0
    %1101 = vmatprep.subr.mxu0 0.0
    %1102 = vmatpush2.msra.mxu0 0.0
    %1103 = vmatprep.subr.mxu0 0.0
    %1104 = vmatpush2.msra.mxu0 0.0
    %1105 = vmatprep.subr.mxu0 0.0
    %1106 = vmatpush2.msra.mxu0 0.0
    %1107 = vmatprep.subr.mxu0 0.0
    %1108 = vmatpush2.msra.mxu0 0.0
    %1109 = vmatprep.subr.mxu0 0.0
    %1110 = vmatpush2.msra.mxu0 0.0
    %1111 = vmatprep.subr.mxu0 0.0
    %1112 = vmatpush2.msra.mxu0 0.0
    %1113 = vmatprep.subr.mxu0 0.0
    %1114 = vmatpush2.msra.mxu0 0.0
    %1115 = vmatprep.subr.mxu0 0.0
    %1116 = vmatpush2.msra.mxu0 0.0
    %1117 = vmatprep.subr.mxu0 0.0
    %1118 = vmatpush2.msra.mxu0 0.0
    %1119 = vmatprep.subr.mxu0 0.0
    %1120 = vmatpush2.msra.mxu0 0.0
    %1121 = vmatprep.subr.mxu0 0.0
    %1122 = vmatpush2.msra.mxu0 0.0
    %1123 = vmatprep.subr.mxu0 0.0
    %1124 = vmatpush2.msra.mxu0 0.0
    %1125 = vmatprep.subr.mxu0 0.0
    %1126 = vmatpush2.msra.mxu0 0.0
    %1127 = vmatprep.subr.mxu0 0.0
    %1128 = vmatpush2.msra.mxu0 0.0
    %1129 = vmatprep.mubr.f32.mxu0 0.0
    %1130 = vmatmul.mubr.f32.gmra.mxu0 %v945
    %v1131 = vpop.f32.mrf.mxu0
    %v1132 = vadd.f32 0.0, %v1131
    %v1133 = vpop.f32.mrf.mxu0
    %1134 = vdwg.mxu0
    %v1135 = vadd.f32 %v942, %v1061
    %v1136 = vsub.f32 0.0, %v1135
    %v1137 = vmul.f32 %v1136, 1.442695
    %v1138 = vpow.pop %v1137
    %v1139 = vadd.f32 %v1138, 1.0
    %v1140 = vrcp.pop %v1139
    %v1141 = vadd.f32 %v943, %v1063
    %v1142 = vsub.f32 0.0, %v1141
    %v1143 = vmul.f32 %v1142, 1.442695
    %v1144 = vpow.pop %v1143
    %v1145 = vadd.f32 %v1144, 1.0
    %v1146 = vrcp.pop %v1145
    %v1147 = vadd.f32 %v1132, %v697
    %v1148 = vmul.f32 %v1140, %v1147
    %v1149 = vadd.f32 %v944, %v1148
    %v1150 = vtanh.pop %v1149
    %v1151 = vsub.f32 1.0, %v1146
    %v1152 = vmul.f32 %v1151, %v1150
    %v1153 = vmul.f32 %v1146, %v945
    %v1154 = vadd.f32 %v1152, %v1153
    %s1155 = smul.u32 6, 6
    %s1156 = smul.addr %s1155, 8
    %s1157 = scalar_lea.vmem [#allocation2], %s1156
    %v1158 = vld [vmem:[%s1157 + $0x18] sm:$0xff]
    %v1159 = vld [vmem:[%s1157 + $0x20] sm:$0xff]
    %v1160 = vld [vmem:[%s1157 + $0x28] sm:$0xff]
    %v1161 = vld [vmem:[#allocation4] sm:$0xff]
    %v1162 = vld [vmem:[#allocation10] sm:$0xff]
    %v1163 = vld [vmem:[#allocation10 + $0x8] sm:$0xff]
    %v1164 = vld [vmem:[#allocation10 + $0x10] sm:$0xff]
    %v1165 = vld [vmem:[#allocation10 + $0x18] sm:$0xff]
    %v1166 = vld [vmem:[#allocation10 + $0x20] sm:$0xff]
    %v1167 = vld [vmem:[#allocation10 + $0x28] sm:$0xff]
    %v1168 = vld [vmem:[#allocation10 + $0x30] sm:$0xff]
    %v1169 = vld [vmem:[#allocation10 + $0x38] sm:$0xff]
    %v1170 = vld [vmem:[#allocation10 + $0x40] sm:$0xff]
    %v1171 = vld [vmem:[#allocation10 + $0x48] sm:$0xff]
    %v1172 = vld [vmem:[#allocation10 + $0x50] sm:$0xff]
    %v1173 = vld [vmem:[#allocation10 + $0x58] sm:$0xff]
    %v1174 = vld [vmem:[#allocation10 + $0x60] sm:$0xff]
    %v1175 = vld [vmem:[#allocation10 + $0x68] sm:$0xff]
    %v1176 = vld [vmem:[#allocation10 + $0x70] sm:$0xff]
    %v1177 = vld [vmem:[#allocation10 + $0x78] sm:$0xff]
    %v1178 = vld [vmem:[#allocation10 + $0x80] sm:$0xff]
    %v1179 = vld [vmem:[#allocation10 + $0x88] sm:$0xff]
    %v1180 = vld [vmem:[#allocation10 + $0x90] sm:$0xff]
    %v1181 = vld [vmem:[#allocation10 + $0x98] sm:$0xff]
    %v1182 = vld [vmem:[#allocation10 + $0xa0] sm:$0xff]
    %v1183 = vld [vmem:[#allocation10 + $0xa8] sm:$0xff]
    %v1184 = vld [vmem:[#allocation10 + $0xb0] sm:$0xff]
    %v1185 = vld [vmem:[#allocation10 + $0xb8] sm:$0xff]
    %v1186 = vld [vmem:[#allocation10 + $0xc0] sm:$0xff]
    %v1187 = vld [vmem:[#allocation10 + $0xc8] sm:$0xff]
    %v1188 = vld [vmem:[#allocation10 + $0xd0] sm:$0xff]
    %v1189 = vld [vmem:[#allocation10 + $0xd8] sm:$0xff]
    %v1190 = vld [vmem:[#allocation10 + $0xe0] sm:$0xff]
    %v1191 = vld [vmem:[#allocation10 + $0xe8] sm:$0xff]
    %v1192 = vld [vmem:[#allocation10 + $0xf0] sm:$0xff]
    %v1193 = vld [vmem:[#allocation10 + $0xf8] sm:$0xff]
    %v1194 = vld [vmem:[#allocation10 + $0x100] sm:$0xff]
    %v1195 = vld [vmem:[#allocation10 + $0x108] sm:$0xff]
    %v1196 = vld [vmem:[#allocation10 + $0x110] sm:$0xff]
    %v1197 = vld [vmem:[#allocation10 + $0x118] sm:$0xff]
    %v1198 = vld [vmem:[#allocation10 + $0x120] sm:$0xff]
    %v1199 = vld [vmem:[#allocation10 + $0x128] sm:$0xff]
    %v1200 = vld [vmem:[#allocation10 + $0x130] sm:$0xff]
    %v1201 = vld [vmem:[#allocation10 + $0x138] sm:$0xff]
    %v1202 = vld [vmem:[#allocation10 + $0x140] sm:$0xff]
    %v1203 = vld [vmem:[#allocation10 + $0x148] sm:$0xff]
    %v1204 = vld [vmem:[#allocation10 + $0x150] sm:$0xff]
    %v1205 = vld [vmem:[#allocation10 + $0x158] sm:$0xff]
    %v1206 = vld [vmem:[#allocation10 + $0x160] sm:$0xff]
    %v1207 = vld [vmem:[#allocation10 + $0x168] sm:$0xff]
    %v1208 = vld [vmem:[#allocation10 + $0x170] sm:$0xff]
    %v1209 = vld [vmem:[#allocation10 + $0x178] sm:$0xff]
    %1210 = vmatprep.subr.mxu0 %v1208
    %1211 = vmatpush1.msra.mxu0 %v1207
    %1212 = vmatprep.subr.mxu0 %v1205
    %1213 = vmatpush1.msra.mxu0 %v1204
    %1214 = vmatprep.subr.mxu0 %v1202
    %1215 = vmatpush1.msra.mxu0 %v1201
    %1216 = vmatprep.subr.mxu0 %v1199
    %1217 = vmatpush1.msra.mxu0 %v1198
    %1218 = vmatprep.subr.mxu0 %v1196
    %1219 = vmatpush1.msra.mxu0 %v1195
    %1220 = vmatprep.subr.mxu0 %v1193
    %1221 = vmatpush1.msra.mxu0 %v1192
    %1222 = vmatprep.subr.mxu0 %v1190
    %1223 = vmatpush1.msra.mxu0 %v1189
    %1224 = vmatprep.subr.mxu0 %v1187
    %1225 = vmatpush1.msra.mxu0 %v1186
    %1226 = vmatprep.subr.mxu0 %v1184
    %1227 = vmatpush1.msra.mxu0 %v1183
    %1228 = vmatprep.subr.mxu0 %v1181
    %1229 = vmatpush1.msra.mxu0 %v1180
    %1230 = vmatprep.subr.mxu0 %v1178
    %1231 = vmatpush1.msra.mxu0 %v1177
    %1232 = vmatprep.subr.mxu0 %v1175
    %1233 = vmatpush1.msra.mxu0 %v1174
    %1234 = vmatprep.subr.mxu0 %v1172
    %1235 = vmatpush1.msra.mxu0 %v1171
    %1236 = vmatprep.subr.mxu0 %v1169
    %1237 = vmatpush1.msra.mxu0 %v1168
    %1238 = vmatprep.subr.mxu0 %v1166
    %1239 = vmatpush1.msra.mxu0 %v1165
    %1240 = vmatprep.subr.mxu0 %v1163
    %1241 = vmatpush1.msra.mxu0 %v1162
    %1242 = vmatprep.subr.mxu0 0.0
    %1243 = vmatpush2.msra.mxu0 0.0
    %1244 = vmatprep.subr.mxu0 0.0
    %1245 = vmatpush2.msra.mxu0 0.0
    %1246 = vmatprep.subr.mxu0 0.0
    %1247 = vmatpush2.msra.mxu0 0.0
    %1248 = vmatprep.subr.mxu0 0.0
    %1249 = vmatpush2.msra.mxu0 0.0
    %1250 = vmatprep.subr.mxu0 0.0
    %1251 = vmatpush2.msra.mxu0 0.0
    %1252 = vmatprep.subr.mxu0 0.0
    %1253 = vmatpush2.msra.mxu0 0.0
    %1254 = vmatprep.subr.mxu0 0.0
    %1255 = vmatpush2.msra.mxu0 0.0
    %1256 = vmatprep.subr.mxu0 0.0
    %1257 = vmatpush2.msra.mxu0 0.0
    %1258 = vmatprep.subr.mxu0 0.0
    %1259 = vmatpush2.msra.mxu0 0.0
    %1260 = vmatprep.subr.mxu0 0.0
    %1261 = vmatpush2.msra.mxu0 0.0
    %1262 = vmatprep.subr.mxu0 0.0
    %1263 = vmatpush2.msra.mxu0 0.0
    %1264 = vmatprep.subr.mxu0 0.0
    %1265 = vmatpush2.msra.mxu0 0.0
    %1266 = vmatprep.subr.mxu0 0.0
    %1267 = vmatpush2.msra.mxu0 0.0
    %1268 = vmatprep.subr.mxu0 0.0
    %1269 = vmatpush2.msra.mxu0 0.0
    %1270 = vmatprep.subr.mxu0 0.0
    %1271 = vmatpush2.msra.mxu0 0.0
    %1272 = vmatprep.subr.mxu0 0.0
    %1273 = vmatpush2.msra.mxu0 0.0
    %1274 = vmatprep.mubr.f32.mxu0 0.0
    %1275 = vmatmul.mubr.f32.gmra.mxu0 %v1161
    %v1276 = vpop.f32.mrf.mxu0
    %v1277 = vadd.f32 0.0, %v1276
    %v1278 = vpop.f32.mrf.mxu0
    %v1279 = vadd.f32 0.0, %v1278
    %1280 = vdwg.mxu0
    %1281 = vmatprep.subr.mxu0 0.0
    %1282 = vmatpush1.msra.mxu0 %v1209
    %1283 = vmatprep.subr.mxu0 0.0
    %1284 = vmatpush1.msra.mxu0 %v1206
    %1285 = vmatprep.subr.mxu0 0.0
    %1286 = vmatpush1.msra.mxu0 %v1203
    %1287 = vmatprep.subr.mxu0 0.0
    %1288 = vmatpush1.msra.mxu0 %v1200
    %1289 = vmatprep.subr.mxu0 0.0
    %1290 = vmatpush1.msra.mxu0 %v1197
    %1291 = vmatprep.subr.mxu0 0.0
    %1292 = vmatpush1.msra.mxu0 %v1194
    %1293 = vmatprep.subr.mxu0 0.0
    %1294 = vmatpush1.msra.mxu0 %v1191
    %1295 = vmatprep.subr.mxu0 0.0
    %1296 = vmatpush1.msra.mxu0 %v1188
    %1297 = vmatprep.subr.mxu0 0.0
    %1298 = vmatpush1.msra.mxu0 %v1185
    %1299 = vmatprep.subr.mxu0 0.0
    %1300 = vmatpush1.msra.mxu0 %v1182
    %1301 = vmatprep.subr.mxu0 0.0
    %1302 = vmatpush1.msra.mxu0 %v1179
    %1303 = vmatprep.subr.mxu0 0.0
    %1304 = vmatpush1.msra.mxu0 %v1176
    %1305 = vmatprep.subr.mxu0 0.0
    %1306 = vmatpush1.msra.mxu0 %v1173
    %1307 = vmatprep.subr.mxu0 0.0
    %1308 = vmatpush1.msra.mxu0 %v1170
    %1309 = vmatprep.subr.mxu0 0.0
    %1310 = vmatpush1.msra.mxu0 %v1167
    %1311 = vmatprep.subr.mxu0 0.0
    %1312 = vmatpush1.msra.mxu0 %v1164
    %1313 = vmatprep.subr.mxu0 0.0
    %1314 = vmatpush2.msra.mxu0 0.0
    %1315 = vmatprep.subr.mxu0 0.0
    %1316 = vmatpush2.msra.mxu0 0.0
    %1317 = vmatprep.subr.mxu0 0.0
    %1318 = vmatpush2.msra.mxu0 0.0
    %1319 = vmatprep.subr.mxu0 0.0
    %1320 = vmatpush2.msra.mxu0 0.0
    %1321 = vmatprep.subr.mxu0 0.0
    %1322 = vmatpush2.msra.mxu0 0.0
    %1323 = vmatprep.subr.mxu0 0.0
    %1324 = vmatpush2.msra.mxu0 0.0
    %1325 = vmatprep.subr.mxu0 0.0
    %1326 = vmatpush2.msra.mxu0 0.0
    %1327 = vmatprep.subr.mxu0 0.0
    %1328 = vmatpush2.msra.mxu0 0.0
    %1329 = vmatprep.subr.mxu0 0.0
    %1330 = vmatpush2.msra.mxu0 0.0
    %1331 = vmatprep.subr.mxu0 0.0
    %1332 = vmatpush2.msra.mxu0 0.0
    %1333 = vmatprep.subr.mxu0 0.0
    %1334 = vmatpush2.msra.mxu0 0.0
    %1335 = vmatprep.subr.mxu0 0.0
    %1336 = vmatpush2.msra.mxu0 0.0
    %1337 = vmatprep.subr.mxu0 0.0
    %1338 = vmatpush2.msra.mxu0 0.0
    %1339 = vmatprep.subr.mxu0 0.0
    %1340 = vmatpush2.msra.mxu0 0.0
    %1341 = vmatprep.subr.mxu0 0.0
    %1342 = vmatpush2.msra.mxu0 0.0
    %1343 = vmatprep.subr.mxu0 0.0
    %1344 = vmatpush2.msra.mxu0 0.0
    %1345 = vmatprep.mubr.f32.mxu0 0.0
    %1346 = vmatmul.mubr.f32.gmra.mxu0 %v1161
    %v1347 = vpop.f32.mrf.mxu0
    %v1348 = vadd.f32 0.0, %v1347
    %v1349 = vpop.f32.mrf.mxu0
    %1350 = vdwg.mxu0
    %v1351 = vadd.f32 %v1158, %v1277
    %v1352 = vsub.f32 0.0, %v1351
    %v1353 = vmul.f32 %v1352, 1.442695
    %v1354 = vpow.pop %v1353
    %v1355 = vadd.f32 %v1354, 1.0
    %v1356 = vrcp.pop %v1355
    %v1357 = vadd.f32 %v1159, %v1279
    %v1358 = vsub.f32 0.0, %v1357
    %v1359 = vmul.f32 %v1358, 1.442695
    %v1360 = vpow.pop %v1359
    %v1361 = vadd.f32 %v1360, 1.0
    %v1362 = vrcp.pop %v1361
    %v1363 = vadd.f32 %v1348, %v919
    %v1364 = vmul.f32 %v1356, %v1363
    %v1365 = vadd.f32 %v1160, %v1364
    %v1366 = vtanh.pop %v1365
    %v1367 = vsub.f32 1.0, %v1362
    %v1368 = vmul.f32 %v1367, %v1366
    %v1369 = vmul.f32 %v1362, %v1161
    %v1370 = vadd.f32 %v1368, %v1369
    %1371 = vst [vmem:[#allocation3] sm:$0xff] %v1154
    %1372 = vst [vmem:[#allocation4] sm:$0xff] %v1370
    %s1373 = smul.u32 1, 2
    %s1374 = smul.addr %s1373, 8
    %s1375 = scalar_lea.vmem [#allocation11], %s1374
    %1376 = vst [vmem:[%s1375] sm:$0xff] %v1154
    %s1377 = smul.u32 6, 2
    %s1378 = smul.addr %s1377, 8
    %s1379 = scalar_lea.vmem [#allocation11], %s1378
    %1380 = vst [vmem:[%s1379 + $0x8] sm:$0xff] %v1370
    %s1381 = smul.u32 2, 6
    %s1382 = smul.addr %s1381, 8
    %s1383 = scalar_lea.vmem [#allocation2], %s1382
    %v1384 = vld [vmem:[%s1383] sm:$0xff]
    %v1385 = vld [vmem:[%s1383 + $0x8] sm:$0xff]
    %v1386 = vld [vmem:[%s1383 + $0x10] sm:$0xff]
    %v1387 = vld [vmem:[#allocation3] sm:$0xff]
    %v1388 = vld [vmem:[#allocation8] sm:$0xff]
    %v1389 = vld [vmem:[#allocation8 + $0x8] sm:$0xff]
    %v1390 = vld [vmem:[#allocation8 + $0x10] sm:$0xff]
    %v1391 = vld [vmem:[#allocation8 + $0x18] sm:$0xff]
    %v1392 = vld [vmem:[#allocation8 + $0x20] sm:$0xff]
    %v1393 = vld [vmem:[#allocation8 + $0x28] sm:$0xff]
    %v1394 = vld [vmem:[#allocation8 + $0x30] sm:$0xff]
    %v1395 = vld [vmem:[#allocation8 + $0x38] sm:$0xff]
    %v1396 = vld [vmem:[#allocation8 + $0x40] sm:$0xff]
    %v1397 = vld [vmem:[#allocation8 + $0x48] sm:$0xff]
    %v1398 = vld [vmem:[#allocation8 + $0x50] sm:$0xff]
    %v1399 = vld [vmem:[#allocation8 + $0x58] sm:$0xff]
    %v1400 = vld [vmem:[#allocation8 + $0x60] sm:$0xff]
    %v1401 = vld [vmem:[#allocation8 + $0x68] sm:$0xff]
    %v1402 = vld [vmem:[#allocation8 + $0x70] sm:$0xff]
    %v1403 = vld [vmem:[#allocation8 + $0x78] sm:$0xff]
    %v1404 = vld [vmem:[#allocation8 + $0x80] sm:$0xff]
    %v1405 = vld [vmem:[#allocation8 + $0x88] sm:$0xff]
    %v1406 = vld [vmem:[#allocation8 + $0x90] sm:$0xff]
    %v1407 = vld [vmem:[#allocation8 + $0x98] sm:$0xff]
    %v1408 = vld [vmem:[#allocation8 + $0xa0] sm:$0xff]
    %v1409 = vld [vmem:[#allocation8 + $0xa8] sm:$0xff]
    %v1410 = vld [vmem:[#allocation8 + $0xb0] sm:$0xff]
    %v1411 = vld [vmem:[#allocation8 + $0xb8] sm:$0xff]
    %v1412 = vld [vmem:[#allocation8 + $0xc0] sm:$0xff]
    %v1413 = vld [vmem:[#allocation8 + $0xc8] sm:$0xff]
    %v1414 = vld [vmem:[#allocation8 + $0xd0] sm:$0xff]
    %v1415 = vld [vmem:[#allocation8 + $0xd8] sm:$0xff]
    %v1416 = vld [vmem:[#allocation8 + $0xe0] sm:$0xff]
    %v1417 = vld [vmem:[#allocation8 + $0xe8] sm:$0xff]
    %v1418 = vld [vmem:[#allocation8 + $0xf0] sm:$0xff]
    %v1419 = vld [vmem:[#allocation8 + $0xf8] sm:$0xff]
    %v1420 = vld [vmem:[#allocation8 + $0x100] sm:$0xff]
    %v1421 = vld [vmem:[#allocation8 + $0x108] sm:$0xff]
    %v1422 = vld [vmem:[#allocation8 + $0x110] sm:$0xff]
    %v1423 = vld [vmem:[#allocation8 + $0x118] sm:$0xff]
    %v1424 = vld [vmem:[#allocation8 + $0x120] sm:$0xff]
    %v1425 = vld [vmem:[#allocation8 + $0x128] sm:$0xff]
    %v1426 = vld [vmem:[#allocation8 + $0x130] sm:$0xff]
    %v1427 = vld [vmem:[#allocation8 + $0x138] sm:$0xff]
    %v1428 = vld [vmem:[#allocation8 + $0x140] sm:$0xff]
    %v1429 = vld [vmem:[#allocation8 + $0x148] sm:$0xff]
    %v1430 = vld [vmem:[#allocation8 + $0x150] sm:$0xff]
    %v1431 = vld [vmem:[#allocation8 + $0x158] sm:$0xff]
    %v1432 = vld [vmem:[#allocation8 + $0x160] sm:$0xff]
    %v1433 = vld [vmem:[#allocation8 + $0x168] sm:$0xff]
    %v1434 = vld [vmem:[#allocation8 + $0x170] sm:$0xff]
    %v1435 = vld [vmem:[#allocation8 + $0x178] sm:$0xff]
    %1436 = vmatprep.subr.mxu0 %v1434
    %1437 = vmatpush1.msra.mxu0 %v1433
    %1438 = vmatprep.subr.mxu0 %v1431
    %1439 = vmatpush1.msra.mxu0 %v1430
    %1440 = vmatprep.subr.mxu0 %v1428
    %1441 = vmatpush1.msra.mxu0 %v1427
    %1442 = vmatprep.subr.mxu0 %v1425
    %1443 = vmatpush1.msra.mxu0 %v1424
    %1444 = vmatprep.subr.mxu0 %v1422
    %1445 = vmatpush1.msra.mxu0 %v1421
    %1446 = vmatprep.subr.mxu0 %v1419
    %1447 = vmatpush1.msra.mxu0 %v1418
    %1448 = vmatprep.subr.mxu0 %v1416
    %1449 = vmatpush1.msra.mxu0 %v1415
    %1450 = vmatprep.subr.mxu0 %v1413
    %1451 = vmatpush1.msra.mxu0 %v1412
    %1452 = vmatprep.subr.mxu0 %v1410
    %1453 = vmatpush1.msra.mxu0 %v1409
    %1454 = vmatprep.subr.mxu0 %v1407
    %1455 = vmatpush1.msra.mxu0 %v1406
    %1456 = vmatprep.subr.mxu0 %v1404
    %1457 = vmatpush1.msra.mxu0 %v1403
    %1458 = vmatprep.subr.mxu0 %v1401
    %1459 = vmatpush1.msra.mxu0 %v1400
    %1460 = vmatprep.subr.mxu0 %v1398
    %1461 = vmatpush1.msra.mxu0 %v1397
    %1462 = vmatprep.subr.mxu0 %v1395
    %1463 = vmatpush1.msra.mxu0 %v1394
    %1464 = vmatprep.subr.mxu0 %v1392
    %1465 = vmatpush1.msra.mxu0 %v1391
    %1466 = vmatprep.subr.mxu0 %v1389
    %1467 = vmatpush1.msra.mxu0 %v1388
    %1468 = vmatprep.subr.mxu0 0.0
    %1469 = vmatpush2.msra.mxu0 0.0
    %1470 = vmatprep.subr.mxu0 0.0
    %1471 = vmatpush2.msra.mxu0 0.0
    %1472 = vmatprep.subr.mxu0 0.0
    %1473 = vmatpush2.msra.mxu0 0.0
    %1474 = vmatprep.subr.mxu0 0.0
    %1475 = vmatpush2.msra.mxu0 0.0
    %1476 = vmatprep.subr.mxu0 0.0
    %1477 = vmatpush2.msra.mxu0 0.0
    %1478 = vmatprep.subr.mxu0 0.0
    %1479 = vmatpush2.msra.mxu0 0.0
    %1480 = vmatprep.subr.mxu0 0.0
    %1481 = vmatpush2.msra.mxu0 0.0
    %1482 = vmatprep.subr.mxu0 0.0
    %1483 = vmatpush2.msra.mxu0 0.0
    %1484 = vmatprep.subr.mxu0 0.0
    %1485 = vmatpush2.msra.mxu0 0.0
    %1486 = vmatprep.subr.mxu0 0.0
    %1487 = vmatpush2.msra.mxu0 0.0
    %1488 = vmatprep.subr.mxu0 0.0
    %1489 = vmatpush2.msra.mxu0 0.0
    %1490 = vmatprep.subr.mxu0 0.0
    %1491 = vmatpush2.msra.mxu0 0.0
    %1492 = vmatprep.subr.mxu0 0.0
    %1493 = vmatpush2.msra.mxu0 0.0
    %1494 = vmatprep.subr.mxu0 0.0
    %1495 = vmatpush2.msra.mxu0 0.0
    %1496 = vmatprep.subr.mxu0 0.0
    %1497 = vmatpush2.msra.mxu0 0.0
    %1498 = vmatprep.subr.mxu0 0.0
    %1499 = vmatpush2.msra.mxu0 0.0
    %1500 = vmatprep.mubr.f32.mxu0 0.0
    %1501 = vmatmul.mubr.f32.gmra.mxu0 %v1387
    %v1502 = vpop.f32.mrf.mxu0
    %v1503 = vadd.f32 0.0, %v1502
    %v1504 = vpop.f32.mrf.mxu0
    %v1505 = vadd.f32 0.0, %v1504
    %1506 = vdwg.mxu0
    %1507 = vmatprep.subr.mxu0 0.0
    %1508 = vmatpush1.msra.mxu0 %v1435
    %1509 = vmatprep.subr.mxu0 0.0
    %1510 = vmatpush1.msra.mxu0 %v1432
    %1511 = vmatprep.subr.mxu0 0.0
    %1512 = vmatpush1.msra.mxu0 %v1429
    %1513 = vmatprep.subr.mxu0 0.0
    %1514 = vmatpush1.msra.mxu0 %v1426
    %1515 = vmatprep.subr.mxu0 0.0
    %1516 = vmatpush1.msra.mxu0 %v1423
    %1517 = vmatprep.subr.mxu0 0.0
    %1518 = vmatpush1.msra.mxu0 %v1420
    %1519 = vmatprep.subr.mxu0 0.0
    %1520 = vmatpush1.msra.mxu0 %v1417
    %1521 = vmatprep.subr.mxu0 0.0
    %1522 = vmatpush1.msra.mxu0 %v1414
    %1523 = vmatprep.subr.mxu0 0.0
    %1524 = vmatpush1.msra.mxu0 %v1411
    %1525 = vmatprep.subr.mxu0 0.0
    %1526 = vmatpush1.msra.mxu0 %v1408
    %1527 = vmatprep.subr.mxu0 0.0
    %1528 = vmatpush1.msra.mxu0 %v1405
    %1529 = vmatprep.subr.mxu0 0.0
    %1530 = vmatpush1.msra.mxu0 %v1402
    %1531 = vmatprep.subr.mxu0 0.0
    %1532 = vmatpush1.msra.mxu0 %v1399
    %1533 = vmatprep.subr.mxu0 0.0
    %1534 = vmatpush1.msra.mxu0 %v1396
    %1535 = vmatprep.subr.mxu0 0.0
    %1536 = vmatpush1.msra.mxu0 %v1393
    %1537 = vmatprep.subr.mxu0 0.0
    %1538 = vmatpush1.msra.mxu0 %v1390
    %1539 = vmatprep.subr.mxu0 0.0
    %1540 = vmatpush2.msra.mxu0 0.0
    %1541 = vmatprep.subr.mxu0 0.0
    %1542 = vmatpush2.msra.mxu0 0.0
    %1543 = vmatprep.subr.mxu0 0.0
    %1544 = vmatpush2.msra.mxu0 0.0
    %1545 = vmatprep.subr.mxu0 0.0
    %1546 = vmatpush2.msra.mxu0 0.0
    %1547 = vmatprep.subr.mxu0 0.0
    %1548 = vmatpush2.msra.mxu0 0.0
    %1549 = vmatprep.subr.mxu0 0.0
    %1550 = vmatpush2.msra.mxu0 0.0
    %1551 = vmatprep.subr.mxu0 0.0
    %1552 = vmatpush2.msra.mxu0 0.0
    %1553 = vmatprep.subr.mxu0 0.0
    %1554 = vmatpush2.msra.mxu0 0.0
    %1555 = vmatprep.subr.mxu0 0.0
    %1556 = vmatpush2.msra.mxu0 0.0
    %1557 = vmatprep.subr.mxu0 0.0
    %1558 = vmatpush2.msra.mxu0 0.0
    %1559 = vmatprep.subr.mxu0 0.0
    %1560 = vmatpush2.msra.mxu0 0.0
    %1561 = vmatprep.subr.mxu0 0.0
    %1562 = vmatpush2.msra.mxu0 0.0
    %1563 = vmatprep.subr.mxu0 0.0
    %1564 = vmatpush2.msra.mxu0 0.0
    %1565 = vmatprep.subr.mxu0 0.0
    %1566 = vmatpush2.msra.mxu0 0.0
    %1567 = vmatprep.subr.mxu0 0.0
    %1568 = vmatpush2.msra.mxu0 0.0
    %1569 = vmatprep.subr.mxu0 0.0
    %1570 = vmatpush2.msra.mxu0 0.0
    %1571 = vmatprep.mubr.f32.mxu0 0.0
    %1572 = vmatmul.mubr.f32.gmra.mxu0 %v1387
    %v1573 = vpop.f32.mrf.mxu0
    %v1574 = vadd.f32 0.0, %v1573
    %v1575 = vpop.f32.mrf.mxu0
    %1576 = vdwg.mxu0
    %v1577 = vadd.f32 %v1384, %v1503
    %v1578 = vsub.f32 0.0, %v1577
    %v1579 = vmul.f32 %v1578, 1.442695
    %v1580 = vpow.pop %v1579
    %v1581 = vadd.f32 %v1580, 1.0
    %v1582 = vrcp.pop %v1581
    %v1583 = vadd.f32 %v1385, %v1505
    %v1584 = vsub.f32 0.0, %v1583
    %v1585 = vmul.f32 %v1584, 1.442695
    %v1586 = vpow.pop %v1585
    %v1587 = vadd.f32 %v1586, 1.0
    %v1588 = vrcp.pop %v1587
    %v1589 = vadd.f32 %v1574, %v697
    %v1590 = vmul.f32 %v1582, %v1589
    %v1591 = vadd.f32 %v1386, %v1590
    %v1592 = vtanh.pop %v1591
    %v1593 = vsub.f32 1.0, %v1588
    %v1594 = vmul.f32 %v1593, %v1592
    %v1595 = vmul.f32 %v1588, %v1387
    %v1596 = vadd.f32 %v1594, %v1595
    %s1597 = smul.u32 5, 6
    %s1598 = smul.addr %s1597, 8
    %s1599 = scalar_lea.vmem [#allocation2], %s1598
    %v1600 = vld [vmem:[%s1599 + $0x18] sm:$0xff]
    %v1601 = vld [vmem:[%s1599 + $0x20] sm:$0xff]
    %v1602 = vld [vmem:[%s1599 + $0x28] sm:$0xff]
    %v1603 = vld [vmem:[#allocation4] sm:$0xff]
    %v1604 = vld [vmem:[#allocation10] sm:$0xff]
    %v1605 = vld [vmem:[#allocation10 + $0x8] sm:$0xff]
    %v1606 = vld [vmem:[#allocation10 + $0x10] sm:$0xff]
    %v1607 = vld [vmem:[#allocation10 + $0x18] sm:$0xff]
    %v1608 = vld [vmem:[#allocation10 + $0x20] sm:$0xff]
    %v1609 = vld [vmem:[#allocation10 + $0x28] sm:$0xff]
    %v1610 = vld [vmem:[#allocation10 + $0x30] sm:$0xff]
    %v1611 = vld [vmem:[#allocation10 + $0x38] sm:$0xff]
    %v1612 = vld [vmem:[#allocation10 + $0x40] sm:$0xff]
    %v1613 = vld [vmem:[#allocation10 + $0x48] sm:$0xff]
    %v1614 = vld [vmem:[#allocation10 + $0x50] sm:$0xff]
    %v1615 = vld [vmem:[#allocation10 + $0x58] sm:$0xff]
    %v1616 = vld [vmem:[#allocation10 + $0x60] sm:$0xff]
    %v1617 = vld [vmem:[#allocation10 + $0x68] sm:$0xff]
    %v1618 = vld [vmem:[#allocation10 + $0x70] sm:$0xff]
    %v1619 = vld [vmem:[#allocation10 + $0x78] sm:$0xff]
    %v1620 = vld [vmem:[#allocation10 + $0x80] sm:$0xff]
    %v1621 = vld [vmem:[#allocation10 + $0x88] sm:$0xff]
    %v1622 = vld [vmem:[#allocation10 + $0x90] sm:$0xff]
    %v1623 = vld [vmem:[#allocation10 + $0x98] sm:$0xff]
    %v1624 = vld [vmem:[#allocation10 + $0xa0] sm:$0xff]
    %v1625 = vld [vmem:[#allocation10 + $0xa8] sm:$0xff]
    %v1626 = vld [vmem:[#allocation10 + $0xb0] sm:$0xff]
    %v1627 = vld [vmem:[#allocation10 + $0xb8] sm:$0xff]
    %v1628 = vld [vmem:[#allocation10 + $0xc0] sm:$0xff]
    %v1629 = vld [vmem:[#allocation10 + $0xc8] sm:$0xff]
    %v1630 = vld [vmem:[#allocation10 + $0xd0] sm:$0xff]
    %v1631 = vld [vmem:[#allocation10 + $0xd8] sm:$0xff]
    %v1632 = vld [vmem:[#allocation10 + $0xe0] sm:$0xff]
    %v1633 = vld [vmem:[#allocation10 + $0xe8] sm:$0xff]
    %v1634 = vld [vmem:[#allocation10 + $0xf0] sm:$0xff]
    %v1635 = vld [vmem:[#allocation10 + $0xf8] sm:$0xff]
    %v1636 = vld [vmem:[#allocation10 + $0x100] sm:$0xff]
    %v1637 = vld [vmem:[#allocation10 + $0x108] sm:$0xff]
    %v1638 = vld [vmem:[#allocation10 + $0x110] sm:$0xff]
    %v1639 = vld [vmem:[#allocation10 + $0x118] sm:$0xff]
    %v1640 = vld [vmem:[#allocation10 + $0x120] sm:$0xff]
    %v1641 = vld [vmem:[#allocation10 + $0x128] sm:$0xff]
    %v1642 = vld [vmem:[#allocation10 + $0x130] sm:$0xff]
    %v1643 = vld [vmem:[#allocation10 + $0x138] sm:$0xff]
    %v1644 = vld [vmem:[#allocation10 + $0x140] sm:$0xff]
    %v1645 = vld [vmem:[#allocation10 + $0x148] sm:$0xff]
    %v1646 = vld [vmem:[#allocation10 + $0x150] sm:$0xff]
    %v1647 = vld [vmem:[#allocation10 + $0x158] sm:$0xff]
    %v1648 = vld [vmem:[#allocation10 + $0x160] sm:$0xff]
    %v1649 = vld [vmem:[#allocation10 + $0x168] sm:$0xff]
    %v1650 = vld [vmem:[#allocation10 + $0x170] sm:$0xff]
    %v1651 = vld [vmem:[#allocation10 + $0x178] sm:$0xff]
    %1652 = vmatprep.subr.mxu0 %v1650
    %1653 = vmatpush1.msra.mxu0 %v1649
    %1654 = vmatprep.subr.mxu0 %v1647
    %1655 = vmatpush1.msra.mxu0 %v1646
    %1656 = vmatprep.subr.mxu0 %v1644
    %1657 = vmatpush1.msra.mxu0 %v1643
    %1658 = vmatprep.subr.mxu0 %v1641
    %1659 = vmatpush1.msra.mxu0 %v1640
    %1660 = vmatprep.subr.mxu0 %v1638
    %1661 = vmatpush1.msra.mxu0 %v1637
    %1662 = vmatprep.subr.mxu0 %v1635
    %1663 = vmatpush1.msra.mxu0 %v1634
    %1664 = vmatprep.subr.mxu0 %v1632
    %1665 = vmatpush1.msra.mxu0 %v1631
    %1666 = vmatprep.subr.mxu0 %v1629
    %1667 = vmatpush1.msra.mxu0 %v1628
    %1668 = vmatprep.subr.mxu0 %v1626
    %1669 = vmatpush1.msra.mxu0 %v1625
    %1670 = vmatprep.subr.mxu0 %v1623
    %1671 = vmatpush1.msra.mxu0 %v1622
    %1672 = vmatprep.subr.mxu0 %v1620
    %1673 = vmatpush1.msra.mxu0 %v1619
    %1674 = vmatprep.subr.mxu0 %v1617
    %1675 = vmatpush1.msra.mxu0 %v1616
    %1676 = vmatprep.subr.mxu0 %v1614
    %1677 = vmatpush1.msra.mxu0 %v1613
    %1678 = vmatprep.subr.mxu0 %v1611
    %1679 = vmatpush1.msra.mxu0 %v1610
    %1680 = vmatprep.subr.mxu0 %v1608
    %1681 = vmatpush1.msra.mxu0 %v1607
    %1682 = vmatprep.subr.mxu0 %v1605
    %1683 = vmatpush1.msra.mxu0 %v1604
    %1684 = vmatprep.subr.mxu0 0.0
    %1685 = vmatpush2.msra.mxu0 0.0
    %1686 = vmatprep.subr.mxu0 0.0
    %1687 = vmatpush2.msra.mxu0 0.0
    %1688 = vmatprep.subr.mxu0 0.0
    %1689 = vmatpush2.msra.mxu0 0.0
    %1690 = vmatprep.subr.mxu0 0.0
    %1691 = vmatpush2.msra.mxu0 0.0
    %1692 = vmatprep.subr.mxu0 0.0
    %1693 = vmatpush2.msra.mxu0 0.0
    %1694 = vmatprep.subr.mxu0 0.0
    %1695 = vmatpush2.msra.mxu0 0.0
    %1696 = vmatprep.subr.mxu0 0.0
    %1697 = vmatpush2.msra.mxu0 0.0
    %1698 = vmatprep.subr.mxu0 0.0
    %1699 = vmatpush2.msra.mxu0 0.0
    %1700 = vmatprep.subr.mxu0 0.0
    %1701 = vmatpush2.msra.mxu0 0.0
    %1702 = vmatprep.subr.mxu0 0.0
    %1703 = vmatpush2.msra.mxu0 0.0
    %1704 = vmatprep.subr.mxu0 0.0
    %1705 = vmatpush2.msra.mxu0 0.0
    %1706 = vmatprep.subr.mxu0 0.0
    %1707 = vmatpush2.msra.mxu0 0.0
    %1708 = vmatprep.subr.mxu0 0.0
    %1709 = vmatpush2.msra.mxu0 0.0
    %1710 = vmatprep.subr.mxu0 0.0
    %1711 = vmatpush2.msra.mxu0 0.0
    %1712 = vmatprep.subr.mxu0 0.0
    %1713 = vmatpush2.msra.mxu0 0.0
    %1714 = vmatprep.subr.mxu0 0.0
    %1715 = vmatpush2.msra.mxu0 0.0
    %1716 = vmatprep.mubr.f32.mxu0 0.0
    %1717 = vmatmul.mubr.f32.gmra.mxu0 %v1603
    %v1718 = vpop.f32.mrf.mxu0
    %v1719 = vadd.f32 0.0, %v1718
    %v1720 = vpop.f32.mrf.mxu0
    %v1721 = vadd.f32 0.0, %v1720
    %1722 = vdwg.mxu0
    %1723 = vmatprep.subr.mxu0 0.0
    %1724 = vmatpush1.msra.mxu0 %v1651
    %1725 = vmatprep.subr.mxu0 0.0
    %1726 = vmatpush1.msra.mxu0 %v1648
    %1727 = vmatprep.subr.mxu0 0.0
    %1728 = vmatpush1.msra.mxu0 %v1645
    %1729 = vmatprep.subr.mxu0 0.0
    %1730 = vmatpush1.msra.mxu0 %v1642
    %1731 = vmatprep.subr.mxu0 0.0
    %1732 = vmatpush1.msra.mxu0 %v1639
    %1733 = vmatprep.subr.mxu0 0.0
    %1734 = vmatpush1.msra.mxu0 %v1636
    %1735 = vmatprep.subr.mxu0 0.0
    %1736 = vmatpush1.msra.mxu0 %v1633
    %1737 = vmatprep.subr.mxu0 0.0
    %1738 = vmatpush1.msra.mxu0 %v1630
    %1739 = vmatprep.subr.mxu0 0.0
    %1740 = vmatpush1.msra.mxu0 %v1627
    %1741 = vmatprep.subr.mxu0 0.0
    %1742 = vmatpush1.msra.mxu0 %v1624
    %1743 = vmatprep.subr.mxu0 0.0
    %1744 = vmatpush1.msra.mxu0 %v1621
    %1745 = vmatprep.subr.mxu0 0.0
    %1746 = vmatpush1.msra.mxu0 %v1618
    %1747 = vmatprep.subr.mxu0 0.0
    %1748 = vmatpush1.msra.mxu0 %v1615
    %1749 = vmatprep.subr.mxu0 0.0
    %1750 = vmatpush1.msra.mxu0 %v1612
    %1751 = vmatprep.subr.mxu0 0.0
    %1752 = vmatpush1.msra.mxu0 %v1609
    %1753 = vmatprep.subr.mxu0 0.0
    %1754 = vmatpush1.msra.mxu0 %v1606
    %1755 = vmatprep.subr.mxu0 0.0
    %1756 = vmatpush2.msra.mxu0 0.0
    %1757 = vmatprep.subr.mxu0 0.0
    %1758 = vmatpush2.msra.mxu0 0.0
    %1759 = vmatprep.subr.mxu0 0.0
    %1760 = vmatpush2.msra.mxu0 0.0
    %1761 = vmatprep.subr.mxu0 0.0
    %1762 = vmatpush2.msra.mxu0 0.0
    %1763 = vmatprep.subr.mxu0 0.0
    %1764 = vmatpush2.msra.mxu0 0.0
    %1765 = vmatprep.subr.mxu0 0.0
    %1766 = vmatpush2.msra.mxu0 0.0
    %1767 = vmatprep.subr.mxu0 0.0
    %1768 = vmatpush2.msra.mxu0 0.0
    %1769 = vmatprep.subr.mxu0 0.0
    %1770 = vmatpush2.msra.mxu0 0.0
    %1771 = vmatprep.subr.mxu0 0.0
    %1772 = vmatpush2.msra.mxu0 0.0
    %1773 = vmatprep.subr.mxu0 0.0
    %1774 = vmatpush2.msra.mxu0 0.0
    %1775 = vmatprep.subr.mxu0 0.0
    %1776 = vmatpush2.msra.mxu0 0.0
    %1777 = vmatprep.subr.mxu0 0.0
    %1778 = vmatpush2.msra.mxu0 0.0
    %1779 = vmatprep.subr.mxu0 0.0
    %1780 = vmatpush2.msra.mxu0 0.0
    %1781 = vmatprep.subr.mxu0 0.0
    %1782 = vmatpush2.msra.mxu0 0.0
    %1783 = vmatprep.subr.mxu0 0.0
    %1784 = vmatpush2.msra.mxu0 0.0
    %1785 = vmatprep.subr.mxu0 0.0
    %1786 = vmatpush2.msra.mxu0 0.0
    %1787 = vmatprep.mubr.f32.mxu0 0.0
    %1788 = vmatmul.mubr.f32.gmra.mxu0 %v1603
    %v1789 = vpop.f32.mrf.mxu0
    %v1790 = vadd.f32 0.0, %v1789
    %v1791 = vpop.f32.mrf.mxu0
    %1792 = vdwg.mxu0
    %v1793 = vadd.f32 %v1600, %v1719
    %v1794 = vsub.f32 0.0, %v1793
    %v1795 = vmul.f32 %v1794, 1.442695
    %v1796 = vpow.pop %v1795
    %v1797 = vadd.f32 %v1796, 1.0
    %v1798 = vrcp.pop %v1797
    %v1799 = vadd.f32 %v1601, %v1721
    %v1800 = vsub.f32 0.0, %v1799
    %v1801 = vmul.f32 %v1800, 1.442695
    %v1802 = vpow.pop %v1801
    %v1803 = vadd.f32 %v1802, 1.0
    %v1804 = vrcp.pop %v1803
    %v1805 = vadd.f32 %v1790, %v919
    %v1806 = vmul.f32 %v1798, %v1805
    %v1807 = vadd.f32 %v1602, %v1806
    %v1808 = vtanh.pop %v1807
    %v1809 = vsub.f32 1.0, %v1804
    %v1810 = vmul.f32 %v1809, %v1808
    %v1811 = vmul.f32 %v1804, %v1603
    %v1812 = vadd.f32 %v1810, %v1811
    %1813 = vst [vmem:[#allocation3] sm:$0xff] %v1596
    %1814 = vst [vmem:[#allocation4] sm:$0xff] %v1812
    %s1815 = smul.u32 2, 2
    %s1816 = smul.addr %s1815, 8
    %s1817 = scalar_lea.vmem [#allocation11], %s1816
    %1818 = vst [vmem:[%s1817] sm:$0xff] %v1596
    %s1819 = smul.u32 5, 2
    %s1820 = smul.addr %s1819, 8
    %s1821 = scalar_lea.vmem [#allocation11], %s1820
    %1822 = vst [vmem:[%s1821 + $0x8] sm:$0xff] %v1812
    %s1823 = smul.u32 3, 6
    %s1824 = smul.addr %s1823, 8
    %s1825 = scalar_lea.vmem [#allocation2], %s1824
    %v1826 = vld [vmem:[%s1825] sm:$0xff]
    %v1827 = vld [vmem:[%s1825 + $0x8] sm:$0xff]
    %v1828 = vld [vmem:[%s1825 + $0x10] sm:$0xff]
    %v1829 = vld [vmem:[#allocation3] sm:$0xff]
    %v1830 = vld [vmem:[#allocation8] sm:$0xff]
    %v1831 = vld [vmem:[#allocation8 + $0x8] sm:$0xff]
    %v1832 = vld [vmem:[#allocation8 + $0x10] sm:$0xff]
    %v1833 = vld [vmem:[#allocation8 + $0x18] sm:$0xff]
    %v1834 = vld [vmem:[#allocation8 + $0x20] sm:$0xff]
    %v1835 = vld [vmem:[#allocation8 + $0x28] sm:$0xff]
    %v1836 = vld [vmem:[#allocation8 + $0x30] sm:$0xff]
    %v1837 = vld [vmem:[#allocation8 + $0x38] sm:$0xff]
    %v1838 = vld [vmem:[#allocation8 + $0x40] sm:$0xff]
    %v1839 = vld [vmem:[#allocation8 + $0x48] sm:$0xff]
    %v1840 = vld [vmem:[#allocation8 + $0x50] sm:$0xff]
    %v1841 = vld [vmem:[#allocation8 + $0x58] sm:$0xff]
    %v1842 = vld [vmem:[#allocation8 + $0x60] sm:$0xff]
    %v1843 = vld [vmem:[#allocation8 + $0x68] sm:$0xff]
    %v1844 = vld [vmem:[#allocation8 + $0x70] sm:$0xff]
    %v1845 = vld [vmem:[#allocation8 + $0x78] sm:$0xff]
    %v1846 = vld [vmem:[#allocation8 + $0x80] sm:$0xff]
    %v1847 = vld [vmem:[#allocation8 + $0x88] sm:$0xff]
    %v1848 = vld [vmem:[#allocation8 + $0x90] sm:$0xff]
    %v1849 = vld [vmem:[#allocation8 + $0x98] sm:$0xff]
    %v1850 = vld [vmem:[#allocation8 + $0xa0] sm:$0xff]
    %v1851 = vld [vmem:[#allocation8 + $0xa8] sm:$0xff]
    %v1852 = vld [vmem:[#allocation8 + $0xb0] sm:$0xff]
    %v1853 = vld [vmem:[#allocation8 + $0xb8] sm:$0xff]
    %v1854 = vld [vmem:[#allocation8 + $0xc0] sm:$0xff]
    %v1855 = vld [vmem:[#allocation8 + $0xc8] sm:$0xff]
    %v1856 = vld [vmem:[#allocation8 + $0xd0] sm:$0xff]
    %v1857 = vld [vmem:[#allocation8 + $0xd8] sm:$0xff]
    %v1858 = vld [vmem:[#allocation8 + $0xe0] sm:$0xff]
    %v1859 = vld [vmem:[#allocation8 + $0xe8] sm:$0xff]
    %v1860 = vld [vmem:[#allocation8 + $0xf0] sm:$0xff]
    %v1861 = vld [vmem:[#allocation8 + $0xf8] sm:$0xff]
    %v1862 = vld [vmem:[#allocation8 + $0x100] sm:$0xff]
    %v1863 = vld [vmem:[#allocation8 + $0x108] sm:$0xff]
    %v1864 = vld [vmem:[#allocation8 + $0x110] sm:$0xff]
    %v1865 = vld [vmem:[#allocation8 + $0x118] sm:$0xff]
    %v1866 = vld [vmem:[#allocation8 + $0x120] sm:$0xff]
    %v1867 = vld [vmem:[#allocation8 + $0x128] sm:$0xff]
    %v1868 = vld [vmem:[#allocation8 + $0x130] sm:$0xff]
    %v1869 = vld [vmem:[#allocation8 + $0x138] sm:$0xff]
    %v1870 = vld [vmem:[#allocation8 + $0x140] sm:$0xff]
    %v1871 = vld [vmem:[#allocation8 + $0x148] sm:$0xff]
    %v1872 = vld [vmem:[#allocation8 + $0x150] sm:$0xff]
    %v1873 = vld [vmem:[#allocation8 + $0x158] sm:$0xff]
    %v1874 = vld [vmem:[#allocation8 + $0x160] sm:$0xff]
    %v1875 = vld [vmem:[#allocation8 + $0x168] sm:$0xff]
    %v1876 = vld [vmem:[#allocation8 + $0x170] sm:$0xff]
    %v1877 = vld [vmem:[#allocation8 + $0x178] sm:$0xff]
    %1878 = vmatprep.subr.mxu0 %v1876
    %1879 = vmatpush1.msra.mxu0 %v1875
    %1880 = vmatprep.subr.mxu0 %v1873
    %1881 = vmatpush1.msra.mxu0 %v1872
    %1882 = vmatprep.subr.mxu0 %v1870
    %1883 = vmatpush1.msra.mxu0 %v1869
    %1884 = vmatprep.subr.mxu0 %v1867
    %1885 = vmatpush1.msra.mxu0 %v1866
    %1886 = vmatprep.subr.mxu0 %v1864
    %1887 = vmatpush1.msra.mxu0 %v1863
    %1888 = vmatprep.subr.mxu0 %v1861
    %1889 = vmatpush1.msra.mxu0 %v1860
    %1890 = vmatprep.subr.mxu0 %v1858
    %1891 = vmatpush1.msra.mxu0 %v1857
    %1892 = vmatprep.subr.mxu0 %v1855
    %1893 = vmatpush1.msra.mxu0 %v1854
    %1894 = vmatprep.subr.mxu0 %v1852
    %1895 = vmatpush1.msra.mxu0 %v1851
    %1896 = vmatprep.subr.mxu0 %v1849
    %1897 = vmatpush1.msra.mxu0 %v1848
    %1898 = vmatprep.subr.mxu0 %v1846
    %1899 = vmatpush1.msra.mxu0 %v1845
    %1900 = vmatprep.subr.mxu0 %v1843
    %1901 = vmatpush1.msra.mxu0 %v1842
    %1902 = vmatprep.subr.mxu0 %v1840
    %1903 = vmatpush1.msra.mxu0 %v1839
    %1904 = vmatprep.subr.mxu0 %v1837
    %1905 = vmatpush1.msra.mxu0 %v1836
    %1906 = vmatprep.subr.mxu0 %v1834
    %1907 = vmatpush1.msra.mxu0 %v1833
    %1908 = vmatprep.subr.mxu0 %v1831
    %1909 = vmatpush1.msra.mxu0 %v1830
    %1910 = vmatprep.subr.mxu0 0.0
    %1911 = vmatpush2.msra.mxu0 0.0
    %1912 = vmatprep.subr.mxu0 0.0
    %1913 = vmatpush2.msra.mxu0 0.0
    %1914 = vmatprep.subr.mxu0 0.0
    %1915 = vmatpush2.msra.mxu0 0.0
    %1916 = vmatprep.subr.mxu0 0.0
    %1917 = vmatpush2.msra.mxu0 0.0
    %1918 = vmatprep.subr.mxu0 0.0
    %1919 = vmatpush2.msra.mxu0 0.0
    %1920 = vmatprep.subr.mxu0 0.0
    %1921 = vmatpush2.msra.mxu0 0.0
    %1922 = vmatprep.subr.mxu0 0.0
    %1923 = vmatpush2.msra.mxu0 0.0
    %1924 = vmatprep.subr.mxu0 0.0
    %1925 = vmatpush2.msra.mxu0 0.0
    %1926 = vmatprep.subr.mxu0 0.0
    %1927 = vmatpush2.msra.mxu0 0.0
    %1928 = vmatprep.subr.mxu0 0.0
    %1929 = vmatpush2.msra.mxu0 0.0
    %1930 = vmatprep.subr.mxu0 0.0
    %1931 = vmatpush2.msra.mxu0 0.0
    %1932 = vmatprep.subr.mxu0 0.0
    %1933 = vmatpush2.msra.mxu0 0.0
    %1934 = vmatprep.subr.mxu0 0.0
    %1935 = vmatpush2.msra.mxu0 0.0
    %1936 = vmatprep.subr.mxu0 0.0
    %1937 = vmatpush2.msra.mxu0 0.0
    %1938 = vmatprep.subr.mxu0 0.0
    %1939 = vmatpush2.msra.mxu0 0.0
    %1940 = vmatprep.subr.mxu0 0.0
    %1941 = vmatpush2.msra.mxu0 0.0
    %1942 = vmatprep.mubr.f32.mxu0 0.0
    %1943 = vmatmul.mubr.f32.gmra.mxu0 %v1829
    %v1944 = vpop.f32.mrf.mxu0
    %v1945 = vadd.f32 0.0, %v1944
    %v1946 = vpop.f32.mrf.mxu0
    %v1947 = vadd.f32 0.0, %v1946
    %1948 = vdwg.mxu0
    %1949 = vmatprep.subr.mxu0 0.0
    %1950 = vmatpush1.msra.mxu0 %v1877
    %1951 = vmatprep.subr.mxu0 0.0
    %1952 = vmatpush1.msra.mxu0 %v1874
    %1953 = vmatprep.subr.mxu0 0.0
    %1954 = vmatpush1.msra.mxu0 %v1871
    %1955 = vmatprep.subr.mxu0 0.0
    %1956 = vmatpush1.msra.mxu0 %v1868
    %1957 = vmatprep.subr.mxu0 0.0
    %1958 = vmatpush1.msra.mxu0 %v1865
    %1959 = vmatprep.subr.mxu0 0.0
    %1960 = vmatpush1.msra.mxu0 %v1862
    %1961 = vmatprep.subr.mxu0 0.0
    %1962 = vmatpush1.msra.mxu0 %v1859
    %1963 = vmatprep.subr.mxu0 0.0
    %1964 = vmatpush1.msra.mxu0 %v1856
    %1965 = vmatprep.subr.mxu0 0.0
    %1966 = vmatpush1.msra.mxu0 %v1853
    %1967 = vmatprep.subr.mxu0 0.0
    %1968 = vmatpush1.msra.mxu0 %v1850
    %1969 = vmatprep.subr.mxu0 0.0
    %1970 = vmatpush1.msra.mxu0 %v1847
    %1971 = vmatprep.subr.mxu0 0.0
    %1972 = vmatpush1.msra.mxu0 %v1844
    %1973 = vmatprep.subr.mxu0 0.0
    %1974 = vmatpush1.msra.mxu0 %v1841
    %1975 = vmatprep.subr.mxu0 0.0
    %1976 = vmatpush1.msra.mxu0 %v1838
    %1977 = vmatprep.subr.mxu0 0.0
    %1978 = vmatpush1.msra.mxu0 %v1835
    %1979 = vmatprep.subr.mxu0 0.0
    %1980 = vmatpush1.msra.mxu0 %v1832
    %1981 = vmatprep.subr.mxu0 0.0
    %1982 = vmatpush2.msra.mxu0 0.0
    %1983 = vmatprep.subr.mxu0 0.0
    %1984 = vmatpush2.msra.mxu0 0.0
    %1985 = vmatprep.subr.mxu0 0.0
    %1986 = vmatpush2.msra.mxu0 0.0
    %1987 = vmatprep.subr.mxu0 0.0
    %1988 = vmatpush2.msra.mxu0 0.0
    %1989 = vmatprep.subr.mxu0 0.0
    %1990 = vmatpush2.msra.mxu0 0.0
    %1991 = vmatprep.subr.mxu0 0.0
    %1992 = vmatpush2.msra.mxu0 0.0
    %1993 = vmatprep.subr.mxu0 0.0
    %1994 = vmatpush2.msra.mxu0 0.0
    %1995 = vmatprep.subr.mxu0 0.0
    %1996 = vmatpush2.msra.mxu0 0.0
    %1997 = vmatprep.subr.mxu0 0.0
    %1998 = vmatpush2.msra.mxu0 0.0
    %1999 = vmatprep.subr.mxu0 0.0
    %2000 = vmatpush2.msra.mxu0 0.0
    %2001 = vmatprep.subr.mxu0 0.0
    %2002 = vmatpush2.msra.mxu0 0.0
    %2003 = vmatprep.subr.mxu0 0.0
    %2004 = vmatpush2.msra.mxu0 0.0
    %2005 = vmatprep.subr.mxu0 0.0
    %2006 = vmatpush2.msra.mxu0 0.0
    %2007 = vmatprep.subr.mxu0 0.0
    %2008 = vmatpush2.msra.mxu0 0.0
    %2009 = vmatprep.subr.mxu0 0.0
    %2010 = vmatpush2.msra.mxu0 0.0
    %2011 = vmatprep.subr.mxu0 0.0
    %2012 = vmatpush2.msra.mxu0 0.0
    %2013 = vmatprep.mubr.f32.mxu0 0.0
    %2014 = vmatmul.mubr.f32.gmra.mxu0 %v1829
    %v2015 = vpop.f32.mrf.mxu0
    %v2016 = vadd.f32 0.0, %v2015
    %v2017 = vpop.f32.mrf.mxu0
    %2018 = vdwg.mxu0
    %v2019 = vadd.f32 %v1826, %v1945
    %v2020 = vsub.f32 0.0, %v2019
    %v2021 = vmul.f32 %v2020, 1.442695
    %v2022 = vpow.pop %v2021
    %v2023 = vadd.f32 %v2022, 1.0
    %v2024 = vrcp.pop %v2023
    %v2025 = vadd.f32 %v1827, %v1947
    %v2026 = vsub.f32 0.0, %v2025
    %v2027 = vmul.f32 %v2026, 1.442695
    %v2028 = vpow.pop %v2027
    %v2029 = vadd.f32 %v2028, 1.0
    %v2030 = vrcp.pop %v2029
    %v2031 = vadd.f32 %v2016, %v697
    %v2032 = vmul.f32 %v2024, %v2031
    %v2033 = vadd.f32 %v1828, %v2032
    %v2034 = vtanh.pop %v2033
    %v2035 = vsub.f32 1.0, %v2030
    %v2036 = vmul.f32 %v2035, %v2034
    %v2037 = vmul.f32 %v2030, %v1829
    %v2038 = vadd.f32 %v2036, %v2037
    %s2039 = smul.u32 4, 6
    %s2040 = smul.addr %s2039, 8
    %s2041 = scalar_lea.vmem [#allocation2], %s2040
    %v2042 = vld [vmem:[%s2041 + $0x18] sm:$0xff]
    %v2043 = vld [vmem:[%s2041 + $0x20] sm:$0xff]
    %v2044 = vld [vmem:[%s2041 + $0x28] sm:$0xff]
    %v2045 = vld [vmem:[#allocation4] sm:$0xff]
    %v2046 = vld [vmem:[#allocation10] sm:$0xff]
    %v2047 = vld [vmem:[#allocation10 + $0x8] sm:$0xff]
    %v2048 = vld [vmem:[#allocation10 + $0x10] sm:$0xff]
    %v2049 = vld [vmem:[#allocation10 + $0x18] sm:$0xff]
    %v2050 = vld [vmem:[#allocation10 + $0x20] sm:$0xff]
    %v2051 = vld [vmem:[#allocation10 + $0x28] sm:$0xff]
    %v2052 = vld [vmem:[#allocation10 + $0x30] sm:$0xff]
    %v2053 = vld [vmem:[#allocation10 + $0x38] sm:$0xff]
    %v2054 = vld [vmem:[#allocation10 + $0x40] sm:$0xff]
    %v2055 = vld [vmem:[#allocation10 + $0x48] sm:$0xff]
    %v2056 = vld [vmem:[#allocation10 + $0x50] sm:$0xff]
    %v2057 = vld [vmem:[#allocation10 + $0x58] sm:$0xff]
    %v2058 = vld [vmem:[#allocation10 + $0x60] sm:$0xff]
    %v2059 = vld [vmem:[#allocation10 + $0x68] sm:$0xff]
    %v2060 = vld [vmem:[#allocation10 + $0x70] sm:$0xff]
    %v2061 = vld [vmem:[#allocation10 + $0x78] sm:$0xff]
    %v2062 = vld [vmem:[#allocation10 + $0x80] sm:$0xff]
    %v2063 = vld [vmem:[#allocation10 + $0x88] sm:$0xff]
    %v2064 = vld [vmem:[#allocation10 + $0x90] sm:$0xff]
    %v2065 = vld [vmem:[#allocation10 + $0x98] sm:$0xff]
    %v2066 = vld [vmem:[#allocation10 + $0xa0] sm:$0xff]
    %v2067 = vld [vmem:[#allocation10 + $0xa8] sm:$0xff]
    %v2068 = vld [vmem:[#allocation10 + $0xb0] sm:$0xff]
    %v2069 = vld [vmem:[#allocation10 + $0xb8] sm:$0xff]
    %v2070 = vld [vmem:[#allocation10 + $0xc0] sm:$0xff]
    %v2071 = vld [vmem:[#allocation10 + $0xc8] sm:$0xff]
    %v2072 = vld [vmem:[#allocation10 + $0xd0] sm:$0xff]
    %v2073 = vld [vmem:[#allocation10 + $0xd8] sm:$0xff]
    %v2074 = vld [vmem:[#allocation10 + $0xe0] sm:$0xff]
    %v2075 = vld [vmem:[#allocation10 + $0xe8] sm:$0xff]
    %v2076 = vld [vmem:[#allocation10 + $0xf0] sm:$0xff]
    %v2077 = vld [vmem:[#allocation10 + $0xf8] sm:$0xff]
    %v2078 = vld [vmem:[#allocation10 + $0x100] sm:$0xff]
    %v2079 = vld [vmem:[#allocation10 + $0x108] sm:$0xff]
    %v2080 = vld [vmem:[#allocation10 + $0x110] sm:$0xff]
    %v2081 = vld [vmem:[#allocation10 + $0x118] sm:$0xff]
    %v2082 = vld [vmem:[#allocation10 + $0x120] sm:$0xff]
    %v2083 = vld [vmem:[#allocation10 + $0x128] sm:$0xff]
    %v2084 = vld [vmem:[#allocation10 + $0x130] sm:$0xff]
    %v2085 = vld [vmem:[#allocation10 + $0x138] sm:$0xff]
    %v2086 = vld [vmem:[#allocation10 + $0x140] sm:$0xff]
    %v2087 = vld [vmem:[#allocation10 + $0x148] sm:$0xff]
    %v2088 = vld [vmem:[#allocation10 + $0x150] sm:$0xff]
    %v2089 = vld [vmem:[#allocation10 + $0x158] sm:$0xff]
    %v2090 = vld [vmem:[#allocation10 + $0x160] sm:$0xff]
    %v2091 = vld [vmem:[#allocation10 + $0x168] sm:$0xff]
    %v2092 = vld [vmem:[#allocation10 + $0x170] sm:$0xff]
    %v2093 = vld [vmem:[#allocation10 + $0x178] sm:$0xff]
    %2094 = vmatprep.subr.mxu0 %v2092
    %2095 = vmatpush1.msra.mxu0 %v2091
    %2096 = vmatprep.subr.mxu0 %v2089
    %2097 = vmatpush1.msra.mxu0 %v2088
    %2098 = vmatprep.subr.mxu0 %v2086
    %2099 = vmatpush1.msra.mxu0 %v2085
    %2100 = vmatprep.subr.mxu0 %v2083
    %2101 = vmatpush1.msra.mxu0 %v2082
    %2102 = vmatprep.subr.mxu0 %v2080
    %2103 = vmatpush1.msra.mxu0 %v2079
    %2104 = vmatprep.subr.mxu0 %v2077
    %2105 = vmatpush1.msra.mxu0 %v2076
    %2106 = vmatprep.subr.mxu0 %v2074
    %2107 = vmatpush1.msra.mxu0 %v2073
    %2108 = vmatprep.subr.mxu0 %v2071
    %2109 = vmatpush1.msra.mxu0 %v2070
    %2110 = vmatprep.subr.mxu0 %v2068
    %2111 = vmatpush1.msra.mxu0 %v2067
    %2112 = vmatprep.subr.mxu0 %v2065
    %2113 = vmatpush1.msra.mxu0 %v2064
    %2114 = vmatprep.subr.mxu0 %v2062
    %2115 = vmatpush1.msra.mxu0 %v2061
    %2116 = vmatprep.subr.mxu0 %v2059
    %2117 = vmatpush1.msra.mxu0 %v2058
    %2118 = vmatprep.subr.mxu0 %v2056
    %2119 = vmatpush1.msra.mxu0 %v2055
    %2120 = vmatprep.subr.mxu0 %v2053
    %2121 = vmatpush1.msra.mxu0 %v2052
    %2122 = vmatprep.subr.mxu0 %v2050
    %2123 = vmatpush1.msra.mxu0 %v2049
    %2124 = vmatprep.subr.mxu0 %v2047
    %2125 = vmatpush1.msra.mxu0 %v2046
    %2126 = vmatprep.subr.mxu0 0.0
    %2127 = vmatpush2.msra.mxu0 0.0
    %2128 = vmatprep.subr.mxu0 0.0
    %2129 = vmatpush2.msra.mxu0 0.0
    %2130 = vmatprep.subr.mxu0 0.0
    %2131 = vmatpush2.msra.mxu0 0.0
    %2132 = vmatprep.subr.mxu0 0.0
    %2133 = vmatpush2.msra.mxu0 0.0
    %2134 = vmatprep.subr.mxu0 0.0
    %2135 = vmatpush2.msra.mxu0 0.0
    %2136 = vmatprep.subr.mxu0 0.0
    %2137 = vmatpush2.msra.mxu0 0.0
    %2138 = vmatprep.subr.mxu0 0.0
    %2139 = vmatpush2.msra.mxu0 0.0
    %2140 = vmatprep.subr.mxu0 0.0
    %2141 = vmatpush2.msra.mxu0 0.0
    %2142 = vmatprep.subr.mxu0 0.0
    %2143 = vmatpush2.msra.mxu0 0.0
    %2144 = vmatprep.subr.mxu0 0.0
    %2145 = vmatpush2.msra.mxu0 0.0
    %2146 = vmatprep.subr.mxu0 0.0
    %2147 = vmatpush2.msra.mxu0 0.0
    %2148 = vmatprep.subr.mxu0 0.0
    %2149 = vmatpush2.msra.mxu0 0.0
    %2150 = vmatprep.subr.mxu0 0.0
    %2151 = vmatpush2.msra.mxu0 0.0
    %2152 = vmatprep.subr.mxu0 0.0
    %2153 = vmatpush2.msra.mxu0 0.0
    %2154 = vmatprep.subr.mxu0 0.0
    %2155 = vmatpush2.msra.mxu0 0.0
    %2156 = vmatprep.subr.mxu0 0.0
    %2157 = vmatpush2.msra.mxu0 0.0
    %2158 = vmatprep.mubr.f32.mxu0 0.0
    %2159 = vmatmul.mubr.f32.gmra.mxu0 %v2045
    %v2160 = vpop.f32.mrf.mxu0
    %v2161 = vadd.f32 0.0, %v2160
    %v2162 = vpop.f32.mrf.mxu0
    %v2163 = vadd.f32 0.0, %v2162
    %2164 = vdwg.mxu0
    %2165 = vmatprep.subr.mxu0 0.0
    %2166 = vmatpush1.msra.mxu0 %v2093
    %2167 = vmatprep.subr.mxu0 0.0
    %2168 = vmatpush1.msra.mxu0 %v2090
    %2169 = vmatprep.subr.mxu0 0.0
    %2170 = vmatpush1.msra.mxu0 %v2087
    %2171 = vmatprep.subr.mxu0 0.0
    %2172 = vmatpush1.msra.mxu0 %v2084
    %2173 = vmatprep.subr.mxu0 0.0
    %2174 = vmatpush1.msra.mxu0 %v2081
    %2175 = vmatprep.subr.mxu0 0.0
    %2176 = vmatpush1.msra.mxu0 %v2078
    %2177 = vmatprep.subr.mxu0 0.0
    %2178 = vmatpush1.msra.mxu0 %v2075
    %2179 = vmatprep.subr.mxu0 0.0
    %2180 = vmatpush1.msra.mxu0 %v2072
    %2181 = vmatprep.subr.mxu0 0.0
    %2182 = vmatpush1.msra.mxu0 %v2069
    %2183 = vmatprep.subr.mxu0 0.0
    %2184 = vmatpush1.msra.mxu0 %v2066
    %2185 = vmatprep.subr.mxu0 0.0
    %2186 = vmatpush1.msra.mxu0 %v2063
    %2187 = vmatprep.subr.mxu0 0.0
    %2188 = vmatpush1.msra.mxu0 %v2060
    %2189 = vmatprep.subr.mxu0 0.0
    %2190 = vmatpush1.msra.mxu0 %v2057
    %2191 = vmatprep.subr.mxu0 0.0
    %2192 = vmatpush1.msra.mxu0 %v2054
    %2193 = vmatprep.subr.mxu0 0.0
    %2194 = vmatpush1.msra.mxu0 %v2051
    %2195 = vmatprep.subr.mxu0 0.0
    %2196 = vmatpush1.msra.mxu0 %v2048
    %2197 = vmatprep.subr.mxu0 0.0
    %2198 = vmatpush2.msra.mxu0 0.0
    %2199 = vmatprep.subr.mxu0 0.0
    %2200 = vmatpush2.msra.mxu0 0.0
    %2201 = vmatprep.subr.mxu0 0.0
    %2202 = vmatpush2.msra.mxu0 0.0
    %2203 = vmatprep.subr.mxu0 0.0
    %2204 = vmatpush2.msra.mxu0 0.0
    %2205 = vmatprep.subr.mxu0 0.0
    %2206 = vmatpush2.msra.mxu0 0.0
    %2207 = vmatprep.subr.mxu0 0.0
    %2208 = vmatpush2.msra.mxu0 0.0
    %2209 = vmatprep.subr.mxu0 0.0
    %2210 = vmatpush2.msra.mxu0 0.0
    %2211 = vmatprep.subr.mxu0 0.0
    %2212 = vmatpush2.msra.mxu0 0.0
    %2213 = vmatprep.subr.mxu0 0.0
    %2214 = vmatpush2.msra.mxu0 0.0
    %2215 = vmatprep.subr.mxu0 0.0
    %2216 = vmatpush2.msra.mxu0 0.0
    %2217 = vmatprep.subr.mxu0 0.0
    %2218 = vmatpush2.msra.mxu0 0.0
    %2219 = vmatprep.subr.mxu0 0.0
    %2220 = vmatpush2.msra.mxu0 0.0
    %2221 = vmatprep.subr.mxu0 0.0
    %2222 = vmatpush2.msra.mxu0 0.0
    %2223 = vmatprep.subr.mxu0 0.0
    %2224 = vmatpush2.msra.mxu0 0.0
    %2225 = vmatprep.subr.mxu0 0.0
    %2226 = vmatpush2.msra.mxu0 0.0
    %2227 = vmatprep.subr.mxu0 0.0
    %2228 = vmatpush2.msra.mxu0 0.0
    %2229 = vmatprep.mubr.f32.mxu0 0.0
    %2230 = vmatmul.mubr.f32.gmra.mxu0 %v2045
    %v2231 = vpop.f32.mrf.mxu0
    %v2232 = vadd.f32 0.0, %v2231
    %v2233 = vpop.f32.mrf.mxu0
    %2234 = vdwg.mxu0
    %v2235 = vadd.f32 %v2042, %v2161
    %v2236 = vsub.f32 0.0, %v2235
    %v2237 = vmul.f32 %v2236, 1.442695
    %v2238 = vpow.pop %v2237
    %v2239 = vadd.f32 %v2238, 1.0
    %v2240 = vrcp.pop %v2239
    %v2241 = vadd.f32 %v2043, %v2163
    %v2242 = vsub.f32 0.0, %v2241
    %v2243 = vmul.f32 %v2242, 1.442695
    %v2244 = vpow.pop %v2243
    %v2245 = vadd.f32 %v2244, 1.0
    %v2246 = vrcp.pop %v2245
    %v2247 = vadd.f32 %v2232, %v919
    %v2248 = vmul.f32 %v2240, %v2247
    %v2249 = vadd.f32 %v2044, %v2248
    %v2250 = vtanh.pop %v2249
    %v2251 = vsub.f32 1.0, %v2246
    %v2252 = vmul.f32 %v2251, %v2250
    %v2253 = vmul.f32 %v2246, %v2045
    %v2254 = vadd.f32 %v2252, %v2253
    %2255 = vst [vmem:[#allocation3] sm:$0xff] %v2038
    %2256 = vst [vmem:[#allocation4] sm:$0xff] %v2254
    %s2257 = smul.u32 3, 2
    %s2258 = smul.addr %s2257, 8
    %s2259 = scalar_lea.vmem [#allocation11], %s2258
    %2260 = vst [vmem:[%s2259] sm:$0xff] %v2038
    %s2261 = smul.u32 4, 2
    %s2262 = smul.addr %s2261, 8
    %s2263 = scalar_lea.vmem [#allocation11], %s2262
    %2264 = vst [vmem:[%s2263 + $0x8] sm:$0xff] %v2254
    %v2265 = vld [vmem:[%s2041] sm:$0xff]
    %v2266 = vld [vmem:[%s2041 + $0x8] sm:$0xff]
    %v2267 = vld [vmem:[%s2041 + $0x10] sm:$0xff]
    %v2268 = vld [vmem:[#allocation3] sm:$0xff]
    %v2269 = vld [vmem:[#allocation8] sm:$0xff]
    %v2270 = vld [vmem:[#allocation8 + $0x8] sm:$0xff]
    %v2271 = vld [vmem:[#allocation8 + $0x10] sm:$0xff]
    %v2272 = vld [vmem:[#allocation8 + $0x18] sm:$0xff]
    %v2273 = vld [vmem:[#allocation8 + $0x20] sm:$0xff]
    %v2274 = vld [vmem:[#allocation8 + $0x28] sm:$0xff]
    %v2275 = vld [vmem:[#allocation8 + $0x30] sm:$0xff]
    %v2276 = vld [vmem:[#allocation8 + $0x38] sm:$0xff]
    %v2277 = vld [vmem:[#allocation8 + $0x40] sm:$0xff]
    %v2278 = vld [vmem:[#allocation8 + $0x48] sm:$0xff]
    %v2279 = vld [vmem:[#allocation8 + $0x50] sm:$0xff]
    %v2280 = vld [vmem:[#allocation8 + $0x58] sm:$0xff]
    %v2281 = vld [vmem:[#allocation8 + $0x60] sm:$0xff]
    %v2282 = vld [vmem:[#allocation8 + $0x68] sm:$0xff]
    %v2283 = vld [vmem:[#allocation8 + $0x70] sm:$0xff]
    %v2284 = vld [vmem:[#allocation8 + $0x78] sm:$0xff]
    %v2285 = vld [vmem:[#allocation8 + $0x80] sm:$0xff]
    %v2286 = vld [vmem:[#allocation8 + $0x88] sm:$0xff]
    %v2287 = vld [vmem:[#allocation8 + $0x90] sm:$0xff]
    %v2288 = vld [vmem:[#allocation8 + $0x98] sm:$0xff]
    %v2289 = vld [vmem:[#allocation8 + $0xa0] sm:$0xff]
    %v2290 = vld [vmem:[#allocation8 + $0xa8] sm:$0xff]
    %v2291 = vld [vmem:[#allocation8 + $0xb0] sm:$0xff]
    %v2292 = vld [vmem:[#allocation8 + $0xb8] sm:$0xff]
    %v2293 = vld [vmem:[#allocation8 + $0xc0] sm:$0xff]
    %v2294 = vld [vmem:[#allocation8 + $0xc8] sm:$0xff]
    %v2295 = vld [vmem:[#allocation8 + $0xd0] sm:$0xff]
    %v2296 = vld [vmem:[#allocation8 + $0xd8] sm:$0xff]
    %v2297 = vld [vmem:[#allocation8 + $0xe0] sm:$0xff]
    %v2298 = vld [vmem:[#allocation8 + $0xe8] sm:$0xff]
    %v2299 = vld [vmem:[#allocation8 + $0xf0] sm:$0xff]
    %v2300 = vld [vmem:[#allocation8 + $0xf8] sm:$0xff]
    %v2301 = vld [vmem:[#allocation8 + $0x100] sm:$0xff]
    %v2302 = vld [vmem:[#allocation8 + $0x108] sm:$0xff]
    %v2303 = vld [vmem:[#allocation8 + $0x110] sm:$0xff]
    %v2304 = vld [vmem:[#allocation8 + $0x118] sm:$0xff]
    %v2305 = vld [vmem:[#allocation8 + $0x120] sm:$0xff]
    %v2306 = vld [vmem:[#allocation8 + $0x128] sm:$0xff]
    %v2307 = vld [vmem:[#allocation8 + $0x130] sm:$0xff]
    %v2308 = vld [vmem:[#allocation8 + $0x138] sm:$0xff]
    %v2309 = vld [vmem:[#allocation8 + $0x140] sm:$0xff]
    %v2310 = vld [vmem:[#allocation8 + $0x148] sm:$0xff]
    %v2311 = vld [vmem:[#allocation8 + $0x150] sm:$0xff]
    %v2312 = vld [vmem:[#allocation8 + $0x158] sm:$0xff]
    %v2313 = vld [vmem:[#allocation8 + $0x160] sm:$0xff]
    %v2314 = vld [vmem:[#allocation8 + $0x168] sm:$0xff]
    %v2315 = vld [vmem:[#allocation8 + $0x170] sm:$0xff]
    %v2316 = vld [vmem:[#allocation8 + $0x178] sm:$0xff]
    %2317 = vmatprep.subr.mxu0 %v2315
    %2318 = vmatpush1.msra.mxu0 %v2314
    %2319 = vmatprep.subr.mxu0 %v2312
    %2320 = vmatpush1.msra.mxu0 %v2311
    %2321 = vmatprep.subr.mxu0 %v2309
    %2322 = vmatpush1.msra.mxu0 %v2308
    %2323 = vmatprep.subr.mxu0 %v2306
    %2324 = vmatpush1.msra.mxu0 %v2305
    %2325 = vmatprep.subr.mxu0 %v2303
    %2326 = vmatpush1.msra.mxu0 %v2302
    %2327 = vmatprep.subr.mxu0 %v2300
    %2328 = vmatpush1.msra.mxu0 %v2299
    %2329 = vmatprep.subr.mxu0 %v2297
    %2330 = vmatpush1.msra.mxu0 %v2296
    %2331 = vmatprep.subr.mxu0 %v2294
    %2332 = vmatpush1.msra.mxu0 %v2293
    %2333 = vmatprep.subr.mxu0 %v2291
    %2334 = vmatpush1.msra.mxu0 %v2290
    %2335 = vmatprep.subr.mxu0 %v2288
    %2336 = vmatpush1.msra.mxu0 %v2287
    %2337 = vmatprep.subr.mxu0 %v2285
    %2338 = vmatpush1.msra.mxu0 %v2284
    %2339 = vmatprep.subr.mxu0 %v2282
    %2340 = vmatpush1.msra.mxu0 %v2281
    %2341 = vmatprep.subr.mxu0 %v2279
    %2342 = vmatpush1.msra.mxu0 %v2278
    %2343 = vmatprep.subr.mxu0 %v2276
    %2344 = vmatpush1.msra.mxu0 %v2275
    %2345 = vmatprep.subr.mxu0 %v2273
    %2346 = vmatpush1.msra.mxu0 %v2272
    %2347 = vmatprep.subr.mxu0 %v2270
    %2348 = vmatpush1.msra.mxu0 %v2269
    %2349 = vmatprep.subr.mxu0 0.0
    %2350 = vmatpush2.msra.mxu0 0.0
    %2351 = vmatprep.subr.mxu0 0.0
    %2352 = vmatpush2.msra.mxu0 0.0
    %2353 = vmatprep.subr.mxu0 0.0
    %2354 = vmatpush2.msra.mxu0 0.0
    %2355 = vmatprep.subr.mxu0 0.0
    %2356 = vmatpush2.msra.mxu0 0.0
    %2357 = vmatprep.subr.mxu0 0.0
    %2358 = vmatpush2.msra.mxu0 0.0
    %2359 = vmatprep.subr.mxu0 0.0
    %2360 = vmatpush2.msra.mxu0 0.0
    %2361 = vmatprep.subr.mxu0 0.0
    %2362 = vmatpush2.msra.mxu0 0.0
    %2363 = vmatprep.subr.mxu0 0.0
    %2364 = vmatpush2.msra.mxu0 0.0
    %2365 = vmatprep.subr.mxu0 0.0
    %2366 = vmatpush2.msra.mxu0 0.0
    %2367 = vmatprep.subr.mxu0 0.0
    %2368 = vmatpush2.msra.mxu0 0.0
    %2369 = vmatprep.subr.mxu0 0.0
    %2370 = vmatpush2.msra.mxu0 0.0
    %2371 = vmatprep.subr.mxu0 0.0
    %2372 = vmatpush2.msra.mxu0 0.0
    %2373 = vmatprep.subr.mxu0 0.0
    %2374 = vmatpush2.msra.mxu0 0.0
    %2375 = vmatprep.subr.mxu0 0.0
    %2376 = vmatpush2.msra.mxu0 0.0
    %2377 = vmatprep.subr.mxu0 0.0
    %2378 = vmatpush2.msra.mxu0 0.0
    %2379 = vmatprep.subr.mxu0 0.0
    %2380 = vmatpush2.msra.mxu0 0.0
    %2381 = vmatprep.mubr.f32.mxu0 0.0
    %2382 = vmatmul.mubr.f32.gmra.mxu0 %v2268
    %v2383 = vpop.f32.mrf.mxu0
    %v2384 = vadd.f32 0.0, %v2383
    %v2385 = vpop.f32.mrf.mxu0
    %v2386 = vadd.f32 0.0, %v2385
    %2387 = vdwg.mxu0
    %2388 = vmatprep.subr.mxu0 0.0
    %2389 = vmatpush1.msra.mxu0 %v2316
    %2390 = vmatprep.subr.mxu0 0.0
    %2391 = vmatpush1.msra.mxu0 %v2313
    %2392 = vmatprep.subr.mxu0 0.0
    %2393 = vmatpush1.msra.mxu0 %v2310
    %2394 = vmatprep.subr.mxu0 0.0
    %2395 = vmatpush1.msra.mxu0 %v2307
    %2396 = vmatprep.subr.mxu0 0.0
    %2397 = vmatpush1.msra.mxu0 %v2304
    %2398 = vmatprep.subr.mxu0 0.0
    %2399 = vmatpush1.msra.mxu0 %v2301
    %2400 = vmatprep.subr.mxu0 0.0
    %2401 = vmatpush1.msra.mxu0 %v2298
    %2402 = vmatprep.subr.mxu0 0.0
    %2403 = vmatpush1.msra.mxu0 %v2295
    %2404 = vmatprep.subr.mxu0 0.0
    %2405 = vmatpush1.msra.mxu0 %v2292
    %2406 = vmatprep.subr.mxu0 0.0
    %2407 = vmatpush1.msra.mxu0 %v2289
    %2408 = vmatprep.subr.mxu0 0.0
    %2409 = vmatpush1.msra.mxu0 %v2286
    %2410 = vmatprep.subr.mxu0 0.0
    %2411 = vmatpush1.msra.mxu0 %v2283
    %2412 = vmatprep.subr.mxu0 0.0
    %2413 = vmatpush1.msra.mxu0 %v2280
    %2414 = vmatprep.subr.mxu0 0.0
    %2415 = vmatpush1.msra.mxu0 %v2277
    %2416 = vmatprep.subr.mxu0 0.0
    %2417 = vmatpush1.msra.mxu0 %v2274
    %2418 = vmatprep.subr.mxu0 0.0
    %2419 = vmatpush1.msra.mxu0 %v2271
    %2420 = vmatprep.subr.mxu0 0.0
    %2421 = vmatpush2.msra.mxu0 0.0
    %2422 = vmatprep.subr.mxu0 0.0
    %2423 = vmatpush2.msra.mxu0 0.0
    %2424 = vmatprep.subr.mxu0 0.0
    %2425 = vmatpush2.msra.mxu0 0.0
    %2426 = vmatprep.subr.mxu0 0.0
    %2427 = vmatpush2.msra.mxu0 0.0
    %2428 = vmatprep.subr.mxu0 0.0
    %2429 = vmatpush2.msra.mxu0 0.0
    %2430 = vmatprep.subr.mxu0 0.0
    %2431 = vmatpush2.msra.mxu0 0.0
    %2432 = vmatprep.subr.mxu0 0.0
    %2433 = vmatpush2.msra.mxu0 0.0
    %2434 = vmatprep.subr.mxu0 0.0
    %2435 = vmatpush2.msra.mxu0 0.0
    %2436 = vmatprep.subr.mxu0 0.0
    %2437 = vmatpush2.msra.mxu0 0.0
    %2438 = vmatprep.subr.mxu0 0.0
    %2439 = vmatpush2.msra.mxu0 0.0
    %2440 = vmatprep.subr.mxu0 0.0
    %2441 = vmatpush2.msra.mxu0 0.0
    %2442 = vmatprep.subr.mxu0 0.0
    %2443 = vmatpush2.msra.mxu0 0.0
    %2444 = vmatprep.subr.mxu0 0.0
    %2445 = vmatpush2.msra.mxu0 0.0
    %2446 = vmatprep.subr.mxu0 0.0
    %2447 = vmatpush2.msra.mxu0 0.0
    %2448 = vmatprep.subr.mxu0 0.0
    %2449 = vmatpush2.msra.mxu0 0.0
    %2450 = vmatprep.subr.mxu0 0.0
    %2451 = vmatpush2.msra.mxu0 0.0
    %2452 = vmatprep.mubr.f32.mxu0 0.0
    %2453 = vmatmul.mubr.f32.gmra.mxu0 %v2268
    %v2454 = vpop.f32.mrf.mxu0
    %v2455 = vadd.f32 0.0, %v2454
    %v2456 = vpop.f32.mrf.mxu0
    %2457 = vdwg.mxu0
    %v2458 = vadd.f32 %v2265, %v2384
    %v2459 = vsub.f32 0.0, %v2458
    %v2460 = vmul.f32 %v2459, 1.442695
    %v2461 = vpow.pop %v2460
    %v2462 = vadd.f32 %v2461, 1.0
    %v2463 = vrcp.pop %v2462
    %v2464 = vadd.f32 %v2266, %v2386
    %v2465 = vsub.f32 0.0, %v2464
    %v2466 = vmul.f32 %v2465, 1.442695
    %v2467 = vpow.pop %v2466
    %v2468 = vadd.f32 %v2467, 1.0
    %v2469 = vrcp.pop %v2468
    %v2470 = vadd.f32 %v2455, %v697
    %v2471 = vmul.f32 %v2463, %v2470
    %v2472 = vadd.f32 %v2267, %v2471
    %v2473 = vtanh.pop %v2472
    %v2474 = vsub.f32 1.0, %v2469
    %v2475 = vmul.f32 %v2474, %v2473
    %v2476 = vmul.f32 %v2469, %v2268
    %v2477 = vadd.f32 %v2475, %v2476
    %v2478 = vld [vmem:[%s1825 + $0x18] sm:$0xff]
    %v2479 = vld [vmem:[%s1825 + $0x20] sm:$0xff]
    %v2480 = vld [vmem:[%s1825 + $0x28] sm:$0xff]
    %v2481 = vld [vmem:[#allocation4] sm:$0xff]
    %v2482 = vld [vmem:[#allocation10] sm:$0xff]
    %v2483 = vld [vmem:[#allocation10 + $0x8] sm:$0xff]
    %v2484 = vld [vmem:[#allocation10 + $0x10] sm:$0xff]
    %v2485 = vld [vmem:[#allocation10 + $0x18] sm:$0xff]
    %v2486 = vld [vmem:[#allocation10 + $0x20] sm:$0xff]
    %v2487 = vld [vmem:[#allocation10 + $0x28] sm:$0xff]
    %v2488 = vld [vmem:[#allocation10 + $0x30] sm:$0xff]
    %v2489 = vld [vmem:[#allocation10 + $0x38] sm:$0xff]
    %v2490 = vld [vmem:[#allocation10 + $0x40] sm:$0xff]
    %v2491 = vld [vmem:[#allocation10 + $0x48] sm:$0xff]
    %v2492 = vld [vmem:[#allocation10 + $0x50] sm:$0xff]
    %v2493 = vld [vmem:[#allocation10 + $0x58] sm:$0xff]
    %v2494 = vld [vmem:[#allocation10 + $0x60] sm:$0xff]
    %v2495 = vld [vmem:[#allocation10 + $0x68] sm:$0xff]
    %v2496 = vld [vmem:[#allocation10 + $0x70] sm:$0xff]
    %v2497 = vld [vmem:[#allocation10 + $0x78] sm:$0xff]
    %v2498 = vld [vmem:[#allocation10 + $0x80] sm:$0xff]
    %v2499 = vld [vmem:[#allocation10 + $0x88] sm:$0xff]
    %v2500 = vld [vmem:[#allocation10 + $0x90] sm:$0xff]
    %v2501 = vld [vmem:[#allocation10 + $0x98] sm:$0xff]
    %v2502 = vld [vmem:[#allocation10 + $0xa0] sm:$0xff]
    %v2503 = vld [vmem:[#allocation10 + $0xa8] sm:$0xff]
    %v2504 = vld [vmem:[#allocation10 + $0xb0] sm:$0xff]
    %v2505 = vld [vmem:[#allocation10 + $0xb8] sm:$0xff]
    %v2506 = vld [vmem:[#allocation10 + $0xc0] sm:$0xff]
    %v2507 = vld [vmem:[#allocation10 + $0xc8] sm:$0xff]
    %v2508 = vld [vmem:[#allocation10 + $0xd0] sm:$0xff]
    %v2509 = vld [vmem:[#allocation10 + $0xd8] sm:$0xff]
    %v2510 = vld [vmem:[#allocation10 + $0xe0] sm:$0xff]
    %v2511 = vld [vmem:[#allocation10 + $0xe8] sm:$0xff]
    %v2512 = vld [vmem:[#allocation10 + $0xf0] sm:$0xff]
    %v2513 = vld [vmem:[#allocation10 + $0xf8] sm:$0xff]
    %v2514 = vld [vmem:[#allocation10 + $0x100] sm:$0xff]
    %v2515 = vld [vmem:[#allocation10 + $0x108] sm:$0xff]
    %v2516 = vld [vmem:[#allocation10 + $0x110] sm:$0xff]
    %v2517 = vld [vmem:[#allocation10 + $0x118] sm:$0xff]
    %v2518 = vld [vmem:[#allocation10 + $0x120] sm:$0xff]
    %v2519 = vld [vmem:[#allocation10 + $0x128] sm:$0xff]
    %v2520 = vld [vmem:[#allocation10 + $0x130] sm:$0xff]
    %v2521 = vld [vmem:[#allocation10 + $0x138] sm:$0xff]
    %v2522 = vld [vmem:[#allocation10 + $0x140] sm:$0xff]
    %v2523 = vld [vmem:[#allocation10 + $0x148] sm:$0xff]
    %v2524 = vld [vmem:[#allocation10 + $0x150] sm:$0xff]
    %v2525 = vld [vmem:[#allocation10 + $0x158] sm:$0xff]
    %v2526 = vld [vmem:[#allocation10 + $0x160] sm:$0xff]
    %v2527 = vld [vmem:[#allocation10 + $0x168] sm:$0xff]
    %v2528 = vld [vmem:[#allocation10 + $0x170] sm:$0xff]
    %v2529 = vld [vmem:[#allocation10 + $0x178] sm:$0xff]
    %2530 = vmatprep.subr.mxu0 %v2528
    %2531 = vmatpush1.msra.mxu0 %v2527
    %2532 = vmatprep.subr.mxu0 %v2525
    %2533 = vmatpush1.msra.mxu0 %v2524
    %2534 = vmatprep.subr.mxu0 %v2522
    %2535 = vmatpush1.msra.mxu0 %v2521
    %2536 = vmatprep.subr.mxu0 %v2519
    %2537 = vmatpush1.msra.mxu0 %v2518
    %2538 = vmatprep.subr.mxu0 %v2516
    %2539 = vmatpush1.msra.mxu0 %v2515
    %2540 = vmatprep.subr.mxu0 %v2513
    %2541 = vmatpush1.msra.mxu0 %v2512
    %2542 = vmatprep.subr.mxu0 %v2510
    %2543 = vmatpush1.msra.mxu0 %v2509
    %2544 = vmatprep.subr.mxu0 %v2507
    %2545 = vmatpush1.msra.mxu0 %v2506
    %2546 = vmatprep.subr.mxu0 %v2504
    %2547 = vmatpush1.msra.mxu0 %v2503
    %2548 = vmatprep.subr.mxu0 %v2501
    %2549 = vmatpush1.msra.mxu0 %v2500
    %2550 = vmatprep.subr.mxu0 %v2498
    %2551 = vmatpush1.msra.mxu0 %v2497
    %2552 = vmatprep.subr.mxu0 %v2495
    %2553 = vmatpush1.msra.mxu0 %v2494
    %2554 = vmatprep.subr.mxu0 %v2492
    %2555 = vmatpush1.msra.mxu0 %v2491
    %2556 = vmatprep.subr.mxu0 %v2489
    %2557 = vmatpush1.msra.mxu0 %v2488
    %2558 = vmatprep.subr.mxu0 %v2486
    %2559 = vmatpush1.msra.mxu0 %v2485
    %2560 = vmatprep.subr.mxu0 %v2483
    %2561 = vmatpush1.msra.mxu0 %v2482
    %2562 = vmatprep.subr.mxu0 0.0
    %2563 = vmatpush2.msra.mxu0 0.0
    %2564 = vmatprep.subr.mxu0 0.0
    %2565 = vmatpush2.msra.mxu0 0.0
    %2566 = vmatprep.subr.mxu0 0.0
    %2567 = vmatpush2.msra.mxu0 0.0
    %2568 = vmatprep.subr.mxu0 0.0
    %2569 = vmatpush2.msra.mxu0 0.0
    %2570 = vmatprep.subr.mxu0 0.0
    %2571 = vmatpush2.msra.mxu0 0.0
    %2572 = vmatprep.subr.mxu0 0.0
    %2573 = vmatpush2.msra.mxu0 0.0
    %2574 = vmatprep.subr.mxu0 0.0
    %2575 = vmatpush2.msra.mxu0 0.0
    %2576 = vmatprep.subr.mxu0 0.0
    %2577 = vmatpush2.msra.mxu0 0.0
    %2578 = vmatprep.subr.mxu0 0.0
    %2579 = vmatpush2.msra.mxu0 0.0
    %2580 = vmatprep.subr.mxu0 0.0
    %2581 = vmatpush2.msra.mxu0 0.0
    %2582 = vmatprep.subr.mxu0 0.0
    %2583 = vmatpush2.msra.mxu0 0.0
    %2584 = vmatprep.subr.mxu0 0.0
    %2585 = vmatpush2.msra.mxu0 0.0
    %2586 = vmatprep.subr.mxu0 0.0
    %2587 = vmatpush2.msra.mxu0 0.0
    %2588 = vmatprep.subr.mxu0 0.0
    %2589 = vmatpush2.msra.mxu0 0.0
    %2590 = vmatprep.subr.mxu0 0.0
    %2591 = vmatpush2.msra.mxu0 0.0
    %2592 = vmatprep.subr.mxu0 0.0
    %2593 = vmatpush2.msra.mxu0 0.0
    %2594 = vmatprep.mubr.f32.mxu0 0.0
    %2595 = vmatmul.mubr.f32.gmra.mxu0 %v2481
    %v2596 = vpop.f32.mrf.mxu0
    %v2597 = vadd.f32 0.0, %v2596
    %v2598 = vpop.f32.mrf.mxu0
    %v2599 = vadd.f32 0.0, %v2598
    %2600 = vdwg.mxu0
    %2601 = vmatprep.subr.mxu0 0.0
    %2602 = vmatpush1.msra.mxu0 %v2529
    %2603 = vmatprep.subr.mxu0 0.0
    %2604 = vmatpush1.msra.mxu0 %v2526
    %2605 = vmatprep.subr.mxu0 0.0
    %2606 = vmatpush1.msra.mxu0 %v2523
    %2607 = vmatprep.subr.mxu0 0.0
    %2608 = vmatpush1.msra.mxu0 %v2520
    %2609 = vmatprep.subr.mxu0 0.0
    %2610 = vmatpush1.msra.mxu0 %v2517
    %2611 = vmatprep.subr.mxu0 0.0
    %2612 = vmatpush1.msra.mxu0 %v2514
    %2613 = vmatprep.subr.mxu0 0.0
    %2614 = vmatpush1.msra.mxu0 %v2511
    %2615 = vmatprep.subr.mxu0 0.0
    %2616 = vmatpush1.msra.mxu0 %v2508
    %2617 = vmatprep.subr.mxu0 0.0
    %2618 = vmatpush1.msra.mxu0 %v2505
    %2619 = vmatprep.subr.mxu0 0.0
    %2620 = vmatpush1.msra.mxu0 %v2502
    %2621 = vmatprep.subr.mxu0 0.0
    %2622 = vmatpush1.msra.mxu0 %v2499
    %2623 = vmatprep.subr.mxu0 0.0
    %2624 = vmatpush1.msra.mxu0 %v2496
    %2625 = vmatprep.subr.mxu0 0.0
    %2626 = vmatpush1.msra.mxu0 %v2493
    %2627 = vmatprep.subr.mxu0 0.0
    %2628 = vmatpush1.msra.mxu0 %v2490
    %2629 = vmatprep.subr.mxu0 0.0
    %2630 = vmatpush1.msra.mxu0 %v2487
    %2631 = vmatprep.subr.mxu0 0.0
    %2632 = vmatpush1.msra.mxu0 %v2484
    %2633 = vmatprep.subr.mxu0 0.0
    %2634 = vmatpush2.msra.mxu0 0.0
    %2635 = vmatprep.subr.mxu0 0.0
    %2636 = vmatpush2.msra.mxu0 0.0
    %2637 = vmatprep.subr.mxu0 0.0
    %2638 = vmatpush2.msra.mxu0 0.0
    %2639 = vmatprep.subr.mxu0 0.0
    %2640 = vmatpush2.msra.mxu0 0.0
    %2641 = vmatprep.subr.mxu0 0.0
    %2642 = vmatpush2.msra.mxu0 0.0
    %2643 = vmatprep.subr.mxu0 0.0
    %2644 = vmatpush2.msra.mxu0 0.0
    %2645 = vmatprep.subr.mxu0 0.0
    %2646 = vmatpush2.msra.mxu0 0.0
    %2647 = vmatprep.subr.mxu0 0.0
    %2648 = vmatpush2.msra.mxu0 0.0
    %2649 = vmatprep.subr.mxu0 0.0
    %2650 = vmatpush2.msra.mxu0 0.0
    %2651 = vmatprep.subr.mxu0 0.0
    %2652 = vmatpush2.msra.mxu0 0.0
    %2653 = vmatprep.subr.mxu0 0.0
    %2654 = vmatpush2.msra.mxu0 0.0
    %2655 = vmatprep.subr.mxu0 0.0
    %2656 = vmatpush2.msra.mxu0 0.0
    %2657 = vmatprep.subr.mxu0 0.0
    %2658 = vmatpush2.msra.mxu0 0.0
    %2659 = vmatprep.subr.mxu0 0.0
    %2660 = vmatpush2.msra.mxu0 0.0
    %2661 = vmatprep.subr.mxu0 0.0
    %2662 = vmatpush2.msra.mxu0 0.0
    %2663 = vmatprep.subr.mxu0 0.0
    %2664 = vmatpush2.msra.mxu0 0.0
    %2665 = vmatprep.mubr.f32.mxu0 0.0
    %2666 = vmatmul.mubr.f32.gmra.mxu0 %v2481
    %v2667 = vpop.f32.mrf.mxu0
    %v2668 = vadd.f32 0.0, %v2667
    %v2669 = vpop.f32.mrf.mxu0
    %2670 = vdwg.mxu0
    %v2671 = vadd.f32 %v2478, %v2597
    %v2672 = vsub.f32 0.0, %v2671
    %v2673 = vmul.f32 %v2672, 1.442695
    %v2674 = vpow.pop %v2673
    %v2675 = vadd.f32 %v2674, 1.0
    %v2676 = vrcp.pop %v2675
    %v2677 = vadd.f32 %v2479, %v2599
    %v2678 = vsub.f32 0.0, %v2677
    %v2679 = vmul.f32 %v2678, 1.442695
    %v2680 = vpow.pop %v2679
    %v2681 = vadd.f32 %v2680, 1.0
    %v2682 = vrcp.pop %v2681
    %v2683 = vadd.f32 %v2668, %v919
    %v2684 = vmul.f32 %v2676, %v2683
    %v2685 = vadd.f32 %v2480, %v2684
    %v2686 = vtanh.pop %v2685
    %v2687 = vsub.f32 1.0, %v2682
    %v2688 = vmul.f32 %v2687, %v2686
    %v2689 = vmul.f32 %v2682, %v2481
    %v2690 = vadd.f32 %v2688, %v2689
    %2691 = vst [vmem:[#allocation3] sm:$0xff] %v2477
    %2692 = vst [vmem:[#allocation4] sm:$0xff] %v2690
    %2693 = vst [vmem:[%s2263] sm:$0xff] %v2477
    %2694 = vst [vmem:[%s2259 + $0x8] sm:$0xff] %v2690
    %v2695 = vld [vmem:[%s1599] sm:$0xff]
    %v2696 = vld [vmem:[%s1599 + $0x8] sm:$0xff]
    %v2697 = vld [vmem:[%s1599 + $0x10] sm:$0xff]
    %v2698 = vld [vmem:[#allocation3] sm:$0xff]
    %v2699 = vld [vmem:[#allocation8] sm:$0xff]
    %v2700 = vld [vmem:[#allocation8 + $0x8] sm:$0xff]
    %v2701 = vld [vmem:[#allocation8 + $0x10] sm:$0xff]
    %v2702 = vld [vmem:[#allocation8 + $0x18] sm:$0xff]
    %v2703 = vld [vmem:[#allocation8 + $0x20] sm:$0xff]
    %v2704 = vld [vmem:[#allocation8 + $0x28] sm:$0xff]
    %v2705 = vld [vmem:[#allocation8 + $0x30] sm:$0xff]
    %v2706 = vld [vmem:[#allocation8 + $0x38] sm:$0xff]
    %v2707 = vld [vmem:[#allocation8 + $0x40] sm:$0xff]
    %v2708 = vld [vmem:[#allocation8 + $0x48] sm:$0xff]
    %v2709 = vld [vmem:[#allocation8 + $0x50] sm:$0xff]
    %v2710 = vld [vmem:[#allocation8 + $0x58] sm:$0xff]
    %v2711 = vld [vmem:[#allocation8 + $0x60] sm:$0xff]
    %v2712 = vld [vmem:[#allocation8 + $0x68] sm:$0xff]
    %v2713 = vld [vmem:[#allocation8 + $0x70] sm:$0xff]
    %v2714 = vld [vmem:[#allocation8 + $0x78] sm:$0xff]
    %v2715 = vld [vmem:[#allocation8 + $0x80] sm:$0xff]
    %v2716 = vld [vmem:[#allocation8 + $0x88] sm:$0xff]
    %v2717 = vld [vmem:[#allocation8 + $0x90] sm:$0xff]
    %v2718 = vld [vmem:[#allocation8 + $0x98] sm:$0xff]
    %v2719 = vld [vmem:[#allocation8 + $0xa0] sm:$0xff]
    %v2720 = vld [vmem:[#allocation8 + $0xa8] sm:$0xff]
    %v2721 = vld [vmem:[#allocation8 + $0xb0] sm:$0xff]
    %v2722 = vld [vmem:[#allocation8 + $0xb8] sm:$0xff]
    %v2723 = vld [vmem:[#allocation8 + $0xc0] sm:$0xff]
    %v2724 = vld [vmem:[#allocation8 + $0xc8] sm:$0xff]
    %v2725 = vld [vmem:[#allocation8 + $0xd0] sm:$0xff]
    %v2726 = vld [vmem:[#allocation8 + $0xd8] sm:$0xff]
    %v2727 = vld [vmem:[#allocation8 + $0xe0] sm:$0xff]
    %v2728 = vld [vmem:[#allocation8 + $0xe8] sm:$0xff]
    %v2729 = vld [vmem:[#allocation8 + $0xf0] sm:$0xff]
    %v2730 = vld [vmem:[#allocation8 + $0xf8] sm:$0xff]
    %v2731 = vld [vmem:[#allocation8 + $0x100] sm:$0xff]
    %v2732 = vld [vmem:[#allocation8 + $0x108] sm:$0xff]
    %v2733 = vld [vmem:[#allocation8 + $0x110] sm:$0xff]
    %v2734 = vld [vmem:[#allocation8 + $0x118] sm:$0xff]
    %v2735 = vld [vmem:[#allocation8 + $0x120] sm:$0xff]
    %v2736 = vld [vmem:[#allocation8 + $0x128] sm:$0xff]
    %v2737 = vld [vmem:[#allocation8 + $0x130] sm:$0xff]
    %v2738 = vld [vmem:[#allocation8 + $0x138] sm:$0xff]
    %v2739 = vld [vmem:[#allocation8 + $0x140] sm:$0xff]
    %v2740 = vld [vmem:[#allocation8 + $0x148] sm:$0xff]
    %v2741 = vld [vmem:[#allocation8 + $0x150] sm:$0xff]
    %v2742 = vld [vmem:[#allocation8 + $0x158] sm:$0xff]
    %v2743 = vld [vmem:[#allocation8 + $0x160] sm:$0xff]
    %v2744 = vld [vmem:[#allocation8 + $0x168] sm:$0xff]
    %v2745 = vld [vmem:[#allocation8 + $0x170] sm:$0xff]
    %v2746 = vld [vmem:[#allocation8 + $0x178] sm:$0xff]
    %2747 = vmatprep.subr.mxu0 %v2745
    %2748 = vmatpush1.msra.mxu0 %v2744
    %2749 = vmatprep.subr.mxu0 %v2742
    %2750 = vmatpush1.msra.mxu0 %v2741
    %2751 = vmatprep.subr.mxu0 %v2739
    %2752 = vmatpush1.msra.mxu0 %v2738
    %2753 = vmatprep.subr.mxu0 %v2736
    %2754 = vmatpush1.msra.mxu0 %v2735
    %2755 = vmatprep.subr.mxu0 %v2733
    %2756 = vmatpush1.msra.mxu0 %v2732
    %2757 = vmatprep.subr.mxu0 %v2730
    %2758 = vmatpush1.msra.mxu0 %v2729
    %2759 = vmatprep.subr.mxu0 %v2727
    %2760 = vmatpush1.msra.mxu0 %v2726
    %2761 = vmatprep.subr.mxu0 %v2724
    %2762 = vmatpush1.msra.mxu0 %v2723
    %2763 = vmatprep.subr.mxu0 %v2721
    %2764 = vmatpush1.msra.mxu0 %v2720
    %2765 = vmatprep.subr.mxu0 %v2718
    %2766 = vmatpush1.msra.mxu0 %v2717
    %2767 = vmatprep.subr.mxu0 %v2715
    %2768 = vmatpush1.msra.mxu0 %v2714
    %2769 = vmatprep.subr.mxu0 %v2712
    %2770 = vmatpush1.msra.mxu0 %v2711
    %2771 = vmatprep.subr.mxu0 %v2709
    %2772 = vmatpush1.msra.mxu0 %v2708
    %2773 = vmatprep.subr.mxu0 %v2706
    %2774 = vmatpush1.msra.mxu0 %v2705
    %2775 = vmatprep.subr.mxu0 %v2703
    %2776 = vmatpush1.msra.mxu0 %v2702
    %2777 = vmatprep.subr.mxu0 %v2700
    %2778 = vmatpush1.msra.mxu0 %v2699
    %2779 = vmatprep.subr.mxu0 0.0
    %2780 = vmatpush2.msra.mxu0 0.0
    %2781 = vmatprep.subr.mxu0 0.0
    %2782 = vmatpush2.msra.mxu0 0.0
    %2783 = vmatprep.subr.mxu0 0.0
    %2784 = vmatpush2.msra.mxu0 0.0
    %2785 = vmatprep.subr.mxu0 0.0
    %2786 = vmatpush2.msra.mxu0 0.0
    %2787 = vmatprep.subr.mxu0 0.0
    %2788 = vmatpush2.msra.mxu0 0.0
    %2789 = vmatprep.subr.mxu0 0.0
    %2790 = vmatpush2.msra.mxu0 0.0
    %2791 = vmatprep.subr.mxu0 0.0
    %2792 = vmatpush2.msra.mxu0 0.0
    %2793 = vmatprep.subr.mxu0 0.0
    %2794 = vmatpush2.msra.mxu0 0.0
    %2795 = vmatprep.subr.mxu0 0.0
    %2796 = vmatpush2.msra.mxu0 0.0
    %2797 = vmatprep.subr.mxu0 0.0
    %2798 = vmatpush2.msra.mxu0 0.0
    %2799 = vmatprep.subr.mxu0 0.0
    %2800 = vmatpush2.msra.mxu0 0.0
    %2801 = vmatprep.subr.mxu0 0.0
    %2802 = vmatpush2.msra.mxu0 0.0
    %2803 = vmatprep.subr.mxu0 0.0
    %2804 = vmatpush2.msra.mxu0 0.0
    %2805 = vmatprep.subr.mxu0 0.0
    %2806 = vmatpush2.msra.mxu0 0.0
    %2807 = vmatprep.subr.mxu0 0.0
    %2808 = vmatpush2.msra.mxu0 0.0
    %2809 = vmatprep.subr.mxu0 0.0
    %2810 = vmatpush2.msra.mxu0 0.0
    %2811 = vmatprep.mubr.f32.mxu0 0.0
    %2812 = vmatmul.mubr.f32.gmra.mxu0 %v2698
    %v2813 = vpop.f32.mrf.mxu0
    %v2814 = vadd.f32 0.0, %v2813
    %v2815 = vpop.f32.mrf.mxu0
    %v2816 = vadd.f32 0.0, %v2815
    %2817 = vdwg.mxu0
    %2818 = vmatprep.subr.mxu0 0.0
    %2819 = vmatpush1.msra.mxu0 %v2746
    %2820 = vmatprep.subr.mxu0 0.0
    %2821 = vmatpush1.msra.mxu0 %v2743
    %2822 = vmatprep.subr.mxu0 0.0
    %2823 = vmatpush1.msra.mxu0 %v2740
    %2824 = vmatprep.subr.mxu0 0.0
    %2825 = vmatpush1.msra.mxu0 %v2737
    %2826 = vmatprep.subr.mxu0 0.0
    %2827 = vmatpush1.msra.mxu0 %v2734
    %2828 = vmatprep.subr.mxu0 0.0
    %2829 = vmatpush1.msra.mxu0 %v2731
    %2830 = vmatprep.subr.mxu0 0.0
    %2831 = vmatpush1.msra.mxu0 %v2728
    %2832 = vmatprep.subr.mxu0 0.0
    %2833 = vmatpush1.msra.mxu0 %v2725
    %2834 = vmatprep.subr.mxu0 0.0
    %2835 = vmatpush1.msra.mxu0 %v2722
    %2836 = vmatprep.subr.mxu0 0.0
    %2837 = vmatpush1.msra.mxu0 %v2719
    %2838 = vmatprep.subr.mxu0 0.0
    %2839 = vmatpush1.msra.mxu0 %v2716
    %2840 = vmatprep.subr.mxu0 0.0
    %2841 = vmatpush1.msra.mxu0 %v2713
    %2842 = vmatprep.subr.mxu0 0.0
    %2843 = vmatpush1.msra.mxu0 %v2710
    %2844 = vmatprep.subr.mxu0 0.0
    %2845 = vmatpush1.msra.mxu0 %v2707
    %2846 = vmatprep.subr.mxu0 0.0
    %2847 = vmatpush1.msra.mxu0 %v2704
    %2848 = vmatprep.subr.mxu0 0.0
    %2849 = vmatpush1.msra.mxu0 %v2701
    %2850 = vmatprep.subr.mxu0 0.0
    %2851 = vmatpush2.msra.mxu0 0.0
    %2852 = vmatprep.subr.mxu0 0.0
    %2853 = vmatpush2.msra.mxu0 0.0
    %2854 = vmatprep.subr.mxu0 0.0
    %2855 = vmatpush2.msra.mxu0 0.0
    %2856 = vmatprep.subr.mxu0 0.0
    %2857 = vmatpush2.msra.mxu0 0.0
    %2858 = vmatprep.subr.mxu0 0.0
    %2859 = vmatpush2.msra.mxu0 0.0
    %2860 = vmatprep.subr.mxu0 0.0
    %2861 = vmatpush2.msra.mxu0 0.0
    %2862 = vmatprep.subr.mxu0 0.0
    %2863 = vmatpush2.msra.mxu0 0.0
    %2864 = vmatprep.subr.mxu0 0.0
    %2865 = vmatpush2.msra.mxu0 0.0
    %2866 = vmatprep.subr.mxu0 0.0
    %2867 = vmatpush2.msra.mxu0 0.0
    %2868 = vmatprep.subr.mxu0 0.0
    %2869 = vmatpush2.msra.mxu0 0.0
    %2870 = vmatprep.subr.mxu0 0.0
    %2871 = vmatpush2.msra.mxu0 0.0
    %2872 = vmatprep.subr.mxu0 0.0
    %2873 = vmatpush2.msra.mxu0 0.0
    %2874 = vmatprep.subr.mxu0 0.0
    %2875 = vmatpush2.msra.mxu0 0.0
    %2876 = vmatprep.subr.mxu0 0.0
    %2877 = vmatpush2.msra.mxu0 0.0
    %2878 = vmatprep.subr.mxu0 0.0
    %2879 = vmatpush2.msra.mxu0 0.0
    %2880 = vmatprep.subr.mxu0 0.0
    %2881 = vmatpush2.msra.mxu0 0.0
    %2882 = vmatprep.mubr.f32.mxu0 0.0
    %2883 = vmatmul.mubr.f32.gmra.mxu0 %v2698
    %v2884 = vpop.f32.mrf.mxu0
    %v2885 = vadd.f32 0.0, %v2884
    %v2886 = vpop.f32.mrf.mxu0
    %2887 = vdwg.mxu0
    %v2888 = vadd.f32 %v2695, %v2814
    %v2889 = vsub.f32 0.0, %v2888
    %v2890 = vmul.f32 %v2889, 1.442695
    %v2891 = vpow.pop %v2890
    %v2892 = vadd.f32 %v2891, 1.0
    %v2893 = vrcp.pop %v2892
    %v2894 = vadd.f32 %v2696, %v2816
    %v2895 = vsub.f32 0.0, %v2894
    %v2896 = vmul.f32 %v2895, 1.442695
    %v2897 = vpow.pop %v2896
    %v2898 = vadd.f32 %v2897, 1.0
    %v2899 = vrcp.pop %v2898
    %v2900 = vadd.f32 %v2885, %v697
    %v2901 = vmul.f32 %v2893, %v2900
    %v2902 = vadd.f32 %v2697, %v2901
    %v2903 = vtanh.pop %v2902
    %v2904 = vsub.f32 1.0, %v2899
    %v2905 = vmul.f32 %v2904, %v2903
    %v2906 = vmul.f32 %v2899, %v2698
    %v2907 = vadd.f32 %v2905, %v2906
    %v2908 = vld [vmem:[%s1383 + $0x18] sm:$0xff]
    %v2909 = vld [vmem:[%s1383 + $0x20] sm:$0xff]
    %v2910 = vld [vmem:[%s1383 + $0x28] sm:$0xff]
    %v2911 = vld [vmem:[#allocation4] sm:$0xff]
    %v2912 = vld [vmem:[#allocation10] sm:$0xff]
    %v2913 = vld [vmem:[#allocation10 + $0x8] sm:$0xff]
    %v2914 = vld [vmem:[#allocation10 + $0x10] sm:$0xff]
    %v2915 = vld [vmem:[#allocation10 + $0x18] sm:$0xff]
    %v2916 = vld [vmem:[#allocation10 + $0x20] sm:$0xff]
    %v2917 = vld [vmem:[#allocation10 + $0x28] sm:$0xff]
    %v2918 = vld [vmem:[#allocation10 + $0x30] sm:$0xff]
    %v2919 = vld [vmem:[#allocation10 + $0x38] sm:$0xff]
    %v2920 = vld [vmem:[#allocation10 + $0x40] sm:$0xff]
    %v2921 = vld [vmem:[#allocation10 + $0x48] sm:$0xff]
    %v2922 = vld [vmem:[#allocation10 + $0x50] sm:$0xff]
    %v2923 = vld [vmem:[#allocation10 + $0x58] sm:$0xff]
    %v2924 = vld [vmem:[#allocation10 + $0x60] sm:$0xff]
    %v2925 = vld [vmem:[#allocation10 + $0x68] sm:$0xff]
    %v2926 = vld [vmem:[#allocation10 + $0x70] sm:$0xff]
    %v2927 = vld [vmem:[#allocation10 + $0x78] sm:$0xff]
    %v2928 = vld [vmem:[#allocation10 + $0x80] sm:$0xff]
    %v2929 = vld [vmem:[#allocation10 + $0x88] sm:$0xff]
    %v2930 = vld [vmem:[#allocation10 + $0x90] sm:$0xff]
    %v2931 = vld [vmem:[#allocation10 + $0x98] sm:$0xff]
    %v2932 = vld [vmem:[#allocation10 + $0xa0] sm:$0xff]
    %v2933 = vld [vmem:[#allocation10 + $0xa8] sm:$0xff]
    %v2934 = vld [vmem:[#allocation10 + $0xb0] sm:$0xff]
    %v2935 = vld [vmem:[#allocation10 + $0xb8] sm:$0xff]
    %v2936 = vld [vmem:[#allocation10 + $0xc0] sm:$0xff]
    %v2937 = vld [vmem:[#allocation10 + $0xc8] sm:$0xff]
    %v2938 = vld [vmem:[#allocation10 + $0xd0] sm:$0xff]
    %v2939 = vld [vmem:[#allocation10 + $0xd8] sm:$0xff]
    %v2940 = vld [vmem:[#allocation10 + $0xe0] sm:$0xff]
    %v2941 = vld [vmem:[#allocation10 + $0xe8] sm:$0xff]
    %v2942 = vld [vmem:[#allocation10 + $0xf0] sm:$0xff]
    %v2943 = vld [vmem:[#allocation10 + $0xf8] sm:$0xff]
    %v2944 = vld [vmem:[#allocation10 + $0x100] sm:$0xff]
    %v2945 = vld [vmem:[#allocation10 + $0x108] sm:$0xff]
    %v2946 = vld [vmem:[#allocation10 + $0x110] sm:$0xff]
    %v2947 = vld [vmem:[#allocation10 + $0x118] sm:$0xff]
    %v2948 = vld [vmem:[#allocation10 + $0x120] sm:$0xff]
    %v2949 = vld [vmem:[#allocation10 + $0x128] sm:$0xff]
    %v2950 = vld [vmem:[#allocation10 + $0x130] sm:$0xff]
    %v2951 = vld [vmem:[#allocation10 + $0x138] sm:$0xff]
    %v2952 = vld [vmem:[#allocation10 + $0x140] sm:$0xff]
    %v2953 = vld [vmem:[#allocation10 + $0x148] sm:$0xff]
    %v2954 = vld [vmem:[#allocation10 + $0x150] sm:$0xff]
    %v2955 = vld [vmem:[#allocation10 + $0x158] sm:$0xff]
    %v2956 = vld [vmem:[#allocation10 + $0x160] sm:$0xff]
    %v2957 = vld [vmem:[#allocation10 + $0x168] sm:$0xff]
    %v2958 = vld [vmem:[#allocation10 + $0x170] sm:$0xff]
    %v2959 = vld [vmem:[#allocation10 + $0x178] sm:$0xff]
    %2960 = vmatprep.subr.mxu0 %v2958
    %2961 = vmatpush1.msra.mxu0 %v2957
    %2962 = vmatprep.subr.mxu0 %v2955
    %2963 = vmatpush1.msra.mxu0 %v2954
    %2964 = vmatprep.subr.mxu0 %v2952
    %2965 = vmatpush1.msra.mxu0 %v2951
    %2966 = vmatprep.subr.mxu0 %v2949
    %2967 = vmatpush1.msra.mxu0 %v2948
    %2968 = vmatprep.subr.mxu0 %v2946
    %2969 = vmatpush1.msra.mxu0 %v2945
    %2970 = vmatprep.subr.mxu0 %v2943
    %2971 = vmatpush1.msra.mxu0 %v2942
    %2972 = vmatprep.subr.mxu0 %v2940
    %2973 = vmatpush1.msra.mxu0 %v2939
    %2974 = vmatprep.subr.mxu0 %v2937
    %2975 = vmatpush1.msra.mxu0 %v2936
    %2976 = vmatprep.subr.mxu0 %v2934
    %2977 = vmatpush1.msra.mxu0 %v2933
    %2978 = vmatprep.subr.mxu0 %v2931
    %2979 = vmatpush1.msra.mxu0 %v2930
    %2980 = vmatprep.subr.mxu0 %v2928
    %2981 = vmatpush1.msra.mxu0 %v2927
    %2982 = vmatprep.subr.mxu0 %v2925
    %2983 = vmatpush1.msra.mxu0 %v2924
    %2984 = vmatprep.subr.mxu0 %v2922
    %2985 = vmatpush1.msra.mxu0 %v2921
    %2986 = vmatprep.subr.mxu0 %v2919
    %2987 = vmatpush1.msra.mxu0 %v2918
    %2988 = vmatprep.subr.mxu0 %v2916
    %2989 = vmatpush1.msra.mxu0 %v2915
    %2990 = vmatprep.subr.mxu0 %v2913
    %2991 = vmatpush1.msra.mxu0 %v2912
    %2992 = vmatprep.subr.mxu0 0.0
    %2993 = vmatpush2.msra.mxu0 0.0
    %2994 = vmatprep.subr.mxu0 0.0
    %2995 = vmatpush2.msra.mxu0 0.0
    %2996 = vmatprep.subr.mxu0 0.0
    %2997 = vmatpush2.msra.mxu0 0.0
    %2998 = vmatprep.subr.mxu0 0.0
    %2999 = vmatpush2.msra.mxu0 0.0
    %3000 = vmatprep.subr.mxu0 0.0
    %3001 = vmatpush2.msra.mxu0 0.0
    %3002 = vmatprep.subr.mxu0 0.0
    %3003 = vmatpush2.msra.mxu0 0.0
    %3004 = vmatprep.subr.mxu0 0.0
    %3005 = vmatpush2.msra.mxu0 0.0
    %3006 = vmatprep.subr.mxu0 0.0
    %3007 = vmatpush2.msra.mxu0 0.0
    %3008 = vmatprep.subr.mxu0 0.0
    %3009 = vmatpush2.msra.mxu0 0.0
    %3010 = vmatprep.subr.mxu0 0.0
    %3011 = vmatpush2.msra.mxu0 0.0
    %3012 = vmatprep.subr.mxu0 0.0
    %3013 = vmatpush2.msra.mxu0 0.0
    %3014 = vmatprep.subr.mxu0 0.0
    %3015 = vmatpush2.msra.mxu0 0.0
    %3016 = vmatprep.subr.mxu0 0.0
    %3017 = vmatpush2.msra.mxu0 0.0
    %3018 = vmatprep.subr.mxu0 0.0
    %3019 = vmatpush2.msra.mxu0 0.0
    %3020 = vmatprep.subr.mxu0 0.0
    %3021 = vmatpush2.msra.mxu0 0.0
    %3022 = vmatprep.subr.mxu0 0.0
    %3023 = vmatpush2.msra.mxu0 0.0
    %3024 = vmatprep.mubr.f32.mxu0 0.0
    %3025 = vmatmul.mubr.f32.gmra.mxu0 %v2911
    %v3026 = vpop.f32.mrf.mxu0
    %v3027 = vadd.f32 0.0, %v3026
    %v3028 = vpop.f32.mrf.mxu0
    %v3029 = vadd.f32 0.0, %v3028
    %3030 = vdwg.mxu0
    %3031 = vmatprep.subr.mxu0 0.0
    %3032 = vmatpush1.msra.mxu0 %v2959
    %3033 = vmatprep.subr.mxu0 0.0
    %3034 = vmatpush1.msra.mxu0 %v2956
    %3035 = vmatprep.subr.mxu0 0.0
    %3036 = vmatpush1.msra.mxu0 %v2953
    %3037 = vmatprep.subr.mxu0 0.0
    %3038 = vmatpush1.msra.mxu0 %v2950
    %3039 = vmatprep.subr.mxu0 0.0
    %3040 = vmatpush1.msra.mxu0 %v2947
    %3041 = vmatprep.subr.mxu0 0.0
    %3042 = vmatpush1.msra.mxu0 %v2944
    %3043 = vmatprep.subr.mxu0 0.0
    %3044 = vmatpush1.msra.mxu0 %v2941
    %3045 = vmatprep.subr.mxu0 0.0
    %3046 = vmatpush1.msra.mxu0 %v2938
    %3047 = vmatprep.subr.mxu0 0.0
    %3048 = vmatpush1.msra.mxu0 %v2935
    %3049 = vmatprep.subr.mxu0 0.0
    %3050 = vmatpush1.msra.mxu0 %v2932
    %3051 = vmatprep.subr.mxu0 0.0
    %3052 = vmatpush1.msra.mxu0 %v2929
    %3053 = vmatprep.subr.mxu0 0.0
    %3054 = vmatpush1.msra.mxu0 %v2926
    %3055 = vmatprep.subr.mxu0 0.0
    %3056 = vmatpush1.msra.mxu0 %v2923
    %3057 = vmatprep.subr.mxu0 0.0
    %3058 = vmatpush1.msra.mxu0 %v2920
    %3059 = vmatprep.subr.mxu0 0.0
    %3060 = vmatpush1.msra.mxu0 %v2917
    %3061 = vmatprep.subr.mxu0 0.0
    %3062 = vmatpush1.msra.mxu0 %v2914
    %3063 = vmatprep.subr.mxu0 0.0
    %3064 = vmatpush2.msra.mxu0 0.0
    %3065 = vmatprep.subr.mxu0 0.0
    %3066 = vmatpush2.msra.mxu0 0.0
    %3067 = vmatprep.subr.mxu0 0.0
    %3068 = vmatpush2.msra.mxu0 0.0
    %3069 = vmatprep.subr.mxu0 0.0
    %3070 = vmatpush2.msra.mxu0 0.0
    %3071 = vmatprep.subr.mxu0 0.0
    %3072 = vmatpush2.msra.mxu0 0.0
    %3073 = vmatprep.subr.mxu0 0.0
    %3074 = vmatpush2.msra.mxu0 0.0
    %3075 = vmatprep.subr.mxu0 0.0
    %3076 = vmatpush2.msra.mxu0 0.0
    %3077 = vmatprep.subr.mxu0 0.0
    %3078 = vmatpush2.msra.mxu0 0.0
    %3079 = vmatprep.subr.mxu0 0.0
    %3080 = vmatpush2.msra.mxu0 0.0
    %3081 = vmatprep.subr.mxu0 0.0
    %3082 = vmatpush2.msra.mxu0 0.0
    %3083 = vmatprep.subr.mxu0 0.0
    %3084 = vmatpush2.msra.mxu0 0.0
    %3085 = vmatprep.subr.mxu0 0.0
    %3086 = vmatpush2.msra.mxu0 0.0
    %3087 = vmatprep.subr.mxu0 0.0
    %3088 = vmatpush2.msra.mxu0 0.0
    %3089 = vmatprep.subr.mxu0 0.0
    %3090 = vmatpush2.msra.mxu0 0.0
    %3091 = vmatprep.subr.mxu0 0.0
    %3092 = vmatpush2.msra.mxu0 0.0
    %3093 = vmatprep.subr.mxu0 0.0
    %3094 = vmatpush2.msra.mxu0 0.0
    %3095 = vmatprep.mubr.f32.mxu0 0.0
    %3096 = vmatmul.mubr.f32.gmra.mxu0 %v2911
    %v3097 = vpop.f32.mrf.mxu0
    %v3098 = vadd.f32 0.0, %v3097
    %v3099 = vpop.f32.mrf.mxu0
    %3100 = vdwg.mxu0
    %v3101 = vadd.f32 %v2908, %v3027
    %v3102 = vsub.f32 0.0, %v3101
    %v3103 = vmul.f32 %v3102, 1.442695
    %v3104 = vpow.pop %v3103
    %v3105 = vadd.f32 %v3104, 1.0
    %v3106 = vrcp.pop %v3105
    %v3107 = vadd.f32 %v2909, %v3029
    %v3108 = vsub.f32 0.0, %v3107
    %v3109 = vmul.f32 %v3108, 1.442695
    %v3110 = vpow.pop %v3109
    %v3111 = vadd.f32 %v3110, 1.0
    %v3112 = vrcp.pop %v3111
    %v3113 = vadd.f32 %v3098, %v919
    %v3114 = vmul.f32 %v3106, %v3113
    %v3115 = vadd.f32 %v2910, %v3114
    %v3116 = vtanh.pop %v3115
    %v3117 = vsub.f32 1.0, %v3112
    %v3118 = vmul.f32 %v3117, %v3116
    %v3119 = vmul.f32 %v3112, %v2911
    %v3120 = vadd.f32 %v3118, %v3119
    %3121 = vst [vmem:[#allocation3] sm:$0xff] %v2907
    %3122 = vst [vmem:[#allocation4] sm:$0xff] %v3120
    %3123 = vst [vmem:[%s1821] sm:$0xff] %v2907
    %3124 = vst [vmem:[%s1817 + $0x8] sm:$0xff] %v3120
    %v3125 = vld [vmem:[%s1157] sm:$0xff]
    %v3126 = vld [vmem:[%s1157 + $0x8] sm:$0xff]
    %v3127 = vld [vmem:[%s1157 + $0x10] sm:$0xff]
    %v3128 = vld [vmem:[#allocation3] sm:$0xff]
    %v3129 = vld [vmem:[#allocation8] sm:$0xff]
    %v3130 = vld [vmem:[#allocation8 + $0x8] sm:$0xff]
    %v3131 = vld [vmem:[#allocation8 + $0x10] sm:$0xff]
    %v3132 = vld [vmem:[#allocation8 + $0x18] sm:$0xff]
    %v3133 = vld [vmem:[#allocation8 + $0x20] sm:$0xff]
    %v3134 = vld [vmem:[#allocation8 + $0x28] sm:$0xff]
    %v3135 = vld [vmem:[#allocation8 + $0x30] sm:$0xff]
    %v3136 = vld [vmem:[#allocation8 + $0x38] sm:$0xff]
    %v3137 = vld [vmem:[#allocation8 + $0x40] sm:$0xff]
    %v3138 = vld [vmem:[#allocation8 + $0x48] sm:$0xff]
    %v3139 = vld [vmem:[#allocation8 + $0x50] sm:$0xff]
    %v3140 = vld [vmem:[#allocation8 + $0x58] sm:$0xff]
    %v3141 = vld [vmem:[#allocation8 + $0x60] sm:$0xff]
    %v3142 = vld [vmem:[#allocation8 + $0x68] sm:$0xff]
    %v3143 = vld [vmem:[#allocation8 + $0x70] sm:$0xff]
    %v3144 = vld [vmem:[#allocation8 + $0x78] sm:$0xff]
    %v3145 = vld [vmem:[#allocation8 + $0x80] sm:$0xff]
    %v3146 = vld [vmem:[#allocation8 + $0x88] sm:$0xff]
    %v3147 = vld [vmem:[#allocation8 + $0x90] sm:$0xff]
    %v3148 = vld [vmem:[#allocation8 + $0x98] sm:$0xff]
    %v3149 = vld [vmem:[#allocation8 + $0xa0] sm:$0xff]
    %v3150 = vld [vmem:[#allocation8 + $0xa8] sm:$0xff]
    %v3151 = vld [vmem:[#allocation8 + $0xb0] sm:$0xff]
    %v3152 = vld [vmem:[#allocation8 + $0xb8] sm:$0xff]
    %v3153 = vld [vmem:[#allocation8 + $0xc0] sm:$0xff]
    %v3154 = vld [vmem:[#allocation8 + $0xc8] sm:$0xff]
    %v3155 = vld [vmem:[#allocation8 + $0xd0] sm:$0xff]
    %v3156 = vld [vmem:[#allocation8 + $0xd8] sm:$0xff]
    %v3157 = vld [vmem:[#allocation8 + $0xe0] sm:$0xff]
    %v3158 = vld [vmem:[#allocation8 + $0xe8] sm:$0xff]
    %v3159 = vld [vmem:[#allocation8 + $0xf0] sm:$0xff]
    %v3160 = vld [vmem:[#allocation8 + $0xf8] sm:$0xff]
    %v3161 = vld [vmem:[#allocation8 + $0x100] sm:$0xff]
    %v3162 = vld [vmem:[#allocation8 + $0x108] sm:$0xff]
    %v3163 = vld [vmem:[#allocation8 + $0x110] sm:$0xff]
    %v3164 = vld [vmem:[#allocation8 + $0x118] sm:$0xff]
    %v3165 = vld [vmem:[#allocation8 + $0x120] sm:$0xff]
    %v3166 = vld [vmem:[#allocation8 + $0x128] sm:$0xff]
    %v3167 = vld [vmem:[#allocation8 + $0x130] sm:$0xff]
    %v3168 = vld [vmem:[#allocation8 + $0x138] sm:$0xff]
    %v3169 = vld [vmem:[#allocation8 + $0x140] sm:$0xff]
    %v3170 = vld [vmem:[#allocation8 + $0x148] sm:$0xff]
    %v3171 = vld [vmem:[#allocation8 + $0x150] sm:$0xff]
    %v3172 = vld [vmem:[#allocation8 + $0x158] sm:$0xff]
    %v3173 = vld [vmem:[#allocation8 + $0x160] sm:$0xff]
    %v3174 = vld [vmem:[#allocation8 + $0x168] sm:$0xff]
    %v3175 = vld [vmem:[#allocation8 + $0x170] sm:$0xff]
    %v3176 = vld [vmem:[#allocation8 + $0x178] sm:$0xff]
    %3177 = vmatprep.subr.mxu0 %v3175
    %3178 = vmatpush1.msra.mxu0 %v3174
    %3179 = vmatprep.subr.mxu0 %v3172
    %3180 = vmatpush1.msra.mxu0 %v3171
    %3181 = vmatprep.subr.mxu0 %v3169
    %3182 = vmatpush1.msra.mxu0 %v3168
    %3183 = vmatprep.subr.mxu0 %v3166
    %3184 = vmatpush1.msra.mxu0 %v3165
    %3185 = vmatprep.subr.mxu0 %v3163
    %3186 = vmatpush1.msra.mxu0 %v3162
    %3187 = vmatprep.subr.mxu0 %v3160
    %3188 = vmatpush1.msra.mxu0 %v3159
    %3189 = vmatprep.subr.mxu0 %v3157
    %3190 = vmatpush1.msra.mxu0 %v3156
    %3191 = vmatprep.subr.mxu0 %v3154
    %3192 = vmatpush1.msra.mxu0 %v3153
    %3193 = vmatprep.subr.mxu0 %v3151
    %3194 = vmatpush1.msra.mxu0 %v3150
    %3195 = vmatprep.subr.mxu0 %v3148
    %3196 = vmatpush1.msra.mxu0 %v3147
    %3197 = vmatprep.subr.mxu0 %v3145
    %3198 = vmatpush1.msra.mxu0 %v3144
    %3199 = vmatprep.subr.mxu0 %v3142
    %3200 = vmatpush1.msra.mxu0 %v3141
    %3201 = vmatprep.subr.mxu0 %v3139
    %3202 = vmatpush1.msra.mxu0 %v3138
    %3203 = vmatprep.subr.mxu0 %v3136
    %3204 = vmatpush1.msra.mxu0 %v3135
    %3205 = vmatprep.subr.mxu0 %v3133
    %3206 = vmatpush1.msra.mxu0 %v3132
    %3207 = vmatprep.subr.mxu0 %v3130
    %3208 = vmatpush1.msra.mxu0 %v3129
    %3209 = vmatprep.subr.mxu0 0.0
    %3210 = vmatpush2.msra.mxu0 0.0
    %3211 = vmatprep.subr.mxu0 0.0
    %3212 = vmatpush2.msra.mxu0 0.0
    %3213 = vmatprep.subr.mxu0 0.0
    %3214 = vmatpush2.msra.mxu0 0.0
    %3215 = vmatprep.subr.mxu0 0.0
    %3216 = vmatpush2.msra.mxu0 0.0
    %3217 = vmatprep.subr.mxu0 0.0
    %3218 = vmatpush2.msra.mxu0 0.0
    %3219 = vmatprep.subr.mxu0 0.0
    %3220 = vmatpush2.msra.mxu0 0.0
    %3221 = vmatprep.subr.mxu0 0.0
    %3222 = vmatpush2.msra.mxu0 0.0
    %3223 = vmatprep.subr.mxu0 0.0
    %3224 = vmatpush2.msra.mxu0 0.0
    %3225 = vmatprep.subr.mxu0 0.0
    %3226 = vmatpush2.msra.mxu0 0.0
    %3227 = vmatprep.subr.mxu0 0.0
    %3228 = vmatpush2.msra.mxu0 0.0
    %3229 = vmatprep.subr.mxu0 0.0
    %3230 = vmatpush2.msra.mxu0 0.0
    %3231 = vmatprep.subr.mxu0 0.0
    %3232 = vmatpush2.msra.mxu0 0.0
    %3233 = vmatprep.subr.mxu0 0.0
    %3234 = vmatpush2.msra.mxu0 0.0
    %3235 = vmatprep.subr.mxu0 0.0
    %3236 = vmatpush2.msra.mxu0 0.0
    %3237 = vmatprep.subr.mxu0 0.0
    %3238 = vmatpush2.msra.mxu0 0.0
    %3239 = vmatprep.subr.mxu0 0.0
    %3240 = vmatpush2.msra.mxu0 0.0
    %3241 = vmatprep.mubr.f32.mxu0 0.0
    %3242 = vmatmul.mubr.f32.gmra.mxu0 %v3128
    %v3243 = vpop.f32.mrf.mxu0
    %v3244 = vadd.f32 0.0, %v3243
    %v3245 = vpop.f32.mrf.mxu0
    %v3246 = vadd.f32 0.0, %v3245
    %3247 = vdwg.mxu0
    %3248 = vmatprep.subr.mxu0 0.0
    %3249 = vmatpush1.msra.mxu0 %v3176
    %3250 = vmatprep.subr.mxu0 0.0
    %3251 = vmatpush1.msra.mxu0 %v3173
    %3252 = vmatprep.subr.mxu0 0.0
    %3253 = vmatpush1.msra.mxu0 %v3170
    %3254 = vmatprep.subr.mxu0 0.0
    %3255 = vmatpush1.msra.mxu0 %v3167
    %3256 = vmatprep.subr.mxu0 0.0
    %3257 = vmatpush1.msra.mxu0 %v3164
    %3258 = vmatprep.subr.mxu0 0.0
    %3259 = vmatpush1.msra.mxu0 %v3161
    %3260 = vmatprep.subr.mxu0 0.0
    %3261 = vmatpush1.msra.mxu0 %v3158
    %3262 = vmatprep.subr.mxu0 0.0
    %3263 = vmatpush1.msra.mxu0 %v3155
    %3264 = vmatprep.subr.mxu0 0.0
    %3265 = vmatpush1.msra.mxu0 %v3152
    %3266 = vmatprep.subr.mxu0 0.0
    %3267 = vmatpush1.msra.mxu0 %v3149
    %3268 = vmatprep.subr.mxu0 0.0
    %3269 = vmatpush1.msra.mxu0 %v3146
    %3270 = vmatprep.subr.mxu0 0.0
    %3271 = vmatpush1.msra.mxu0 %v3143
    %3272 = vmatprep.subr.mxu0 0.0
    %3273 = vmatpush1.msra.mxu0 %v3140
    %3274 = vmatprep.subr.mxu0 0.0
    %3275 = vmatpush1.msra.mxu0 %v3137
    %3276 = vmatprep.subr.mxu0 0.0
    %3277 = vmatpush1.msra.mxu0 %v3134
    %3278 = vmatprep.subr.mxu0 0.0
    %3279 = vmatpush1.msra.mxu0 %v3131
    %3280 = vmatprep.subr.mxu0 0.0
    %3281 = vmatpush2.msra.mxu0 0.0
    %3282 = vmatprep.subr.mxu0 0.0
    %3283 = vmatpush2.msra.mxu0 0.0
    %3284 = vmatprep.subr.mxu0 0.0
    %3285 = vmatpush2.msra.mxu0 0.0
    %3286 = vmatprep.subr.mxu0 0.0
    %3287 = vmatpush2.msra.mxu0 0.0
    %3288 = vmatprep.subr.mxu0 0.0
    %3289 = vmatpush2.msra.mxu0 0.0
    %3290 = vmatprep.subr.mxu0 0.0
    %3291 = vmatpush2.msra.mxu0 0.0
    %3292 = vmatprep.subr.mxu0 0.0
    %3293 = vmatpush2.msra.mxu0 0.0
    %3294 = vmatprep.subr.mxu0 0.0
    %3295 = vmatpush2.msra.mxu0 0.0
    %3296 = vmatprep.subr.mxu0 0.0
    %3297 = vmatpush2.msra.mxu0 0.0
    %3298 = vmatprep.subr.mxu0 0.0
    %3299 = vmatpush2.msra.mxu0 0.0
    %3300 = vmatprep.subr.mxu0 0.0
    %3301 = vmatpush2.msra.mxu0 0.0
    %3302 = vmatprep.subr.mxu0 0.0
    %3303 = vmatpush2.msra.mxu0 0.0
    %3304 = vmatprep.subr.mxu0 0.0
    %3305 = vmatpush2.msra.mxu0 0.0
    %3306 = vmatprep.subr.mxu0 0.0
    %3307 = vmatpush2.msra.mxu0 0.0
    %3308 = vmatprep.subr.mxu0 0.0
    %3309 = vmatpush2.msra.mxu0 0.0
    %3310 = vmatprep.subr.mxu0 0.0
    %3311 = vmatpush2.msra.mxu0 0.0
    %3312 = vmatprep.mubr.f32.mxu0 0.0
    %3313 = vmatmul.mubr.f32.gmra.mxu0 %v3128
    %v3314 = vpop.f32.mrf.mxu0
    %v3315 = vadd.f32 0.0, %v3314
    %v3316 = vpop.f32.mrf.mxu0
    %3317 = vdwg.mxu0
    %v3318 = vadd.f32 %v3125, %v3244
    %v3319 = vsub.f32 0.0, %v3318
    %v3320 = vmul.f32 %v3319, 1.442695
    %v3321 = vpow.pop %v3320
    %v3322 = vadd.f32 %v3321, 1.0
    %v3323 = vrcp.pop %v3322
    %v3324 = vadd.f32 %v3126, %v3246
    %v3325 = vsub.f32 0.0, %v3324
    %v3326 = vmul.f32 %v3325, 1.442695
    %v3327 = vpow.pop %v3326
    %v3328 = vadd.f32 %v3327, 1.0
    %v3329 = vrcp.pop %v3328
    %v3330 = vadd.f32 %v3315, %v697
    %v3331 = vmul.f32 %v3323, %v3330
    %v3332 = vadd.f32 %v3127, %v3331
    %v3333 = vtanh.pop %v3332
    %v3334 = vsub.f32 1.0, %v3329
    %v3335 = vmul.f32 %v3334, %v3333
    %v3336 = vmul.f32 %v3329, %v3128
    %v3337 = vadd.f32 %v3335, %v3336
    %v3338 = vld [vmem:[%s941 + $0x18] sm:$0xff]
    %v3339 = vld [vmem:[%s941 + $0x20] sm:$0xff]
    %v3340 = vld [vmem:[%s941 + $0x28] sm:$0xff]
    %v3341 = vld [vmem:[#allocation4] sm:$0xff]
    %v3342 = vld [vmem:[#allocation10] sm:$0xff]
    %v3343 = vld [vmem:[#allocation10 + $0x8] sm:$0xff]
    %v3344 = vld [vmem:[#allocation10 + $0x10] sm:$0xff]
    %v3345 = vld [vmem:[#allocation10 + $0x18] sm:$0xff]
    %v3346 = vld [vmem:[#allocation10 + $0x20] sm:$0xff]
    %v3347 = vld [vmem:[#allocation10 + $0x28] sm:$0xff]
    %v3348 = vld [vmem:[#allocation10 + $0x30] sm:$0xff]
    %v3349 = vld [vmem:[#allocation10 + $0x38] sm:$0xff]
    %v3350 = vld [vmem:[#allocation10 + $0x40] sm:$0xff]
    %v3351 = vld [vmem:[#allocation10 + $0x48] sm:$0xff]
    %v3352 = vld [vmem:[#allocation10 + $0x50] sm:$0xff]
    %v3353 = vld [vmem:[#allocation10 + $0x58] sm:$0xff]
    %v3354 = vld [vmem:[#allocation10 + $0x60] sm:$0xff]
    %v3355 = vld [vmem:[#allocation10 + $0x68] sm:$0xff]
    %v3356 = vld [vmem:[#allocation10 + $0x70] sm:$0xff]
    %v3357 = vld [vmem:[#allocation10 + $0x78] sm:$0xff]
    %v3358 = vld [vmem:[#allocation10 + $0x80] sm:$0xff]
    %v3359 = vld [vmem:[#allocation10 + $0x88] sm:$0xff]
    %v3360 = vld [vmem:[#allocation10 + $0x90] sm:$0xff]
    %v3361 = vld [vmem:[#allocation10 + $0x98] sm:$0xff]
    %v3362 = vld [vmem:[#allocation10 + $0xa0] sm:$0xff]
    %v3363 = vld [vmem:[#allocation10 + $0xa8] sm:$0xff]
    %v3364 = vld [vmem:[#allocation10 + $0xb0] sm:$0xff]
    %v3365 = vld [vmem:[#allocation10 + $0xb8] sm:$0xff]
    %v3366 = vld [vmem:[#allocation10 + $0xc0] sm:$0xff]
    %v3367 = vld [vmem:[#allocation10 + $0xc8] sm:$0xff]
    %v3368 = vld [vmem:[#allocation10 + $0xd0] sm:$0xff]
    %v3369 = vld [vmem:[#allocation10 + $0xd8] sm:$0xff]
    %v3370 = vld [vmem:[#allocation10 + $0xe0] sm:$0xff]
    %v3371 = vld [vmem:[#allocation10 + $0xe8] sm:$0xff]
    %v3372 = vld [vmem:[#allocation10 + $0xf0] sm:$0xff]
    %v3373 = vld [vmem:[#allocation10 + $0xf8] sm:$0xff]
    %v3374 = vld [vmem:[#allocation10 + $0x100] sm:$0xff]
    %v3375 = vld [vmem:[#allocation10 + $0x108] sm:$0xff]
    %v3376 = vld [vmem:[#allocation10 + $0x110] sm:$0xff]
    %v3377 = vld [vmem:[#allocation10 + $0x118] sm:$0xff]
    %v3378 = vld [vmem:[#allocation10 + $0x120] sm:$0xff]
    %v3379 = vld [vmem:[#allocation10 + $0x128] sm:$0xff]
    %v3380 = vld [vmem:[#allocation10 + $0x130] sm:$0xff]
    %v3381 = vld [vmem:[#allocation10 + $0x138] sm:$0xff]
    %v3382 = vld [vmem:[#allocation10 + $0x140] sm:$0xff]
    %v3383 = vld [vmem:[#allocation10 + $0x148] sm:$0xff]
    %v3384 = vld [vmem:[#allocation10 + $0x150] sm:$0xff]
    %v3385 = vld [vmem:[#allocation10 + $0x158] sm:$0xff]
    %v3386 = vld [vmem:[#allocation10 + $0x160] sm:$0xff]
    %v3387 = vld [vmem:[#allocation10 + $0x168] sm:$0xff]
    %v3388 = vld [vmem:[#allocation10 + $0x170] sm:$0xff]
    %v3389 = vld [vmem:[#allocation10 + $0x178] sm:$0xff]
    %3390 = vmatprep.subr.mxu0 %v3388
    %3391 = vmatpush1.msra.mxu0 %v3387
    %3392 = vmatprep.subr.mxu0 %v3385
    %3393 = vmatpush1.msra.mxu0 %v3384
    %3394 = vmatprep.subr.mxu0 %v3382
    %3395 = vmatpush1.msra.mxu0 %v3381
    %3396 = vmatprep.subr.mxu0 %v3379
    %3397 = vmatpush1.msra.mxu0 %v3378
    %3398 = vmatprep.subr.mxu0 %v3376
    %3399 = vmatpush1.msra.mxu0 %v3375
    %3400 = vmatprep.subr.mxu0 %v3373
    %3401 = vmatpush1.msra.mxu0 %v3372
    %3402 = vmatprep.subr.mxu0 %v3370
    %3403 = vmatpush1.msra.mxu0 %v3369
    %3404 = vmatprep.subr.mxu0 %v3367
    %3405 = vmatpush1.msra.mxu0 %v3366
    %3406 = vmatprep.subr.mxu0 %v3364
    %3407 = vmatpush1.msra.mxu0 %v3363
    %3408 = vmatprep.subr.mxu0 %v3361
    %3409 = vmatpush1.msra.mxu0 %v3360
    %3410 = vmatprep.subr.mxu0 %v3358
    %3411 = vmatpush1.msra.mxu0 %v3357
    %3412 = vmatprep.subr.mxu0 %v3355
    %3413 = vmatpush1.msra.mxu0 %v3354
    %3414 = vmatprep.subr.mxu0 %v3352
    %3415 = vmatpush1.msra.mxu0 %v3351
    %3416 = vmatprep.subr.mxu0 %v3349
    %3417 = vmatpush1.msra.mxu0 %v3348
    %3418 = vmatprep.subr.mxu0 %v3346
    %3419 = vmatpush1.msra.mxu0 %v3345
    %3420 = vmatprep.subr.mxu0 %v3343
    %3421 = vmatpush1.msra.mxu0 %v3342
    %3422 = vmatprep.subr.mxu0 0.0
    %3423 = vmatpush2.msra.mxu0 0.0
    %3424 = vmatprep.subr.mxu0 0.0
    %3425 = vmatpush2.msra.mxu0 0.0
    %3426 = vmatprep.subr.mxu0 0.0
    %3427 = vmatpush2.msra.mxu0 0.0
    %3428 = vmatprep.subr.mxu0 0.0
    %3429 = vmatpush2.msra.mxu0 0.0
    %3430 = vmatprep.subr.mxu0 0.0
    %3431 = vmatpush2.msra.mxu0 0.0
    %3432 = vmatprep.subr.mxu0 0.0
    %3433 = vmatpush2.msra.mxu0 0.0
    %3434 = vmatprep.subr.mxu0 0.0
    %3435 = vmatpush2.msra.mxu0 0.0
    %3436 = vmatprep.subr.mxu0 0.0
    %3437 = vmatpush2.msra.mxu0 0.0
    %3438 = vmatprep.subr.mxu0 0.0
    %3439 = vmatpush2.msra.mxu0 0.0
    %3440 = vmatprep.subr.mxu0 0.0
    %3441 = vmatpush2.msra.mxu0 0.0
    %3442 = vmatprep.subr.mxu0 0.0
    %3443 = vmatpush2.msra.mxu0 0.0
    %3444 = vmatprep.subr.mxu0 0.0
    %3445 = vmatpush2.msra.mxu0 0.0
    %3446 = vmatprep.subr.mxu0 0.0
    %3447 = vmatpush2.msra.mxu0 0.0
    %3448 = vmatprep.subr.mxu0 0.0
    %3449 = vmatpush2.msra.mxu0 0.0
    %3450 = vmatprep.subr.mxu0 0.0
    %3451 = vmatpush2.msra.mxu0 0.0
    %3452 = vmatprep.subr.mxu0 0.0
    %3453 = vmatpush2.msra.mxu0 0.0
    %3454 = vmatprep.mubr.f32.mxu0 0.0
    %3455 = vmatmul.mubr.f32.gmra.mxu0 %v3341
    %v3456 = vpop.f32.mrf.mxu0
    %v3457 = vadd.f32 0.0, %v3456
    %v3458 = vpop.f32.mrf.mxu0
    %v3459 = vadd.f32 0.0, %v3458
    %3460 = vdwg.mxu0
    %3461 = vmatprep.subr.mxu0 0.0
    %3462 = vmatpush1.msra.mxu0 %v3389
    %3463 = vmatprep.subr.mxu0 0.0
    %3464 = vmatpush1.msra.mxu0 %v3386
    %3465 = vmatprep.subr.mxu0 0.0
    %3466 = vmatpush1.msra.mxu0 %v3383
    %3467 = vmatprep.subr.mxu0 0.0
    %3468 = vmatpush1.msra.mxu0 %v3380
    %3469 = vmatprep.subr.mxu0 0.0
    %3470 = vmatpush1.msra.mxu0 %v3377
    %3471 = vmatprep.subr.mxu0 0.0
    %3472 = vmatpush1.msra.mxu0 %v3374
    %3473 = vmatprep.subr.mxu0 0.0
    %3474 = vmatpush1.msra.mxu0 %v3371
    %3475 = vmatprep.subr.mxu0 0.0
    %3476 = vmatpush1.msra.mxu0 %v3368
    %3477 = vmatprep.subr.mxu0 0.0
    %3478 = vmatpush1.msra.mxu0 %v3365
    %3479 = vmatprep.subr.mxu0 0.0
    %3480 = vmatpush1.msra.mxu0 %v3362
    %3481 = vmatprep.subr.mxu0 0.0
    %3482 = vmatpush1.msra.mxu0 %v3359
    %3483 = vmatprep.subr.mxu0 0.0
    %3484 = vmatpush1.msra.mxu0 %v3356
    %3485 = vmatprep.subr.mxu0 0.0
    %3486 = vmatpush1.msra.mxu0 %v3353
    %3487 = vmatprep.subr.mxu0 0.0
    %3488 = vmatpush1.msra.mxu0 %v3350
    %3489 = vmatprep.subr.mxu0 0.0
    %3490 = vmatpush1.msra.mxu0 %v3347
    %3491 = vmatprep.subr.mxu0 0.0
    %3492 = vmatpush1.msra.mxu0 %v3344
    %3493 = vmatprep.subr.mxu0 0.0
    %3494 = vmatpush2.msra.mxu0 0.0
    %3495 = vmatprep.subr.mxu0 0.0
    %3496 = vmatpush2.msra.mxu0 0.0
    %3497 = vmatprep.subr.mxu0 0.0
    %3498 = vmatpush2.msra.mxu0 0.0
    %3499 = vmatprep.subr.mxu0 0.0
    %3500 = vmatpush2.msra.mxu0 0.0
    %3501 = vmatprep.subr.mxu0 0.0
    %3502 = vmatpush2.msra.mxu0 0.0
    %3503 = vmatprep.subr.mxu0 0.0
    %3504 = vmatpush2.msra.mxu0 0.0
    %3505 = vmatprep.subr.mxu0 0.0
    %3506 = vmatpush2.msra.mxu0 0.0
    %3507 = vmatprep.subr.mxu0 0.0
    %3508 = vmatpush2.msra.mxu0 0.0
    %3509 = vmatprep.subr.mxu0 0.0
    %3510 = vmatpush2.msra.mxu0 0.0
    %3511 = vmatprep.subr.mxu0 0.0
    %3512 = vmatpush2.msra.mxu0 0.0
    %3513 = vmatprep.subr.mxu0 0.0
    %3514 = vmatpush2.msra.mxu0 0.0
    %3515 = vmatprep.subr.mxu0 0.0
    %3516 = vmatpush2.msra.mxu0 0.0
    %3517 = vmatprep.subr.mxu0 0.0
    %3518 = vmatpush2.msra.mxu0 0.0
    %3519 = vmatprep.subr.mxu0 0.0
    %3520 = vmatpush2.msra.mxu0 0.0
    %3521 = vmatprep.subr.mxu0 0.0
    %3522 = vmatpush2.msra.mxu0 0.0
    %3523 = vmatprep.subr.mxu0 0.0
    %3524 = vmatpush2.msra.mxu0 0.0
    %3525 = vmatprep.mubr.f32.mxu0 0.0
    %3526 = vmatmul.mubr.f32.gmra.mxu0 %v3341
    %v3527 = vpop.f32.mrf.mxu0
    %v3528 = vadd.f32 0.0, %v3527
    %v3529 = vpop.f32.mrf.mxu0
    %3530 = vdwg.mxu0
    %v3531 = vadd.f32 %v3338, %v3457
    %v3532 = vsub.f32 0.0, %v3531
    %v3533 = vmul.f32 %v3532, 1.442695
    %v3534 = vpow.pop %v3533
    %v3535 = vadd.f32 %v3534, 1.0
    %v3536 = vrcp.pop %v3535
    %v3537 = vadd.f32 %v3339, %v3459
    %v3538 = vsub.f32 0.0, %v3537
    %v3539 = vmul.f32 %v3538, 1.442695
    %v3540 = vpow.pop %v3539
    %v3541 = vadd.f32 %v3540, 1.0
    %v3542 = vrcp.pop %v3541
    %v3543 = vadd.f32 %v3528, %v919
    %v3544 = vmul.f32 %v3536, %v3543
    %v3545 = vadd.f32 %v3340, %v3544
    %v3546 = vtanh.pop %v3545
    %v3547 = vsub.f32 1.0, %v3542
    %v3548 = vmul.f32 %v3547, %v3546
    %v3549 = vmul.f32 %v3542, %v3341
    %v3550 = vadd.f32 %v3548, %v3549
    %3551 = vst [vmem:[#allocation3] sm:$0xff] %v3337
    %3552 = vst [vmem:[#allocation4] sm:$0xff] %v3550
    %3553 = vst [vmem:[%s1379] sm:$0xff] %v3337
    %3554 = vst [vmem:[%s1375 + $0x8] sm:$0xff] %v3550
    %v3555 = vld [vmem:[%s709] sm:$0xff]
    %v3556 = vld [vmem:[%s709 + $0x8] sm:$0xff]
    %v3557 = vld [vmem:[%s709 + $0x10] sm:$0xff]
    %v3558 = vld [vmem:[#allocation3] sm:$0xff]
    %v3559 = vld [vmem:[#allocation8] sm:$0xff]
    %v3560 = vld [vmem:[#allocation8 + $0x8] sm:$0xff]
    %v3561 = vld [vmem:[#allocation8 + $0x10] sm:$0xff]
    %v3562 = vld [vmem:[#allocation8 + $0x18] sm:$0xff]
    %v3563 = vld [vmem:[#allocation8 + $0x20] sm:$0xff]
    %v3564 = vld [vmem:[#allocation8 + $0x28] sm:$0xff]
    %v3565 = vld [vmem:[#allocation8 + $0x30] sm:$0xff]
    %v3566 = vld [vmem:[#allocation8 + $0x38] sm:$0xff]
    %v3567 = vld [vmem:[#allocation8 + $0x40] sm:$0xff]
    %v3568 = vld [vmem:[#allocation8 + $0x48] sm:$0xff]
    %v3569 = vld [vmem:[#allocation8 + $0x50] sm:$0xff]
    %v3570 = vld [vmem:[#allocation8 + $0x58] sm:$0xff]
    %v3571 = vld [vmem:[#allocation8 + $0x60] sm:$0xff]
    %v3572 = vld [vmem:[#allocation8 + $0x68] sm:$0xff]
    %v3573 = vld [vmem:[#allocation8 + $0x70] sm:$0xff]
    %v3574 = vld [vmem:[#allocation8 + $0x78] sm:$0xff]
    %v3575 = vld [vmem:[#allocation8 + $0x80] sm:$0xff]
    %v3576 = vld [vmem:[#allocation8 + $0x88] sm:$0xff]
    %v3577 = vld [vmem:[#allocation8 + $0x90] sm:$0xff]
    %v3578 = vld [vmem:[#allocation8 + $0x98] sm:$0xff]
    %v3579 = vld [vmem:[#allocation8 + $0xa0] sm:$0xff]
    %v3580 = vld [vmem:[#allocation8 + $0xa8] sm:$0xff]
    %v3581 = vld [vmem:[#allocation8 + $0xb0] sm:$0xff]
    %v3582 = vld [vmem:[#allocation8 + $0xb8] sm:$0xff]
    %v3583 = vld [vmem:[#allocation8 + $0xc0] sm:$0xff]
    %v3584 = vld [vmem:[#allocation8 + $0xc8] sm:$0xff]
    %v3585 = vld [vmem:[#allocation8 + $0xd0] sm:$0xff]
    %v3586 = vld [vmem:[#allocation8 + $0xd8] sm:$0xff]
    %v3587 = vld [vmem:[#allocation8 + $0xe0] sm:$0xff]
    %v3588 = vld [vmem:[#allocation8 + $0xe8] sm:$0xff]
    %v3589 = vld [vmem:[#allocation8 + $0xf0] sm:$0xff]
    %v3590 = vld [vmem:[#allocation8 + $0xf8] sm:$0xff]
    %v3591 = vld [vmem:[#allocation8 + $0x100] sm:$0xff]
    %v3592 = vld [vmem:[#allocation8 + $0x108] sm:$0xff]
    %v3593 = vld [vmem:[#allocation8 + $0x110] sm:$0xff]
    %v3594 = vld [vmem:[#allocation8 + $0x118] sm:$0xff]
    %v3595 = vld [vmem:[#allocation8 + $0x120] sm:$0xff]
    %v3596 = vld [vmem:[#allocation8 + $0x128] sm:$0xff]
    %v3597 = vld [vmem:[#allocation8 + $0x130] sm:$0xff]
    %v3598 = vld [vmem:[#allocation8 + $0x138] sm:$0xff]
    %v3599 = vld [vmem:[#allocation8 + $0x140] sm:$0xff]
    %v3600 = vld [vmem:[#allocation8 + $0x148] sm:$0xff]
    %v3601 = vld [vmem:[#allocation8 + $0x150] sm:$0xff]
    %v3602 = vld [vmem:[#allocation8 + $0x158] sm:$0xff]
    %v3603 = vld [vmem:[#allocation8 + $0x160] sm:$0xff]
    %v3604 = vld [vmem:[#allocation8 + $0x168] sm:$0xff]
    %v3605 = vld [vmem:[#allocation8 + $0x170] sm:$0xff]
    %v3606 = vld [vmem:[#allocation8 + $0x178] sm:$0xff]
    %3607 = vmatprep.subr.mxu0 %v3605
    %3608 = vmatpush1.msra.mxu0 %v3604
    %3609 = vmatprep.subr.mxu0 %v3602
    %3610 = vmatpush1.msra.mxu0 %v3601
    %3611 = vmatprep.subr.mxu0 %v3599
    %3612 = vmatpush1.msra.mxu0 %v3598
    %3613 = vmatprep.subr.mxu0 %v3596
    %3614 = vmatpush1.msra.mxu0 %v3595
    %3615 = vmatprep.subr.mxu0 %v3593
    %3616 = vmatpush1.msra.mxu0 %v3592
    %3617 = vmatprep.subr.mxu0 %v3590
    %3618 = vmatpush1.msra.mxu0 %v3589
    %3619 = vmatprep.subr.mxu0 %v3587
    %3620 = vmatpush1.msra.mxu0 %v3586
    %3621 = vmatprep.subr.mxu0 %v3584
    %3622 = vmatpush1.msra.mxu0 %v3583
    %3623 = vmatprep.subr.mxu0 %v3581
    %3624 = vmatpush1.msra.mxu0 %v3580
    %3625 = vmatprep.subr.mxu0 %v3578
    %3626 = vmatpush1.msra.mxu0 %v3577
    %3627 = vmatprep.subr.mxu0 %v3575
    %3628 = vmatpush1.msra.mxu0 %v3574
    %3629 = vmatprep.subr.mxu0 %v3572
    %3630 = vmatpush1.msra.mxu0 %v3571
    %3631 = vmatprep.subr.mxu0 %v3569
    %3632 = vmatpush1.msra.mxu0 %v3568
    %3633 = vmatprep.subr.mxu0 %v3566
    %3634 = vmatpush1.msra.mxu0 %v3565
    %3635 = vmatprep.subr.mxu0 %v3563
    %3636 = vmatpush1.msra.mxu0 %v3562
    %3637 = vmatprep.subr.mxu0 %v3560
    %3638 = vmatpush1.msra.mxu0 %v3559
    %3639 = vmatprep.subr.mxu0 0.0
    %3640 = vmatpush2.msra.mxu0 0.0
    %3641 = vmatprep.subr.mxu0 0.0
    %3642 = vmatpush2.msra.mxu0 0.0
    %3643 = vmatprep.subr.mxu0 0.0
    %3644 = vmatpush2.msra.mxu0 0.0
    %3645 = vmatprep.subr.mxu0 0.0
    %3646 = vmatpush2.msra.mxu0 0.0
    %3647 = vmatprep.subr.mxu0 0.0
    %3648 = vmatpush2.msra.mxu0 0.0
    %3649 = vmatprep.subr.mxu0 0.0
    %3650 = vmatpush2.msra.mxu0 0.0
    %3651 = vmatprep.subr.mxu0 0.0
    %3652 = vmatpush2.msra.mxu0 0.0
    %3653 = vmatprep.subr.mxu0 0.0
    %3654 = vmatpush2.msra.mxu0 0.0
    %3655 = vmatprep.subr.mxu0 0.0
    %3656 = vmatpush2.msra.mxu0 0.0
    %3657 = vmatprep.subr.mxu0 0.0
    %3658 = vmatpush2.msra.mxu0 0.0
    %3659 = vmatprep.subr.mxu0 0.0
    %3660 = vmatpush2.msra.mxu0 0.0
    %3661 = vmatprep.subr.mxu0 0.0
    %3662 = vmatpush2.msra.mxu0 0.0
    %3663 = vmatprep.subr.mxu0 0.0
    %3664 = vmatpush2.msra.mxu0 0.0
    %3665 = vmatprep.subr.mxu0 0.0
    %3666 = vmatpush2.msra.mxu0 0.0
    %3667 = vmatprep.subr.mxu0 0.0
    %3668 = vmatpush2.msra.mxu0 0.0
    %3669 = vmatprep.subr.mxu0 0.0
    %3670 = vmatpush2.msra.mxu0 0.0
    %3671 = vmatprep.mubr.f32.mxu0 0.0
    %3672 = vmatmul.mubr.f32.gmra.mxu0 %v3558
    %v3673 = vpop.f32.mrf.mxu0
    %v3674 = vadd.f32 0.0, %v3673
    %v3675 = vpop.f32.mrf.mxu0
    %v3676 = vadd.f32 0.0, %v3675
    %3677 = vdwg.mxu0
    %3678 = vmatprep.subr.mxu0 0.0
    %3679 = vmatpush1.msra.mxu0 %v3606
    %3680 = vmatprep.subr.mxu0 0.0
    %3681 = vmatpush1.msra.mxu0 %v3603
    %3682 = vmatprep.subr.mxu0 0.0
    %3683 = vmatpush1.msra.mxu0 %v3600
    %3684 = vmatprep.subr.mxu0 0.0
    %3685 = vmatpush1.msra.mxu0 %v3597
    %3686 = vmatprep.subr.mxu0 0.0
    %3687 = vmatpush1.msra.mxu0 %v3594
    %3688 = vmatprep.subr.mxu0 0.0
    %3689 = vmatpush1.msra.mxu0 %v3591
    %3690 = vmatprep.subr.mxu0 0.0
    %3691 = vmatpush1.msra.mxu0 %v3588
    %3692 = vmatprep.subr.mxu0 0.0
    %3693 = vmatpush1.msra.mxu0 %v3585
    %3694 = vmatprep.subr.mxu0 0.0
    %3695 = vmatpush1.msra.mxu0 %v3582
    %3696 = vmatprep.subr.mxu0 0.0
    %3697 = vmatpush1.msra.mxu0 %v3579
    %3698 = vmatprep.subr.mxu0 0.0
    %3699 = vmatpush1.msra.mxu0 %v3576
    %3700 = vmatprep.subr.mxu0 0.0
    %3701 = vmatpush1.msra.mxu0 %v3573
    %3702 = vmatprep.subr.mxu0 0.0
    %3703 = vmatpush1.msra.mxu0 %v3570
    %3704 = vmatprep.subr.mxu0 0.0
    %3705 = vmatpush1.msra.mxu0 %v3567
    %3706 = vmatprep.subr.mxu0 0.0
    %3707 = vmatpush1.msra.mxu0 %v3564
    %3708 = vmatprep.subr.mxu0 0.0
    %3709 = vmatpush1.msra.mxu0 %v3561
    %3710 = vmatprep.subr.mxu0 0.0
    %3711 = vmatpush2.msra.mxu0 0.0
    %3712 = vmatprep.subr.mxu0 0.0
    %3713 = vmatpush2.msra.mxu0 0.0
    %3714 = vmatprep.subr.mxu0 0.0
    %3715 = vmatpush2.msra.mxu0 0.0
    %3716 = vmatprep.subr.mxu0 0.0
    %3717 = vmatpush2.msra.mxu0 0.0
    %3718 = vmatprep.subr.mxu0 0.0
    %3719 = vmatpush2.msra.mxu0 0.0
    %3720 = vmatprep.subr.mxu0 0.0
    %3721 = vmatpush2.msra.mxu0 0.0
    %3722 = vmatprep.subr.mxu0 0.0
    %3723 = vmatpush2.msra.mxu0 0.0
    %3724 = vmatprep.subr.mxu0 0.0
    %3725 = vmatpush2.msra.mxu0 0.0
    %3726 = vmatprep.subr.mxu0 0.0
    %3727 = vmatpush2.msra.mxu0 0.0
    %3728 = vmatprep.subr.mxu0 0.0
    %3729 = vmatpush2.msra.mxu0 0.0
    %3730 = vmatprep.subr.mxu0 0.0
    %3731 = vmatpush2.msra.mxu0 0.0
    %3732 = vmatprep.subr.mxu0 0.0
    %3733 = vmatpush2.msra.mxu0 0.0
    %3734 = vmatprep.subr.mxu0 0.0
    %3735 = vmatpush2.msra.mxu0 0.0
    %3736 = vmatprep.subr.mxu0 0.0
    %3737 = vmatpush2.msra.mxu0 0.0
    %3738 = vmatprep.subr.mxu0 0.0
    %3739 = vmatpush2.msra.mxu0 0.0
    %3740 = vmatprep.subr.mxu0 0.0
    %3741 = vmatpush2.msra.mxu0 0.0
    %3742 = vmatprep.mubr.f32.mxu0 0.0
    %3743 = vmatmul.mubr.f32.gmra.mxu0 %v3558
    %v3744 = vpop.f32.mrf.mxu0
    %v3745 = vadd.f32 0.0, %v3744
    %v3746 = vpop.f32.mrf.mxu0
    %3747 = vdwg.mxu0
    %v3748 = vadd.f32 %v3555, %v3674
    %v3749 = vsub.f32 0.0, %v3748
    %v3750 = vmul.f32 %v3749, 1.442695
    %v3751 = vpow.pop %v3750
    %v3752 = vadd.f32 %v3751, 1.0
    %v3753 = vrcp.pop %v3752
    %v3754 = vadd.f32 %v3556, %v3676
    %v3755 = vsub.f32 0.0, %v3754
    %v3756 = vmul.f32 %v3755, 1.442695
    %v3757 = vpow.pop %v3756
    %v3758 = vadd.f32 %v3757, 1.0
    %v3759 = vrcp.pop %v3758
    %v3760 = vadd.f32 %v3745, %v697
    %v3761 = vmul.f32 %v3753, %v3760
    %v3762 = vadd.f32 %v3557, %v3761
    %v3763 = vtanh.pop %v3762
    %v3764 = vsub.f32 1.0, %v3759
    %v3765 = vmul.f32 %v3764, %v3763
    %v3766 = vmul.f32 %v3759, %v3558
    %v3767 = vadd.f32 %v3765, %v3766
    %v3768 = vld [vmem:[%s487 + $0x18] sm:$0xff]
    %v3769 = vld [vmem:[%s487 + $0x20] sm:$0xff]
    %v3770 = vld [vmem:[%s487 + $0x28] sm:$0xff]
    %v3771 = vld [vmem:[#allocation4] sm:$0xff]
    %v3772 = vld [vmem:[#allocation10] sm:$0xff]
    %v3773 = vld [vmem:[#allocation10 + $0x8] sm:$0xff]
    %v3774 = vld [vmem:[#allocation10 + $0x10] sm:$0xff]
    %v3775 = vld [vmem:[#allocation10 + $0x18] sm:$0xff]
    %v3776 = vld [vmem:[#allocation10 + $0x20] sm:$0xff]
    %v3777 = vld [vmem:[#allocation10 + $0x28] sm:$0xff]
    %v3778 = vld [vmem:[#allocation10 + $0x30] sm:$0xff]
    %v3779 = vld [vmem:[#allocation10 + $0x38] sm:$0xff]
    %v3780 = vld [vmem:[#allocation10 + $0x40] sm:$0xff]
    %v3781 = vld [vmem:[#allocation10 + $0x48] sm:$0xff]
    %v3782 = vld [vmem:[#allocation10 + $0x50] sm:$0xff]
    %v3783 = vld [vmem:[#allocation10 + $0x58] sm:$0xff]
    %v3784 = vld [vmem:[#allocation10 + $0x60] sm:$0xff]
    %v3785 = vld [vmem:[#allocation10 + $0x68] sm:$0xff]
    %v3786 = vld [vmem:[#allocation10 + $0x70] sm:$0xff]
    %v3787 = vld [vmem:[#allocation10 + $0x78] sm:$0xff]
    %v3788 = vld [vmem:[#allocation10 + $0x80] sm:$0xff]
    %v3789 = vld [vmem:[#allocation10 + $0x88] sm:$0xff]
    %v3790 = vld [vmem:[#allocation10 + $0x90] sm:$0xff]
    %v3791 = vld [vmem:[#allocation10 + $0x98] sm:$0xff]
    %v3792 = vld [vmem:[#allocation10 + $0xa0] sm:$0xff]
    %v3793 = vld [vmem:[#allocation10 + $0xa8] sm:$0xff]
    %v3794 = vld [vmem:[#allocation10 + $0xb0] sm:$0xff]
    %v3795 = vld [vmem:[#allocation10 + $0xb8] sm:$0xff]
    %v3796 = vld [vmem:[#allocation10 + $0xc0] sm:$0xff]
    %v3797 = vld [vmem:[#allocation10 + $0xc8] sm:$0xff]
    %v3798 = vld [vmem:[#allocation10 + $0xd0] sm:$0xff]
    %v3799 = vld [vmem:[#allocation10 + $0xd8] sm:$0xff]
    %v3800 = vld [vmem:[#allocation10 + $0xe0] sm:$0xff]
    %v3801 = vld [vmem:[#allocation10 + $0xe8] sm:$0xff]
    %v3802 = vld [vmem:[#allocation10 + $0xf0] sm:$0xff]
    %v3803 = vld [vmem:[#allocation10 + $0xf8] sm:$0xff]
    %v3804 = vld [vmem:[#allocation10 + $0x100] sm:$0xff]
    %v3805 = vld [vmem:[#allocation10 + $0x108] sm:$0xff]
    %v3806 = vld [vmem:[#allocation10 + $0x110] sm:$0xff]
    %v3807 = vld [vmem:[#allocation10 + $0x118] sm:$0xff]
    %v3808 = vld [vmem:[#allocation10 + $0x120] sm:$0xff]
    %v3809 = vld [vmem:[#allocation10 + $0x128] sm:$0xff]
    %v3810 = vld [vmem:[#allocation10 + $0x130] sm:$0xff]
    %v3811 = vld [vmem:[#allocation10 + $0x138] sm:$0xff]
    %v3812 = vld [vmem:[#allocation10 + $0x140] sm:$0xff]
    %v3813 = vld [vmem:[#allocation10 + $0x148] sm:$0xff]
    %v3814 = vld [vmem:[#allocation10 + $0x150] sm:$0xff]
    %v3815 = vld [vmem:[#allocation10 + $0x158] sm:$0xff]
    %v3816 = vld [vmem:[#allocation10 + $0x160] sm:$0xff]
    %v3817 = vld [vmem:[#allocation10 + $0x168] sm:$0xff]
    %v3818 = vld [vmem:[#allocation10 + $0x170] sm:$0xff]
    %v3819 = vld [vmem:[#allocation10 + $0x178] sm:$0xff]
    %3820 = vmatprep.subr.mxu0 %v3818
    %3821 = vmatpush1.msra.mxu0 %v3817
    %3822 = vmatprep.subr.mxu0 %v3815
    %3823 = vmatpush1.msra.mxu0 %v3814
    %3824 = vmatprep.subr.mxu0 %v3812
    %3825 = vmatpush1.msra.mxu0 %v3811
    %3826 = vmatprep.subr.mxu0 %v3809
    %3827 = vmatpush1.msra.mxu0 %v3808
    %3828 = vmatprep.subr.mxu0 %v3806
    %3829 = vmatpush1.msra.mxu0 %v3805
    %3830 = vmatprep.subr.mxu0 %v3803
    %3831 = vmatpush1.msra.mxu0 %v3802
    %3832 = vmatprep.subr.mxu0 %v3800
    %3833 = vmatpush1.msra.mxu0 %v3799
    %3834 = vmatprep.subr.mxu0 %v3797
    %3835 = vmatpush1.msra.mxu0 %v3796
    %3836 = vmatprep.subr.mxu0 %v3794
    %3837 = vmatpush1.msra.mxu0 %v3793
    %3838 = vmatprep.subr.mxu0 %v3791
    %3839 = vmatpush1.msra.mxu0 %v3790
    %3840 = vmatprep.subr.mxu0 %v3788
    %3841 = vmatpush1.msra.mxu0 %v3787
    %3842 = vmatprep.subr.mxu0 %v3785
    %3843 = vmatpush1.msra.mxu0 %v3784
    %3844 = vmatprep.subr.mxu0 %v3782
    %3845 = vmatpush1.msra.mxu0 %v3781
    %3846 = vmatprep.subr.mxu0 %v3779
    %3847 = vmatpush1.msra.mxu0 %v3778
    %3848 = vmatprep.subr.mxu0 %v3776
    %3849 = vmatpush1.msra.mxu0 %v3775
    %3850 = vmatprep.subr.mxu0 %v3773
    %3851 = vmatpush1.msra.mxu0 %v3772
    %3852 = vmatprep.subr.mxu0 0.0
    %3853 = vmatpush2.msra.mxu0 0.0
    %3854 = vmatprep.subr.mxu0 0.0
    %3855 = vmatpush2.msra.mxu0 0.0
    %3856 = vmatprep.subr.mxu0 0.0
    %3857 = vmatpush2.msra.mxu0 0.0
    %3858 = vmatprep.subr.mxu0 0.0
    %3859 = vmatpush2.msra.mxu0 0.0
    %3860 = vmatprep.subr.mxu0 0.0
    %3861 = vmatpush2.msra.mxu0 0.0
    %3862 = vmatprep.subr.mxu0 0.0
    %3863 = vmatpush2.msra.mxu0 0.0
    %3864 = vmatprep.subr.mxu0 0.0
    %3865 = vmatpush2.msra.mxu0 0.0
    %3866 = vmatprep.subr.mxu0 0.0
    %3867 = vmatpush2.msra.mxu0 0.0
    %3868 = vmatprep.subr.mxu0 0.0
    %3869 = vmatpush2.msra.mxu0 0.0
    %3870 = vmatprep.subr.mxu0 0.0
    %3871 = vmatpush2.msra.mxu0 0.0
    %3872 = vmatprep.subr.mxu0 0.0
    %3873 = vmatpush2.msra.mxu0 0.0
    %3874 = vmatprep.subr.mxu0 0.0
    %3875 = vmatpush2.msra.mxu0 0.0
    %3876 = vmatprep.subr.mxu0 0.0
    %3877 = vmatpush2.msra.mxu0 0.0
    %3878 = vmatprep.subr.mxu0 0.0
    %3879 = vmatpush2.msra.mxu0 0.0
    %3880 = vmatprep.subr.mxu0 0.0
    %3881 = vmatpush2.msra.mxu0 0.0
    %3882 = vmatprep.subr.mxu0 0.0
    %3883 = vmatpush2.msra.mxu0 0.0
    %3884 = vmatprep.mubr.f32.mxu0 0.0
    %3885 = vmatmul.mubr.f32.gmra.mxu0 %v3771
    %v3886 = vpop.f32.mrf.mxu0
    %v3887 = vadd.f32 0.0, %v3886
    %v3888 = vpop.f32.mrf.mxu0
    %v3889 = vadd.f32 0.0, %v3888
    %3890 = vdwg.mxu0
    %3891 = vmatprep.subr.mxu0 0.0
    %3892 = vmatpush1.msra.mxu0 %v3819
    %3893 = vmatprep.subr.mxu0 0.0
    %3894 = vmatpush1.msra.mxu0 %v3816
    %3895 = vmatprep.subr.mxu0 0.0
    %3896 = vmatpush1.msra.mxu0 %v3813
    %3897 = vmatprep.subr.mxu0 0.0
    %3898 = vmatpush1.msra.mxu0 %v3810
    %3899 = vmatprep.subr.mxu0 0.0
    %3900 = vmatpush1.msra.mxu0 %v3807
    %3901 = vmatprep.subr.mxu0 0.0
    %3902 = vmatpush1.msra.mxu0 %v3804
    %3903 = vmatprep.subr.mxu0 0.0
    %3904 = vmatpush1.msra.mxu0 %v3801
    %3905 = vmatprep.subr.mxu0 0.0
    %3906 = vmatpush1.msra.mxu0 %v3798
    %3907 = vmatprep.subr.mxu0 0.0
    %3908 = vmatpush1.msra.mxu0 %v3795
    %3909 = vmatprep.subr.mxu0 0.0
    %3910 = vmatpush1.msra.mxu0 %v3792
    %3911 = vmatprep.subr.mxu0 0.0
    %3912 = vmatpush1.msra.mxu0 %v3789
    %3913 = vmatprep.subr.mxu0 0.0
    %3914 = vmatpush1.msra.mxu0 %v3786
    %3915 = vmatprep.subr.mxu0 0.0
    %3916 = vmatpush1.msra.mxu0 %v3783
    %3917 = vmatprep.subr.mxu0 0.0
    %3918 = vmatpush1.msra.mxu0 %v3780
    %3919 = vmatprep.subr.mxu0 0.0
    %3920 = vmatpush1.msra.mxu0 %v3777
    %3921 = vmatprep.subr.mxu0 0.0
    %3922 = vmatpush1.msra.mxu0 %v3774
    %3923 = vmatprep.subr.mxu0 0.0
    %3924 = vmatpush2.msra.mxu0 0.0
    %3925 = vmatprep.subr.mxu0 0.0
    %3926 = vmatpush2.msra.mxu0 0.0
    %3927 = vmatprep.subr.mxu0 0.0
    %3928 = vmatpush2.msra.mxu0 0.0
    %3929 = vmatprep.subr.mxu0 0.0
    %3930 = vmatpush2.msra.mxu0 0.0
    %3931 = vmatprep.subr.mxu0 0.0
    %3932 = vmatpush2.msra.mxu0 0.0
    %3933 = vmatprep.subr.mxu0 0.0
    %3934 = vmatpush2.msra.mxu0 0.0
    %3935 = vmatprep.subr.mxu0 0.0
    %3936 = vmatpush2.msra.mxu0 0.0
    %3937 = vmatprep.subr.mxu0 0.0
    %3938 = vmatpush2.msra.mxu0 0.0
    %3939 = vmatprep.subr.mxu0 0.0
    %3940 = vmatpush2.msra.mxu0 0.0
    %3941 = vmatprep.subr.mxu0 0.0
    %3942 = vmatpush2.msra.mxu0 0.0
    %3943 = vmatprep.subr.mxu0 0.0
    %3944 = vmatpush2.msra.mxu0 0.0
    %3945 = vmatprep.subr.mxu0 0.0
    %3946 = vmatpush2.msra.mxu0 0.0
    %3947 = vmatprep.subr.mxu0 0.0
    %3948 = vmatpush2.msra.mxu0 0.0
    %3949 = vmatprep.subr.mxu0 0.0
    %3950 = vmatpush2.msra.mxu0 0.0
    %3951 = vmatprep.subr.mxu0 0.0
    %3952 = vmatpush2.msra.mxu0 0.0
    %3953 = vmatprep.subr.mxu0 0.0
    %3954 = vmatpush2.msra.mxu0 0.0
    %3955 = vmatprep.mubr.f32.mxu0 0.0
    %3956 = vmatmul.mubr.f32.gmra.mxu0 %v3771
    %v3957 = vpop.f32.mrf.mxu0
    %v3958 = vadd.f32 0.0, %v3957
    %v3959 = vpop.f32.mrf.mxu0
    %3960 = vdwg.mxu0
    %v3961 = vadd.f32 %v3768, %v3887
    %v3962 = vsub.f32 0.0, %v3961
    %v3963 = vmul.f32 %v3962, 1.442695
    %v3964 = vpow.pop %v3963
    %v3965 = vadd.f32 %v3964, 1.0
    %v3966 = vrcp.pop %v3965
    %v3967 = vadd.f32 %v3769, %v3889
    %v3968 = vsub.f32 0.0, %v3967
    %v3969 = vmul.f32 %v3968, 1.442695
    %v3970 = vpow.pop %v3969
    %v3971 = vadd.f32 %v3970, 1.0
    %v3972 = vrcp.pop %v3971
    %v3973 = vadd.f32 %v3958, %v919
    %v3974 = vmul.f32 %v3966, %v3973
    %v3975 = vadd.f32 %v3770, %v3974
    %v3976 = vtanh.pop %v3975
    %v3977 = vsub.f32 1.0, %v3972
    %v3978 = vmul.f32 %v3977, %v3976
    %v3979 = vmul.f32 %v3972, %v3771
    %v3980 = vadd.f32 %v3978, %v3979
    %3981 = vst [vmem:[#allocation3] sm:$0xff] %v3767
    %3982 = vst [vmem:[#allocation4] sm:$0xff] %v3980
    %3983 = vst [vmem:[%s937] sm:$0xff] %v3767
    %3984 = vst [vmem:[%s933 + $0x8] sm:$0xff] %v3980
    // Predicated region
    $region42: #{tpu_custom_call.1} parent=1 // pred_check
      _
    $region43: #{tpu_custom_call.1} parent=1 // pred_check_branch
      %3986 = sbr.rel (0) target = $region45
    $region44: #{tpu_custom_call.1} parent=1 // pred_region
      %s3988 = ssub.s32 2048, 2048
      %3989 = vsyncadd [#allocation7], %s3988
      %s3990 = sshll.u32 [#allocation11], 4
      %s3991 = int_to_ptr.vmem [resolvable:$true] %s3990
      %3996 = dma.vmem_to_hbm [thread:$0]  %s3991, 2048, %s7, [#allocation7], 256, 256, 16
    $region45: #{tpu_custom_call.1} parent=1 // pred_fallthru
      _
    // Predicated region
    $region46: #{tpu_custom_call.1} parent=1 // pred_check
      _
    $region47: #{tpu_custom_call.1} parent=1 // pred_check_branch
      %3998 = sbr.rel (0) target = $region49
    $region48: #{tpu_custom_call.1} parent=1 // pred_region
      %3999 = dma.done [#allocation7], 2048
    $region49: #{tpu_custom_call.1} parent=1 // pred_fallthru
      _
    %4000 = vsyncpa [#allocation6], 1
    %4001 = vsyncpa [#allocation9], 1
    %4002 = vsyncpa [#allocation7], 1

</llo_original>
